<compile_context>
chip_gen: v7x
topology: tpu7x:2x2x1
jax: 0.10.0
libtpu: 0.0.40
codegen_flags: <defaults>
</compile_context>

<pallas_src>
import math
import functools

import jax
import jax.numpy as jnp
from jax.experimental import pallas as pl
from jax.experimental.pallas import tpu as pltpu

NEG_SLOPE = 0.01      # nn.LeakyReLU() default
IN_DIM = 6
OUT_DIM = 200
HIDDEN = 200
PAD = 256             # lane-dense padded width (multiple of 128)
DEFAULT_TB = 256      # batch rows per grid step (>= 256 feeds the MXU on v6e/v7x)


def _leaky_relu(h):
    return jnp.where(h > 0, h, NEG_SLOPE * h)


def mlp_kernel(x_ref,
               w1_ref, b1_ref, w2_ref, b2_ref, w3_ref, b3_ref,
               w4_ref, b4_ref, w5_ref, b5_ref, w6_ref, b6_ref,
               w7_ref, b7_ref,
               o_ref):
    # x block: (TB, 6) f32 activations
    h = x_ref[...].astype(jnp.float32)

    # Layers 1..6: Linear -> LeakyReLU (-> Dropout, identity in eval)
    hidden = [(w1_ref, b1_ref), (w2_ref, b2_ref), (w3_ref, b3_ref),
              (w4_ref, b4_ref), (w5_ref, b5_ref), (w6_ref, b6_ref)]
    for w_ref, b_ref in hidden:
        # bf16 MXU inputs, f32 accumulation; bias add + LeakyReLU in f32 on VPU.
        h = jnp.dot(h.astype(jnp.bfloat16), w_ref[...],
                    preferred_element_type=jnp.float32)
        h = h + b_ref[...]
        h = _leaky_relu(h)

    # Layer 7: final Linear, no activation
    h = jnp.dot(h.astype(jnp.bfloat16), w7_ref[...],
                preferred_element_type=jnp.float32)
    h = h + b7_ref[...]

    o_ref[...] = h.astype(o_ref.dtype)


@functools.partial(jax.jit, static_argnames=("tb",))
def mlp_forward(x, params, *, tb=DEFAULT_TB):
    """params is a flat tuple (w1, b1, ..., w7, b7):
       w_i: (in_pad, 256) bf16, pre-transposed and zero-padded
       b_i: (1, 256) f32, zero-padded
    Returns (B, 200) f32."""
    B = x.shape[0]
    x2d = x.reshape(B, -1).astype(jnp.float32)   # x.view(x.size(0), -1)
    in_f = x2d.shape[1]

    # Pad the batch to a multiple of the batch tile.
    b_pad = pl.cdiv(B, tb) * tb
    if b_pad != B:
        x2d = jnp.pad(x2d, ((0, b_pad - B), (0, 0)))
    grid = (b_pad // tb,)

    x_spec = pl.BlockSpec((tb, in_f), lambda i: (i, 0))
    # Weights / biases: single full-shape block, constant index -> fetched once,
    # VMEM-resident across all batch blocks.
    param_specs = [pl.BlockSpec(p.shape, lambda i: (0, 0)) for p in params]
    out_spec = pl.BlockSpec((tb, PAD), lambda i: (i, 0))

    out_padded = pl.pallas_call(
        mlp_kernel,
        out_shape=jax.ShapeDtypeStruct((b_pad, PAD), jnp.float32),
        grid=grid,
        in_specs=[x_spec] + param_specs,
        out_specs=out_spec,
        compiler_params=pltpu.CompilerParams(
            dimension_semantics=("parallel",),
            vmem_limit_bytes=32 * 1024 * 1024,
        ),
    )(x2d, *params)

    return out_padded[:B, :OUT_DIM]


# ----------------------------------------------------------------------------
# Parameter construction (PyTorch-equivalent init), padded/cast for the kernel.
# ----------------------------------------------------------------------------
def xavier_uniform(key, shape):
    # shape = (out_features, in_features)  (PyTorch convention)
    fan_out, fan_in = shape
    bound = math.sqrt(6.0 / (fan_in + fan_out))
    return jax.random.uniform(key, shape, jnp.float32, -bound, bound)


def linear_bias_init(key, in_features, out_features):
    # PyTorch nn.Linear default bias init: U(-1/sqrt(fan_in), 1/sqrt(fan_in))
    bound = 1.0 / math.sqrt(in_features)
    return jax.random.uniform(key, (1, out_features), jnp.float32, -bound, bound)


def make_params(key):
    """Returns (kernel_params, f32_params).
    kernel_params: bf16 weights (in_pad, 256) + f32 biases (1, 256), zero-padded.
    f32_params:    unpadded f32 (in, out) weights + (1, out) biases (reference)."""
    dims = [(IN_DIM, HIDDEN)] + [(HIDDEN, HIDDEN)] * 5 + [(HIDDEN, OUT_DIM)]
    kparams, fparams = [], []
    for (in_f, out_f) in dims:
        key, kw, kb = jax.random.split(key, 3)
        w = xavier_uniform(kw, (out_f, in_f)).T          # (in, out)
        b = linear_bias_init(kb, in_f, out_f)            # (1, out)
        fparams += [w, b]

        in_pad = in_f if in_f == IN_DIM else PAD
        w_p = jnp.zeros((in_pad, PAD), jnp.float32).at[:in_f, :out_f].set(w)
        b_p = jnp.zeros((1, PAD), jnp.float32).at[:, :out_f].set(b[0])
        kparams += [w_p.astype(jnp.bfloat16), b_p]       # bf16 weights, f32 bias
    return tuple(kparams), tuple(fparams)


def reference_forward(x, fparams):
    """Pure-JAX reference mirroring the kernel's numerics (bf16 matmul inputs,
    f32 accumulation), for a tolerance check."""
    h = x.reshape(x.shape[0], -1).astype(jnp.float32)
    for li in range(7):
        w, b = fparams[2 * li], fparams[2 * li + 1]
        h = jnp.dot(h.astype(jnp.bfloat16).astype(jnp.float32),
                    w.astype(jnp.bfloat16).astype(jnp.float32),
                    preferred_element_type=jnp.float32) + b
        if li < 6:
            h = _leaky_relu(h)
    return h


if __name__ == "__main__":
    key = jax.random.PRNGKey(0)
    key, kx, kp = jax.random.split(key, 3)

    batch = 8
    x = jax.random.normal(kx, (batch, IN_DIM), dtype=jnp.float32)

    kernel_params, f32_params = make_params(kp)

    out = mlp_forward(x, kernel_params)
    jax.block_until_ready(out)

    assert out.shape == (batch, OUT_DIM)
    assert out.dtype == jnp.float32
    assert bool(jnp.all(jnp.isfinite(out)))

    ref = reference_forward(x, f32_params)
    assert bool(jnp.allclose(out, ref, rtol=1e-2, atol=1e-2)), \
        f"max abs diff {float(jnp.max(jnp.abs(out - ref)))}"

    print("KERNEL_OK")
</pallas_src>

<mosaic_0001>
module attributes {stable_mosaic.version = 11 : i64} {
  func.func @mlp_kernel(%arg0: i32, %arg1: memref<256x6xf32, #tpu.memory_space<vmem>>, %arg2: memref<6x256xbf16, #tpu.memory_space<vmem>>, %arg3: memref<1x256xf32, #tpu.memory_space<vmem>>, %arg4: memref<256x256xbf16, #tpu.memory_space<vmem>>, %arg5: memref<1x256xf32, #tpu.memory_space<vmem>>, %arg6: memref<256x256xbf16, #tpu.memory_space<vmem>>, %arg7: memref<1x256xf32, #tpu.memory_space<vmem>>, %arg8: memref<256x256xbf16, #tpu.memory_space<vmem>>, %arg9: memref<1x256xf32, #tpu.memory_space<vmem>>, %arg10: memref<256x256xbf16, #tpu.memory_space<vmem>>, %arg11: memref<1x256xf32, #tpu.memory_space<vmem>>, %arg12: memref<256x256xbf16, #tpu.memory_space<vmem>>, %arg13: memref<1x256xf32, #tpu.memory_space<vmem>>, %arg14: memref<256x256xbf16, #tpu.memory_space<vmem>>, %arg15: memref<1x256xf32, #tpu.memory_space<vmem>>, %arg16: memref<256x256xf32, #tpu.memory_space<vmem>>) attributes {dimension_semantics = [#tpu.dimension_semantics<parallel>], iteration_bounds = array<i64: 1>, scalar_prefetch = 0 : i64, scratch_operands = 0 : i64, tpu.core_type = #tpu.core_type<tc>, window_params = [{transform_indices = @transform_0, window_bounds = array<i64: 256, 6>}, {pipeline_mode = #tpu.pipeline_mode<synchronous>, transform_indices = @transform_1, window_bounds = array<i64: 6, 256>}, {pipeline_mode = #tpu.pipeline_mode<synchronous>, transform_indices = @transform_2, window_bounds = array<i64: 1, 256>}, {pipeline_mode = #tpu.pipeline_mode<synchronous>, transform_indices = @transform_3, window_bounds = array<i64: 256, 256>}, {pipeline_mode = #tpu.pipeline_mode<synchronous>, transform_indices = @transform_4, window_bounds = array<i64: 1, 256>}, {pipeline_mode = #tpu.pipeline_mode<synchronous>, transform_indices = @transform_5, window_bounds = array<i64: 256, 256>}, {pipeline_mode = #tpu.pipeline_mode<synchronous>, transform_indices = @transform_6, window_bounds = array<i64: 1, 256>}, {pipeline_mode = #tpu.pipeline_mode<synchronous>, transform_indices = @transform_7, window_bounds = array<i64: 256, 256>}, {pipeline_mode = #tpu.pipeline_mode<synchronous>, transform_indices = @transform_8, window_bounds = array<i64: 1, 256>}, {pipeline_mode = #tpu.pipeline_mode<synchronous>, transform_indices = @transform_9, window_bounds = array<i64: 256, 256>}, {pipeline_mode = #tpu.pipeline_mode<synchronous>, transform_indices = @transform_10, window_bounds = array<i64: 1, 256>}, {pipeline_mode = #tpu.pipeline_mode<synchronous>, transform_indices = @transform_11, window_bounds = array<i64: 256, 256>}, {pipeline_mode = #tpu.pipeline_mode<synchronous>, transform_indices = @transform_12, window_bounds = array<i64: 1, 256>}, {pipeline_mode = #tpu.pipeline_mode<synchronous>, transform_indices = @transform_13, window_bounds = array<i64: 256, 256>}, {pipeline_mode = #tpu.pipeline_mode<synchronous>, transform_indices = @transform_14, window_bounds = array<i64: 1, 256>}, {transform_indices = @transform_15, window_bounds = array<i64: 256, 256>}]} {
    %c0 = arith.constant 0 : index
    %c0_0 = arith.constant 0 : index
    %0 = vector.load %arg1[%c0, %c0_0] : memref<256x6xf32, #tpu.memory_space<vmem>>, vector<256x6xf32>
    %1 = arith.truncf %0 : vector<256x6xf32> to vector<256x6xbf16>
    %c0_1 = arith.constant 0 : index
    %c0_2 = arith.constant 0 : index
    %2 = vector.load %arg2[%c0_1, %c0_2] : memref<6x256xbf16, #tpu.memory_space<vmem>>, vector<6x256xbf16>
    %cst = arith.constant dense<0.000000e+00> : vector<256x256xf32>
    %3 = tpu.matmul %1, %2, %cst {dimension_numbers = #tpu.dot_dimension_numbers<[1], [0], [0], [1], [0, 0, 1, 1], [], []>} : vector<256x6xbf16>, vector<6x256xbf16>, vector<256x256xf32> -> vector<256x256xf32>
    %c0_3 = arith.constant 0 : index
    %c0_4 = arith.constant 0 : index
    %4 = vector.load %arg3[%c0_3, %c0_4] : memref<1x256xf32, #tpu.memory_space<vmem>>, vector<1x256xf32>
    %5 = vector.broadcast %4 : vector<1x256xf32> to vector<256x256xf32>
    %6 = arith.addf %3, %5 : vector<256x256xf32>
    %cst_5 = arith.constant 0.000000e+00 : f32
    %7 = vector.broadcast %cst_5 : f32 to vector<256x256xf32>
    %8 = arith.cmpf ogt, %6, %7 : vector<256x256xf32>
    %cst_6 = arith.constant 0.00999999977 : f32
    %9 = vector.broadcast %cst_6 : f32 to vector<256x256xf32>
    %10 = arith.mulf %9, %6 : vector<256x256xf32>
    %11 = arith.select %8, %6, %10 : vector<256x256xi1>, vector<256x256xf32>
    %12 = arith.truncf %11 : vector<256x256xf32> to vector<256x256xbf16>
    %c0_7 = arith.constant 0 : index
    %c0_8 = arith.constant 0 : index
    %13 = vector.load %arg4[%c0_7, %c0_8] : memref<256x256xbf16, #tpu.memory_space<vmem>>, vector<256x256xbf16>
    %cst_9 = arith.constant dense<0.000000e+00> : vector<256x256xf32>
    %14 = tpu.matmul %12, %13, %cst_9 {dimension_numbers = #tpu.dot_dimension_numbers<[1], [0], [0], [1], [0, 0, 1, 1], [], []>} : vector<256x256xbf16>, vector<256x256xbf16>, vector<256x256xf32> -> vector<256x256xf32>
    %c0_10 = arith.constant 0 : index
    %c0_11 = arith.constant 0 : index
    %15 = vector.load %arg5[%c0_10, %c0_11] : memref<1x256xf32, #tpu.memory_space<vmem>>, vector<1x256xf32>
    %16 = vector.broadcast %15 : vector<1x256xf32> to vector<256x256xf32>
    %17 = arith.addf %14, %16 : vector<256x256xf32>
    %cst_12 = arith.constant 0.000000e+00 : f32
    %18 = vector.broadcast %cst_12 : f32 to vector<256x256xf32>
    %19 = arith.cmpf ogt, %17, %18 : vector<256x256xf32>
    %cst_13 = arith.constant 0.00999999977 : f32
    %20 = vector.broadcast %cst_13 : f32 to vector<256x256xf32>
    %21 = arith.mulf %20, %17 : vector<256x256xf32>
    %22 = arith.select %19, %17, %21 : vector<256x256xi1>, vector<256x256xf32>
    %23 = arith.truncf %22 : vector<256x256xf32> to vector<256x256xbf16>
    %c0_14 = arith.constant 0 : index
    %c0_15 = arith.constant 0 : index
    %24 = vector.load %arg6[%c0_14, %c0_15] : memref<256x256xbf16, #tpu.memory_space<vmem>>, vector<256x256xbf16>
    %cst_16 = arith.constant dense<0.000000e+00> : vector<256x256xf32>
    %25 = tpu.matmul %23, %24, %cst_16 {dimension_numbers = #tpu.dot_dimension_numbers<[1], [0], [0], [1], [0, 0, 1, 1], [], []>} : vector<256x256xbf16>, vector<256x256xbf16>, vector<256x256xf32> -> vector<256x256xf32>
    %c0_17 = arith.constant 0 : index
    %c0_18 = arith.constant 0 : index
    %26 = vector.load %arg7[%c0_17, %c0_18] : memref<1x256xf32, #tpu.memory_space<vmem>>, vector<1x256xf32>
    %27 = vector.broadcast %26 : vector<1x256xf32> to vector<256x256xf32>
    %28 = arith.addf %25, %27 : vector<256x256xf32>
    %cst_19 = arith.constant 0.000000e+00 : f32
    %29 = vector.broadcast %cst_19 : f32 to vector<256x256xf32>
    %30 = arith.cmpf ogt, %28, %29 : vector<256x256xf32>
    %cst_20 = arith.constant 0.00999999977 : f32
    %31 = vector.broadcast %cst_20 : f32 to vector<256x256xf32>
    %32 = arith.mulf %31, %28 : vector<256x256xf32>
    %33 = arith.select %30, %28, %32 : vector<256x256xi1>, vector<256x256xf32>
    %34 = arith.truncf %33 : vector<256x256xf32> to vector<256x256xbf16>
    %c0_21 = arith.constant 0 : index
    %c0_22 = arith.constant 0 : index
    %35 = vector.load %arg8[%c0_21, %c0_22] : memref<256x256xbf16, #tpu.memory_space<vmem>>, vector<256x256xbf16>
    %cst_23 = arith.constant dense<0.000000e+00> : vector<256x256xf32>
    %36 = tpu.matmul %34, %35, %cst_23 {dimension_numbers = #tpu.dot_dimension_numbers<[1], [0], [0], [1], [0, 0, 1, 1], [], []>} : vector<256x256xbf16>, vector<256x256xbf16>, vector<256x256xf32> -> vector<256x256xf32>
    %c0_24 = arith.constant 0 : index
    %c0_25 = arith.constant 0 : index
    %37 = vector.load %arg9[%c0_24, %c0_25] : memref<1x256xf32, #tpu.memory_space<vmem>>, vector<1x256xf32>
    %38 = vector.broadcast %37 : vector<1x256xf32> to vector<256x256xf32>
    %39 = arith.addf %36, %38 : vector<256x256xf32>
    %cst_26 = arith.constant 0.000000e+00 : f32
    %40 = vector.broadcast %cst_26 : f32 to vector<256x256xf32>
    %41 = arith.cmpf ogt, %39, %40 : vector<256x256xf32>
    %cst_27 = arith.constant 0.00999999977 : f32
    %42 = vector.broadcast %cst_27 : f32 to vector<256x256xf32>
    %43 = arith.mulf %42, %39 : vector<256x256xf32>
    %44 = arith.select %41, %39, %43 : vector<256x256xi1>, vector<256x256xf32>
    %45 = arith.truncf %44 : vector<256x256xf32> to vector<256x256xbf16>
    %c0_28 = arith.constant 0 : index
    %c0_29 = arith.constant 0 : index
    %46 = vector.load %arg10[%c0_28, %c0_29] : memref<256x256xbf16, #tpu.memory_space<vmem>>, vector<256x256xbf16>
    %cst_30 = arith.constant dense<0.000000e+00> : vector<256x256xf32>
    %47 = tpu.matmul %45, %46, %cst_30 {dimension_numbers = #tpu.dot_dimension_numbers<[1], [0], [0], [1], [0, 0, 1, 1], [], []>} : vector<256x256xbf16>, vector<256x256xbf16>, vector<256x256xf32> -> vector<256x256xf32>
    %c0_31 = arith.constant 0 : index
    %c0_32 = arith.constant 0 : index
    %48 = vector.load %arg11[%c0_31, %c0_32] : memref<1x256xf32, #tpu.memory_space<vmem>>, vector<1x256xf32>
    %49 = vector.broadcast %48 : vector<1x256xf32> to vector<256x256xf32>
    %50 = arith.addf %47, %49 : vector<256x256xf32>
    %cst_33 = arith.constant 0.000000e+00 : f32
    %51 = vector.broadcast %cst_33 : f32 to vector<256x256xf32>
    %52 = arith.cmpf ogt, %50, %51 : vector<256x256xf32>
    %cst_34 = arith.constant 0.00999999977 : f32
    %53 = vector.broadcast %cst_34 : f32 to vector<256x256xf32>
    %54 = arith.mulf %53, %50 : vector<256x256xf32>
    %55 = arith.select %52, %50, %54 : vector<256x256xi1>, vector<256x256xf32>
    %56 = arith.truncf %55 : vector<256x256xf32> to vector<256x256xbf16>
    %c0_35 = arith.constant 0 : index
    %c0_36 = arith.constant 0 : index
    %57 = vector.load %arg12[%c0_35, %c0_36] : memref<256x256xbf16, #tpu.memory_space<vmem>>, vector<256x256xbf16>
    %cst_37 = arith.constant dense<0.000000e+00> : vector<256x256xf32>
    %58 = tpu.matmul %56, %57, %cst_37 {dimension_numbers = #tpu.dot_dimension_numbers<[1], [0], [0], [1], [0, 0, 1, 1], [], []>} : vector<256x256xbf16>, vector<256x256xbf16>, vector<256x256xf32> -> vector<256x256xf32>
    %c0_38 = arith.constant 0 : index
    %c0_39 = arith.constant 0 : index
    %59 = vector.load %arg13[%c0_38, %c0_39] : memref<1x256xf32, #tpu.memory_space<vmem>>, vector<1x256xf32>
    %60 = vector.broadcast %59 : vector<1x256xf32> to vector<256x256xf32>
    %61 = arith.addf %58, %60 : vector<256x256xf32>
    %cst_40 = arith.constant 0.000000e+00 : f32
    %62 = vector.broadcast %cst_40 : f32 to vector<256x256xf32>
    %63 = arith.cmpf ogt, %61, %62 : vector<256x256xf32>
    %cst_41 = arith.constant 0.00999999977 : f32
    %64 = vector.broadcast %cst_41 : f32 to vector<256x256xf32>
    %65 = arith.mulf %64, %61 : vector<256x256xf32>
    %66 = arith.select %63, %61, %65 : vector<256x256xi1>, vector<256x256xf32>
    %67 = arith.truncf %66 : vector<256x256xf32> to vector<256x256xbf16>
    %c0_42 = arith.constant 0 : index
    %c0_43 = arith.constant 0 : index
    %68 = vector.load %arg14[%c0_42, %c0_43] : memref<256x256xbf16, #tpu.memory_space<vmem>>, vector<256x256xbf16>
    %cst_44 = arith.constant dense<0.000000e+00> : vector<256x256xf32>
    %69 = tpu.matmul %67, %68, %cst_44 {dimension_numbers = #tpu.dot_dimension_numbers<[1], [0], [0], [1], [0, 0, 1, 1], [], []>} : vector<256x256xbf16>, vector<256x256xbf16>, vector<256x256xf32> -> vector<256x256xf32>
    %c0_45 = arith.constant 0 : index
    %c0_46 = arith.constant 0 : index
    %70 = vector.load %arg15[%c0_45, %c0_46] : memref<1x256xf32, #tpu.memory_space<vmem>>, vector<1x256xf32>
    %71 = vector.broadcast %70 : vector<1x256xf32> to vector<256x256xf32>
    %72 = arith.addf %69, %71 : vector<256x256xf32>
    %c0_47 = arith.constant 0 : index
    %c0_48 = arith.constant 0 : index
    %73 = vector.load %arg16[%c0_47, %c0_48] : memref<256x256xf32, #tpu.memory_space<vmem>>, vector<256x256xf32>
    tpu.vector_store %arg16[%c0_47, %c0_48], %72 {strides = array<i32>} : memref<256x256xf32, #tpu.memory_space<vmem>>, vector<256x256xf32>,
    return
  }
  func.func @transform_0(%arg0: i32) -> (i32, i32) {
    %c0_i32 = arith.constant 0 : i32
    %c0_i32_0 = arith.constant 0 : i32
    return %arg0, %c0_i32 : i32, i32
  }
  func.func @transform_1(%arg0: i32) -> (i32, i32) {
    %c0_i32 = arith.constant 0 : i32
    %c0_i32_0 = arith.constant 0 : i32
    %c0_i32_1 = arith.constant 0 : i32
    return %c0_i32, %c0_i32_0 : i32, i32
  }
  func.func @transform_2(%arg0: i32) -> (i32, i32) {
    %c0_i32 = arith.constant 0 : i32
    %c0_i32_0 = arith.constant 0 : i32
    %c0_i32_1 = arith.constant 0 : i32
    return %c0_i32, %c0_i32_0 : i32, i32
  }
  func.func @transform_3(%arg0: i32) -> (i32, i32) {
    %c0_i32 = arith.constant 0 : i32
    %c0_i32_0 = arith.constant 0 : i32
    %c0_i32_1 = arith.constant 0 : i32
    return %c0_i32, %c0_i32_0 : i32, i32
  }
  func.func @transform_4(%arg0: i32) -> (i32, i32) {
    %c0_i32 = arith.constant 0 : i32
    %c0_i32_0 = arith.constant 0 : i32
    %c0_i32_1 = arith.constant 0 : i32
    return %c0_i32, %c0_i32_0 : i32, i32
  }
  func.func @transform_5(%arg0: i32) -> (i32, i32) {
    %c0_i32 = arith.constant 0 : i32
    %c0_i32_0 = arith.constant 0 : i32
    %c0_i32_1 = arith.constant 0 : i32
    return %c0_i32, %c0_i32_0 : i32, i32
  }
  func.func @transform_6(%arg0: i32) -> (i32, i32) {
    %c0_i32 = arith.constant 0 : i32
    %c0_i32_0 = arith.constant 0 : i32
    %c0_i32_1 = arith.constant 0 : i32
    return %c0_i32, %c0_i32_0 : i32, i32
  }
  func.func @transform_7(%arg0: i32) -> (i32, i32) {
    %c0_i32 = arith.constant 0 : i32
    %c0_i32_0 = arith.constant 0 : i32
    %c0_i32_1 = arith.constant 0 : i32
    return %c0_i32, %c0_i32_0 : i32, i32
  }
  func.func @transform_8(%arg0: i32) -> (i32, i32) {
    %c0_i32 = arith.constant 0 : i32
    %c0_i32_0 = arith.constant 0 : i32
    %c0_i32_1 = arith.constant 0 : i32
    return %c0_i32, %c0_i32_0 : i32, i32
  }
  func.func @transform_9(%arg0: i32) -> (i32, i32) {
    %c0_i32 = arith.constant 0 : i32
    %c0_i32_0 = arith.constant 0 : i32
    %c0_i32_1 = arith.constant 0 : i32
    return %c0_i32, %c0_i32_0 : i32, i32
  }
  func.func @transform_10(%arg0: i32) -> (i32, i32) {
    %c0_i32 = arith.constant 0 : i32
    %c0_i32_0 = arith.constant 0 : i32
    %c0_i32_1 = arith.constant 0 : i32
    return %c0_i32, %c0_i32_0 : i32, i32
  }
  func.func @transform_11(%arg0: i32) -> (i32, i32) {
    %c0_i32 = arith.constant 0 : i32
    %c0_i32_0 = arith.constant 0 : i32
    %c0_i32_1 = arith.constant 0 : i32
    return %c0_i32, %c0_i32_0 : i32, i32
  }
  func.func @transform_12(%arg0: i32) -> (i32, i32) {
    %c0_i32 = arith.constant 0 : i32
    %c0_i32_0 = arith.constant 0 : i32
    %c0_i32_1 = arith.constant 0 : i32
    return %c0_i32, %c0_i32_0 : i32, i32
  }
  func.func @transform_13(%arg0: i32) -> (i32, i32) {
    %c0_i32 = arith.constant 0 : i32
    %c0_i32_0 = arith.constant 0 : i32
    %c0_i32_1 = arith.constant 0 : i32
    return %c0_i32, %c0_i32_0 : i32, i32
  }
  func.func @transform_14(%arg0: i32) -> (i32, i32) {
    %c0_i32 = arith.constant 0 : i32
    %c0_i32_0 = arith.constant 0 : i32
    %c0_i32_1 = arith.constant 0 : i32
    return %c0_i32, %c0_i32_0 : i32, i32
  }
  func.func @transform_15(%arg0: i32) -> (i32, i32) {
    %c0_i32 = arith.constant 0 : i32
    %c0_i32_0 = arith.constant 0 : i32
    return %arg0, %c0_i32 : i32, i32
  }
}

</mosaic_0001>

<llo_original>
// kernel: mlp_forward.1
$region0: #{mlp_forward.1}
  #allocation0 [shape = 'u32[]', space=smem, size = 0x4, offset = 0x4, fixed_abs, tag = 'smem constant byte address 0x4 - core index']
  #allocation1 [shape = 'u32[144,128]{1,0:T(1,128)}', space=vmem, size = 0x12000, scoped, tag = 'internal scratch']
  %s0 = inlined_call_operand.vmem [shape: f32[256,6], index: 0, kind: input, shape index: {}]
  %s1 = inlined_call_operand.vmem [shape: bf16[6,256], index: 1, kind: input, shape index: {}]
  %s2 = inlined_call_operand.vmem [shape: f32[1,256], index: 2, kind: input, shape index: {}]
  %s3 = inlined_call_operand.vmem [shape: bf16[256,256], index: 3, kind: input, shape index: {}]
  %s4 = inlined_call_operand.vmem [shape: f32[1,256], index: 4, kind: input, shape index: {}]
  %s5 = inlined_call_operand.hbm [shape: bf16[256,256], index: 5, kind: input, shape index: {}]
  %s6 = inlined_call_operand.vmem [shape: f32[1,256], index: 6, kind: input, shape index: {}]
  %s7 = inlined_call_operand.hbm [shape: bf16[256,256], index: 7, kind: input, shape index: {}]
  %s8 = inlined_call_operand.vmem [shape: f32[1,256], index: 8, kind: input, shape index: {}]
  %s9 = inlined_call_operand.hbm [shape: bf16[256,256], index: 9, kind: input, shape index: {}]
  %s10 = inlined_call_operand.vmem [shape: f32[1,256], index: 10, kind: input, shape index: {}]
  %s11 = inlined_call_operand.hbm [shape: bf16[256,256], index: 11, kind: input, shape index: {}]
  %s12 = inlined_call_operand.vmem [shape: f32[1,256], index: 12, kind: input, shape index: {}]
  %s13 = inlined_call_operand.hbm [shape: bf16[256,256], index: 13, kind: input, shape index: {}]
  %s14 = inlined_call_operand.vmem [shape: f32[1,256], index: 14, kind: input, shape index: {}]
  %s15 = inlined_call_operand.vmem [shape: f32[256,256], index: 15, kind: output, shape index: {}]
  %s16 = sld [smem:[#allocation0]]
  $region90: #{mlp_forward.1} parent=0
    _
  %s18 = ssub.s32 1, %s16
  %s19 = scalar_select 0, %s18, %s16
  $region1: #{mlp_forward.1} parent=0
    #allocation2 [shape = 'u8[131072]{0}', space=vmem, size = 0x20000, scoped, tag = 'input window, operand 5, single buffered']
    #allocation3 [shape = 's32[1]{0}', space=sflag, size = 0x4, scoped, tag = 'scoped memory for mlp_forward.1']
    #allocation4 [shape = 'u8[131072]{0}', space=vmem, size = 0x20000, scoped, tag = 'input window, operand 7, single buffered']
    #allocation5 [shape = 's32[1]{0}', space=sflag, size = 0x4, scoped, tag = 'scoped memory for mlp_forward.1']
    #allocation6 [shape = 'u8[131072]{0}', space=vmem, size = 0x20000, scoped, tag = 'input window, operand 9, single buffered']
    #allocation7 [shape = 'u8[131072]{0}', space=vmem, size = 0x20000, scoped, tag = 'input window, operand 11, single buffered']
    #allocation8 [shape = 's32[1]{0}', space=sflag, size = 0x4, scoped, tag = 'scoped memory for mlp_forward.1']
    #allocation9 [shape = 'u8[131072]{0}', space=vmem, size = 0x20000, scoped, tag = 'input window, operand 13, single buffered']
    %20 = vsyncpa [#allocation3], 0
    %21 = vsyncpa [#allocation5], 0
    %22 = vsyncpa [#allocation8], 0
    // Predicated region
    $region2: #{mlp_forward.1} parent=1 // pred_check
      _
    $region3: #{mlp_forward.1} parent=1 // pred_check_branch
      %24 = sbr.rel (0) target = $region5
    $region4: #{mlp_forward.1} parent=1 // pred_region
      _
    $region5: #{mlp_forward.1} parent=1 // pred_fallthru
      _
    // Predicated region
    $region6: #{mlp_forward.1} parent=1 // pred_check
      _
    $region7: #{mlp_forward.1} parent=1 // pred_check_branch
      %26 = sbr.rel (0) target = $region9
    $region8: #{mlp_forward.1} parent=1 // pred_region
      _
    $region9: #{mlp_forward.1} parent=1 // pred_fallthru
      _
    // Predicated region
    $region10: #{mlp_forward.1} parent=1 // pred_check
      _
    $region11: #{mlp_forward.1} parent=1 // pred_check_branch
      %28 = sbr.rel (0) target = $region13
    $region12: #{mlp_forward.1} parent=1 // pred_region
      _
    $region13: #{mlp_forward.1} parent=1 // pred_fallthru
      _
    // Predicated region
    $region14: #{mlp_forward.1} parent=1 // pred_check
      _
    $region15: #{mlp_forward.1} parent=1 // pred_check_branch
      %30 = sbr.rel (0) target = $region17
    $region16: #{mlp_forward.1} parent=1 // pred_region
      _
    $region17: #{mlp_forward.1} parent=1 // pred_fallthru
      _
    // Predicated region
    $region18: #{mlp_forward.1} parent=1 // pred_check
      _
    $region19: #{mlp_forward.1} parent=1 // pred_check_branch
      %32 = sbr.rel (0) target = $region21
    $region20: #{mlp_forward.1} parent=1 // pred_region
      _
    $region21: #{mlp_forward.1} parent=1 // pred_fallthru
      _
    // Predicated region
    $region22: #{mlp_forward.1} parent=1 // pred_check
      _
    $region23: #{mlp_forward.1} parent=1 // pred_check_branch
      %34 = sbr.rel (0) target = $region25
    $region24: #{mlp_forward.1} parent=1 // pred_region
      %s36 = ssub.s32 4096, 4096
      %37 = vsyncadd [#allocation3], %s36
      %s38 = sshll.u32 [#allocation2], 4
      %s39 = int_to_ptr.vmem [resolvable:$true] %s38
      %44 = dma.hbm_to_vmem [thread:$0]  %s5, 4096, %s39, [#allocation3], 128, 128, 8
    $region25: #{mlp_forward.1} parent=1 // pred_fallthru
      _
    // Predicated region
    $region26: #{mlp_forward.1} parent=1 // pred_check
      _
    $region27: #{mlp_forward.1} parent=1 // pred_check_branch
      %46 = sbr.rel (0) target = $region29
    $region28: #{mlp_forward.1} parent=1 // pred_region
      _
    $region29: #{mlp_forward.1} parent=1 // pred_fallthru
      _
    // Predicated region
    $region30: #{mlp_forward.1} parent=1 // pred_check
      _
    $region31: #{mlp_forward.1} parent=1 // pred_check_branch
      %48 = sbr.rel (0) target = $region33
    $region32: #{mlp_forward.1} parent=1 // pred_region
      %s50 = ssub.s32 4096, 4096
      %51 = vsyncadd [#allocation5], %s50
      %s52 = sshll.u32 [#allocation4], 4
      %s53 = int_to_ptr.vmem [resolvable:$true] %s52
      %58 = dma.hbm_to_vmem [thread:$0]  %s7, 4096, %s53, [#allocation5], 128, 128, 8
    $region33: #{mlp_forward.1} parent=1 // pred_fallthru
      _
    // Predicated region
    $region34: #{mlp_forward.1} parent=1 // pred_check
      _
    $region35: #{mlp_forward.1} parent=1 // pred_check_branch
      %60 = sbr.rel (0) target = $region37
    $region36: #{mlp_forward.1} parent=1 // pred_region
      _
    $region37: #{mlp_forward.1} parent=1 // pred_fallthru
      _
    // Predicated region
    $region38: #{mlp_forward.1} parent=1 // pred_check
      _
    $region39: #{mlp_forward.1} parent=1 // pred_check_branch
      %62 = sbr.rel (0) target = $region41
    $region40: #{mlp_forward.1} parent=1 // pred_region
      %s64 = ssub.s32 4096, 4096
      %65 = vsyncadd [#allocation5], %s64
      %s66 = sshll.u32 [#allocation6], 4
      %s67 = int_to_ptr.vmem [resolvable:$true] %s66
      %72 = dma.hbm_to_vmem [thread:$0]  %s9, 4096, %s67, [#allocation5], 128, 128, 8
    $region41: #{mlp_forward.1} parent=1 // pred_fallthru
      _
    // Predicated region
    $region42: #{mlp_forward.1} parent=1 // pred_check
      _
    $region43: #{mlp_forward.1} parent=1 // pred_check_branch
      %74 = sbr.rel (0) target = $region45
    $region44: #{mlp_forward.1} parent=1 // pred_region
      _
    $region45: #{mlp_forward.1} parent=1 // pred_fallthru
      _
    // Predicated region
    $region46: #{mlp_forward.1} parent=1 // pred_check
      _
    $region47: #{mlp_forward.1} parent=1 // pred_check_branch
      %76 = sbr.rel (0) target = $region49
    $region48: #{mlp_forward.1} parent=1 // pred_region
      %s78 = ssub.s32 4096, 4096
      %79 = vsyncadd [#allocation8], %s78
      %s80 = sshll.u32 [#allocation7], 4
      %s81 = int_to_ptr.vmem [resolvable:$true] %s80
      %86 = dma.hbm_to_vmem [thread:$0]  %s11, 4096, %s81, [#allocation8], 128, 128, 8
    $region49: #{mlp_forward.1} parent=1 // pred_fallthru
      _
    // Predicated region
    $region50: #{mlp_forward.1} parent=1 // pred_check
      _
    $region51: #{mlp_forward.1} parent=1 // pred_check_branch
      %88 = sbr.rel (0) target = $region53
    $region52: #{mlp_forward.1} parent=1 // pred_region
      _
    $region53: #{mlp_forward.1} parent=1 // pred_fallthru
      _
    // Predicated region
    $region54: #{mlp_forward.1} parent=1 // pred_check
      _
    $region55: #{mlp_forward.1} parent=1 // pred_check_branch
      %90 = sbr.rel (0) target = $region57
    $region56: #{mlp_forward.1} parent=1 // pred_region
      %s92 = ssub.s32 4096, 4096
      %93 = vsyncadd [#allocation8], %s92
      %s94 = sshll.u32 [#allocation9], 4
      %s95 = int_to_ptr.vmem [resolvable:$true] %s94
      %100 = dma.hbm_to_vmem [thread:$0]  %s13, 4096, %s95, [#allocation8], 128, 128, 8
    $region57: #{mlp_forward.1} parent=1 // pred_fallthru
      _
    // Predicated region
    $region58: #{mlp_forward.1} parent=1 // pred_check
      _
    $region59: #{mlp_forward.1} parent=1 // pred_check_branch
      %102 = sbr.rel (0) target = $region61
    $region60: #{mlp_forward.1} parent=1 // pred_region
      _
    $region61: #{mlp_forward.1} parent=1 // pred_fallthru
      _
    // Predicated region
    $region62: #{mlp_forward.1} parent=1 // pred_check
      _
    $region63: #{mlp_forward.1} parent=1 // pred_check_branch
      %104 = sbr.rel (0) target = $region65
    $region64: #{mlp_forward.1} parent=1 // pred_region
      %105 = dma.done [#allocation3], 4096
    $region65: #{mlp_forward.1} parent=1 // pred_fallthru
      _
    // Predicated region
    $region66: #{mlp_forward.1} parent=1 // pred_check
      _
    $region67: #{mlp_forward.1} parent=1 // pred_check_branch
      %107 = sbr.rel (0) target = $region69
    $region68: #{mlp_forward.1} parent=1 // pred_region
      %108 = dma.done [#allocation5], 4096
    $region69: #{mlp_forward.1} parent=1 // pred_fallthru
      _
    // Predicated region
    $region70: #{mlp_forward.1} parent=1 // pred_check
      _
    $region71: #{mlp_forward.1} parent=1 // pred_check_branch
      %110 = sbr.rel (0) target = $region73
    $region72: #{mlp_forward.1} parent=1 // pred_region
      %111 = dma.done [#allocation5], 4096
    $region73: #{mlp_forward.1} parent=1 // pred_fallthru
      _
    // Predicated region
    $region74: #{mlp_forward.1} parent=1 // pred_check
      _
    $region75: #{mlp_forward.1} parent=1 // pred_check_branch
      %113 = sbr.rel (0) target = $region77
    $region76: #{mlp_forward.1} parent=1 // pred_region
      %114 = dma.done [#allocation8], 4096
    $region77: #{mlp_forward.1} parent=1 // pred_fallthru
      _
    // Predicated region
    $region78: #{mlp_forward.1} parent=1 // pred_check
      _
    $region79: #{mlp_forward.1} parent=1 // pred_check_branch
      %116 = sbr.rel (0) target = $region81
    $region80: #{mlp_forward.1} parent=1 // pred_region
      %117 = dma.done [#allocation8], 4096
    $region81: #{mlp_forward.1} parent=1 // pred_fallthru
      _
    %v119 = vld [vmem:[%s0] sm:$0xff]
    %v120 = vld [vmem:[%s0 + $0x8] sm:$0xff]
    %v121 = vld [vmem:[%s0 + $0x10] sm:$0xff]
    %v122 = vld [vmem:[%s0 + $0x18] sm:$0xff]
    %v123 = vld [vmem:[%s0 + $0x20] sm:$0xff]
    %v124 = vld [vmem:[%s0 + $0x28] sm:$0xff]
    %v125 = vld [vmem:[%s0 + $0x30] sm:$0xff]
    %v126 = vld [vmem:[%s0 + $0x38] sm:$0xff]
    %v127 = vld [vmem:[%s0 + $0x40] sm:$0xff]
    %v128 = vld [vmem:[%s0 + $0x48] sm:$0xff]
    %v129 = vld [vmem:[%s0 + $0x50] sm:$0xff]
    %v130 = vld [vmem:[%s0 + $0x58] sm:$0xff]
    %v131 = vld [vmem:[%s0 + $0x60] sm:$0xff]
    %v132 = vld [vmem:[%s0 + $0x68] sm:$0xff]
    %v133 = vld [vmem:[%s0 + $0x70] sm:$0xff]
    %v134 = vld [vmem:[%s0 + $0x78] sm:$0xff]
    %v135 = vld [vmem:[%s0 + $0x80] sm:$0xff]
    %v136 = vld [vmem:[%s0 + $0x88] sm:$0xff]
    %v137 = vld [vmem:[%s0 + $0x90] sm:$0xff]
    %v138 = vld [vmem:[%s0 + $0x98] sm:$0xff]
    %v139 = vld [vmem:[%s0 + $0xa0] sm:$0xff]
    %v140 = vld [vmem:[%s0 + $0xa8] sm:$0xff]
    %v141 = vld [vmem:[%s0 + $0xb0] sm:$0xff]
    %v142 = vld [vmem:[%s0 + $0xb8] sm:$0xff]
    %v143 = vld [vmem:[%s0 + $0xc0] sm:$0xff]
    %v144 = vld [vmem:[%s0 + $0xc8] sm:$0xff]
    %v145 = vld [vmem:[%s0 + $0xd0] sm:$0xff]
    %v146 = vld [vmem:[%s0 + $0xd8] sm:$0xff]
    %v147 = vld [vmem:[%s0 + $0xe0] sm:$0xff]
    %v148 = vld [vmem:[%s0 + $0xe8] sm:$0xff]
    %v149 = vld [vmem:[%s0 + $0xf0] sm:$0xff]
    %v150 = vld [vmem:[%s0 + $0xf8] sm:$0xff]
    %v151 = vpack.c.bf16 %v120, %v119
    %v152 = vpack.c.bf16 %v122, %v121
    %v153 = vpack.c.bf16 %v124, %v123
    %v154 = vpack.c.bf16 %v126, %v125
    %v155 = vpack.c.bf16 %v128, %v127
    %v156 = vpack.c.bf16 %v130, %v129
    %v157 = vpack.c.bf16 %v132, %v131
    %v158 = vpack.c.bf16 %v134, %v133
    %v159 = vpack.c.bf16 %v136, %v135
    %v160 = vpack.c.bf16 %v138, %v137
    %v161 = vpack.c.bf16 %v140, %v139
    %v162 = vpack.c.bf16 %v142, %v141
    %v163 = vpack.c.bf16 %v144, %v143
    %v164 = vpack.c.bf16 %v146, %v145
    %v165 = vpack.c.bf16 %v148, %v147
    %v166 = vpack.c.bf16 %v150, %v149
    %v167 = vld [vmem:[%s1] sm:$0x77]
    %v168 = vld [vmem:[%s2] sm:$0x3]
    %v170 = vlaneseq
    %v171 = vshrl.u32 %v170, 7
    %v172 = vsub.s32 0, %v171
    %v173 = vrot.slane %v168, %v172
    %v174 = vlaneseq
    %v175 = vshrl.u32 %v174, 7
    %v176 = vsub.s32 1, %v175
    %v177 = vrot.slane %v168, %v176
    %v181 = vunpack.c.l.b16 %v167
    %v182 = vunpack.c.h.b16 %v167
    %v183 = vpack.c.b16 %v181, %v181
    %v184 = vpack.c.b16 %v182, %v182
    %vm185 = vcmask 48128
    %v187 = vsel %vm185, %v151, 0
    %v190 = vsel %vm185, %v152, 0
    %v193 = vsel %vm185, %v153, 0
    %v196 = vsel %vm185, %v154, 0
    %v199 = vsel %vm185, %v155, 0
    %v202 = vsel %vm185, %v156, 0
    %v205 = vsel %vm185, %v157, 0
    %v208 = vsel %vm185, %v158, 0
    %v211 = vsel %vm185, %v159, 0
    %v214 = vsel %vm185, %v160, 0
    %v217 = vsel %vm185, %v161, 0
    %v220 = vsel %vm185, %v162, 0
    %v223 = vsel %vm185, %v163, 0
    %v226 = vsel %vm185, %v164, 0
    %v229 = vsel %vm185, %v165, 0
    %v232 = vsel %vm185, %v166, 0
    %vm234 = vcmask 1042432
    %v236 = vsel %vm234, %v183, 0
    %v239 = vsel %vm234, %v184, 0
    %241 = vmatprep.subr.bf16.mxu0 %v239
    %242 = vmatpush1.bf16.msra.mxu0 %v236
    %243 = vmatprep.subr.bf16.mxu0 0
    %244 = vmatpush1.bf16.msra.mxu0 0
    %245 = vmatprep.subr.bf16.mxu0 0
    %246 = vmatpush1.bf16.msra.mxu0 0
    %247 = vmatprep.subr.bf16.mxu0 0
    %248 = vmatpush1.bf16.msra.mxu0 0
    %249 = vmatprep.subr.bf16.mxu0 0
    %250 = vmatpush1.bf16.msra.mxu0 0
    %251 = vmatprep.subr.bf16.mxu0 0
    %252 = vmatpush1.bf16.msra.mxu0 0
    %253 = vmatprep.subr.bf16.mxu0 0
    %254 = vmatpush1.bf16.msra.mxu0 0
    %255 = vmatprep.subr.bf16.mxu0 0
    %256 = vmatpush1.bf16.msra.mxu0 0
    %257 = vmatprep.subr.bf16.mxu0 0
    %258 = vmatpush1.bf16.msra.mxu0 0
    %259 = vmatprep.subr.bf16.mxu0 0
    %260 = vmatpush1.bf16.msra.mxu0 0
    %261 = vmatprep.subr.bf16.mxu0 0
    %262 = vmatpush1.bf16.msra.mxu0 0
    %263 = vmatprep.subr.bf16.mxu0 0
    %264 = vmatpush1.bf16.msra.mxu0 0
    %265 = vmatprep.subr.bf16.mxu0 0
    %266 = vmatpush1.bf16.msra.mxu0 0
    %267 = vmatprep.subr.bf16.mxu0 0
    %268 = vmatpush1.bf16.msra.mxu0 0
    %269 = vmatprep.subr.bf16.mxu0 0
    %270 = vmatpush1.bf16.msra.mxu0 0
    %271 = vmatprep.subr.bf16.mxu0 0
    %272 = vmatpush1.bf16.msra.mxu0 0
    %273 = vmatprep.mubr.bf16.mxu0 0
    %274 = vmatmul.mubr.bf16.gmra.mrb[0].mxu0 %v187
    %v275 = vpop.f32.mrb[0].mxu0
    %v276 = vadd.f32 %v173, %v275
    %v277 = vpop.f32.mrb[0].mxu0
    %v278 = vadd.f32 %v177, %v277
    %v279 = vpop.f32.mrb[0].mxu0
    %v280 = vadd.f32 %v173, %v279
    %v281 = vpop.f32.mrb[0].mxu0
    %v282 = vadd.f32 %v177, %v281
    %283 = vmatprep.mubr.bf16.mxu0 0
    %284 = vmatmul.mubr.bf16.gmra.mrb[0].mxu0 %v190
    %v285 = vpop.f32.mrb[0].mxu0
    %v286 = vadd.f32 %v173, %v285
    %v287 = vpop.f32.mrb[0].mxu0
    %v288 = vadd.f32 %v177, %v287
    %v289 = vpop.f32.mrb[0].mxu0
    %v290 = vadd.f32 %v173, %v289
    %v291 = vpop.f32.mrb[0].mxu0
    %v292 = vadd.f32 %v177, %v291
    %293 = vmatprep.mubr.bf16.mxu0 0
    %294 = vmatmul.mubr.bf16.gmra.mrb[0].mxu0 %v193
    %v295 = vpop.f32.mrb[0].mxu0
    %v296 = vadd.f32 %v173, %v295
    %v297 = vpop.f32.mrb[0].mxu0
    %v298 = vadd.f32 %v177, %v297
    %v299 = vpop.f32.mrb[0].mxu0
    %v300 = vadd.f32 %v173, %v299
    %v301 = vpop.f32.mrb[0].mxu0
    %v302 = vadd.f32 %v177, %v301
    %303 = vmatprep.mubr.bf16.mxu0 0
    %304 = vmatmul.mubr.bf16.gmra.mrb[0].mxu0 %v196
    %v305 = vpop.f32.mrb[0].mxu0
    %v306 = vadd.f32 %v173, %v305
    %v307 = vpop.f32.mrb[0].mxu0
    %v308 = vadd.f32 %v177, %v307
    %v309 = vpop.f32.mrb[0].mxu0
    %v310 = vadd.f32 %v173, %v309
    %v311 = vpop.f32.mrb[0].mxu0
    %v312 = vadd.f32 %v177, %v311
    %313 = vmatprep.mubr.bf16.mxu0 0
    %314 = vmatmul.mubr.bf16.gmra.mrb[0].mxu0 %v199
    %v315 = vpop.f32.mrb[0].mxu0
    %v316 = vadd.f32 %v173, %v315
    %v317 = vpop.f32.mrb[0].mxu0
    %v318 = vadd.f32 %v177, %v317
    %v319 = vpop.f32.mrb[0].mxu0
    %v320 = vadd.f32 %v173, %v319
    %v321 = vpop.f32.mrb[0].mxu0
    %v322 = vadd.f32 %v177, %v321
    %323 = vmatprep.mubr.bf16.mxu0 0
    %324 = vmatmul.mubr.bf16.gmra.mrb[0].mxu0 %v202
    %v325 = vpop.f32.mrb[0].mxu0
    %v326 = vadd.f32 %v173, %v325
    %v327 = vpop.f32.mrb[0].mxu0
    %v328 = vadd.f32 %v177, %v327
    %v329 = vpop.f32.mrb[0].mxu0
    %v330 = vadd.f32 %v173, %v329
    %v331 = vpop.f32.mrb[0].mxu0
    %v332 = vadd.f32 %v177, %v331
    %333 = vmatprep.mubr.bf16.mxu0 0
    %334 = vmatmul.mubr.bf16.gmra.mrb[0].mxu0 %v205
    %v335 = vpop.f32.mrb[0].mxu0
    %v336 = vadd.f32 %v173, %v335
    %v337 = vpop.f32.mrb[0].mxu0
    %v338 = vadd.f32 %v177, %v337
    %v339 = vpop.f32.mrb[0].mxu0
    %v340 = vadd.f32 %v173, %v339
    %v341 = vpop.f32.mrb[0].mxu0
    %v342 = vadd.f32 %v177, %v341
    %343 = vmatprep.mubr.bf16.mxu0 0
    %344 = vmatmul.mubr.bf16.gmra.mrb[0].mxu0 %v208
    %v345 = vpop.f32.mrb[0].mxu0
    %v346 = vadd.f32 %v173, %v345
    %v347 = vpop.f32.mrb[0].mxu0
    %v348 = vadd.f32 %v177, %v347
    %v349 = vpop.f32.mrb[0].mxu0
    %v350 = vadd.f32 %v173, %v349
    %v351 = vpop.f32.mrb[0].mxu0
    %v352 = vadd.f32 %v177, %v351
    %353 = vmatprep.mubr.bf16.mxu0 0
    %354 = vmatmul.mubr.bf16.gmra.mrb[0].mxu0 %v211
    %v355 = vpop.f32.mrb[0].mxu0
    %v356 = vadd.f32 %v173, %v355
    %v357 = vpop.f32.mrb[0].mxu0
    %v358 = vadd.f32 %v177, %v357
    %v359 = vpop.f32.mrb[0].mxu0
    %v360 = vadd.f32 %v173, %v359
    %v361 = vpop.f32.mrb[0].mxu0
    %v362 = vadd.f32 %v177, %v361
    %363 = vmatprep.mubr.bf16.mxu0 0
    %364 = vmatmul.mubr.bf16.gmra.mrb[0].mxu0 %v214
    %v365 = vpop.f32.mrb[0].mxu0
    %v366 = vadd.f32 %v173, %v365
    %v367 = vpop.f32.mrb[0].mxu0
    %v368 = vadd.f32 %v177, %v367
    %v369 = vpop.f32.mrb[0].mxu0
    %v370 = vadd.f32 %v173, %v369
    %v371 = vpop.f32.mrb[0].mxu0
    %v372 = vadd.f32 %v177, %v371
    %373 = vmatprep.mubr.bf16.mxu0 0
    %374 = vmatmul.mubr.bf16.gmra.mrb[0].mxu0 %v217
    %v375 = vpop.f32.mrb[0].mxu0
    %v376 = vadd.f32 %v173, %v375
    %v377 = vpop.f32.mrb[0].mxu0
    %v378 = vadd.f32 %v177, %v377
    %v379 = vpop.f32.mrb[0].mxu0
    %v380 = vadd.f32 %v173, %v379
    %v381 = vpop.f32.mrb[0].mxu0
    %v382 = vadd.f32 %v177, %v381
    %383 = vmatprep.mubr.bf16.mxu0 0
    %384 = vmatmul.mubr.bf16.gmra.mrb[0].mxu0 %v220
    %v385 = vpop.f32.mrb[0].mxu0
    %v386 = vadd.f32 %v173, %v385
    %v387 = vpop.f32.mrb[0].mxu0
    %v388 = vadd.f32 %v177, %v387
    %v389 = vpop.f32.mrb[0].mxu0
    %v390 = vadd.f32 %v173, %v389
    %v391 = vpop.f32.mrb[0].mxu0
    %v392 = vadd.f32 %v177, %v391
    %393 = vmatprep.mubr.bf16.mxu0 0
    %394 = vmatmul.mubr.bf16.gmra.mrb[0].mxu0 %v223
    %v395 = vpop.f32.mrb[0].mxu0
    %v396 = vadd.f32 %v173, %v395
    %v397 = vpop.f32.mrb[0].mxu0
    %v398 = vadd.f32 %v177, %v397
    %v399 = vpop.f32.mrb[0].mxu0
    %v400 = vadd.f32 %v173, %v399
    %v401 = vpop.f32.mrb[0].mxu0
    %v402 = vadd.f32 %v177, %v401
    %403 = vmatprep.mubr.bf16.mxu0 0
    %404 = vmatmul.mubr.bf16.gmra.mrb[0].mxu0 %v226
    %v405 = vpop.f32.mrb[0].mxu0
    %v406 = vadd.f32 %v173, %v405
    %v407 = vpop.f32.mrb[0].mxu0
    %v408 = vadd.f32 %v177, %v407
    %v409 = vpop.f32.mrb[0].mxu0
    %v410 = vadd.f32 %v173, %v409
    %v411 = vpop.f32.mrb[0].mxu0
    %v412 = vadd.f32 %v177, %v411
    %413 = vmatprep.mubr.bf16.mxu0 0
    %414 = vmatmul.mubr.bf16.gmra.mrb[0].mxu0 %v229
    %v415 = vpop.f32.mrb[0].mxu0
    %v416 = vadd.f32 %v173, %v415
    %v417 = vpop.f32.mrb[0].mxu0
    %v418 = vadd.f32 %v177, %v417
    %v419 = vpop.f32.mrb[0].mxu0
    %v420 = vadd.f32 %v173, %v419
    %v421 = vpop.f32.mrb[0].mxu0
    %v422 = vadd.f32 %v177, %v421
    %423 = vmatprep.mubr.bf16.mxu0 0
    %424 = vmatmul.mubr.bf16.gmra.mrb[0].mxu0 %v232
    %v425 = vpop.f32.mrb[0].mxu0
    %v426 = vadd.f32 %v173, %v425
    %v427 = vpop.f32.mrb[0].mxu0
    %v428 = vadd.f32 %v177, %v427
    %v429 = vpop.f32.mrb[0].mxu0
    %v430 = vadd.f32 %v173, %v429
    %v431 = vpop.f32.mrb[0].mxu0
    %v432 = vadd.f32 %v177, %v431
    %433 = vdwg.mxu0
    %vm434 = vcmp.gt.f32.partialorder %v276, 0.0
    %vm435 = vcmp.gt.f32.partialorder %v278, 0.0
    %vm436 = vcmp.gt.f32.partialorder %v280, 0.0
    %vm437 = vcmp.gt.f32.partialorder %v282, 0.0
    %vm438 = vcmp.gt.f32.partialorder %v286, 0.0
    %vm439 = vcmp.gt.f32.partialorder %v288, 0.0
    %vm440 = vcmp.gt.f32.partialorder %v290, 0.0
    %vm441 = vcmp.gt.f32.partialorder %v292, 0.0
    %vm442 = vcmp.gt.f32.partialorder %v296, 0.0
    %vm443 = vcmp.gt.f32.partialorder %v298, 0.0
    %vm444 = vcmp.gt.f32.partialorder %v300, 0.0
    %vm445 = vcmp.gt.f32.partialorder %v302, 0.0
    %vm446 = vcmp.gt.f32.partialorder %v306, 0.0
    %vm447 = vcmp.gt.f32.partialorder %v308, 0.0
    %vm448 = vcmp.gt.f32.partialorder %v310, 0.0
    %vm449 = vcmp.gt.f32.partialorder %v312, 0.0
    %vm450 = vcmp.gt.f32.partialorder %v316, 0.0
    %vm451 = vcmp.gt.f32.partialorder %v318, 0.0
    %vm452 = vcmp.gt.f32.partialorder %v320, 0.0
    %vm453 = vcmp.gt.f32.partialorder %v322, 0.0
    %vm454 = vcmp.gt.f32.partialorder %v326, 0.0
    %vm455 = vcmp.gt.f32.partialorder %v328, 0.0
    %vm456 = vcmp.gt.f32.partialorder %v330, 0.0
    %vm457 = vcmp.gt.f32.partialorder %v332, 0.0
    %vm458 = vcmp.gt.f32.partialorder %v336, 0.0
    %vm459 = vcmp.gt.f32.partialorder %v338, 0.0
    %vm460 = vcmp.gt.f32.partialorder %v340, 0.0
    %vm461 = vcmp.gt.f32.partialorder %v342, 0.0
    %vm462 = vcmp.gt.f32.partialorder %v346, 0.0
    %vm463 = vcmp.gt.f32.partialorder %v348, 0.0
    %vm464 = vcmp.gt.f32.partialorder %v350, 0.0
    %vm465 = vcmp.gt.f32.partialorder %v352, 0.0
    %vm466 = vcmp.gt.f32.partialorder %v356, 0.0
    %vm467 = vcmp.gt.f32.partialorder %v358, 0.0
    %vm468 = vcmp.gt.f32.partialorder %v360, 0.0
    %vm469 = vcmp.gt.f32.partialorder %v362, 0.0
    %vm470 = vcmp.gt.f32.partialorder %v366, 0.0
    %vm471 = vcmp.gt.f32.partialorder %v368, 0.0
    %vm472 = vcmp.gt.f32.partialorder %v370, 0.0
    %vm473 = vcmp.gt.f32.partialorder %v372, 0.0
    %vm474 = vcmp.gt.f32.partialorder %v376, 0.0
    %vm475 = vcmp.gt.f32.partialorder %v378, 0.0
    %vm476 = vcmp.gt.f32.partialorder %v380, 0.0
    %vm477 = vcmp.gt.f32.partialorder %v382, 0.0
    %vm478 = vcmp.gt.f32.partialorder %v386, 0.0
    %vm479 = vcmp.gt.f32.partialorder %v388, 0.0
    %vm480 = vcmp.gt.f32.partialorder %v390, 0.0
    %vm481 = vcmp.gt.f32.partialorder %v392, 0.0
    %vm482 = vcmp.gt.f32.partialorder %v396, 0.0
    %vm483 = vcmp.gt.f32.partialorder %v398, 0.0
    %vm484 = vcmp.gt.f32.partialorder %v400, 0.0
    %vm485 = vcmp.gt.f32.partialorder %v402, 0.0
    %vm486 = vcmp.gt.f32.partialorder %v406, 0.0
    %vm487 = vcmp.gt.f32.partialorder %v408, 0.0
    %vm488 = vcmp.gt.f32.partialorder %v410, 0.0
    %vm489 = vcmp.gt.f32.partialorder %v412, 0.0
    %vm490 = vcmp.gt.f32.partialorder %v416, 0.0
    %vm491 = vcmp.gt.f32.partialorder %v418, 0.0
    %vm492 = vcmp.gt.f32.partialorder %v420, 0.0
    %vm493 = vcmp.gt.f32.partialorder %v422, 0.0
    %vm494 = vcmp.gt.f32.partialorder %v426, 0.0
    %vm495 = vcmp.gt.f32.partialorder %v428, 0.0
    %vm496 = vcmp.gt.f32.partialorder %v430, 0.0
    %vm497 = vcmp.gt.f32.partialorder %v432, 0.0
    %v498 = vmul.f32 %v276, 0.01
    %v499 = vmul.f32 %v278, 0.01
    %v500 = vmul.f32 %v280, 0.01
    %v501 = vmul.f32 %v282, 0.01
    %v502 = vmul.f32 %v286, 0.01
    %v503 = vmul.f32 %v288, 0.01
    %v504 = vmul.f32 %v290, 0.01
    %v505 = vmul.f32 %v292, 0.01
    %v506 = vmul.f32 %v296, 0.01
    %v507 = vmul.f32 %v298, 0.01
    %v508 = vmul.f32 %v300, 0.01
    %v509 = vmul.f32 %v302, 0.01
    %v510 = vmul.f32 %v306, 0.01
    %v511 = vmul.f32 %v308, 0.01
    %v512 = vmul.f32 %v310, 0.01
    %v513 = vmul.f32 %v312, 0.01
    %v514 = vmul.f32 %v316, 0.01
    %v515 = vmul.f32 %v318, 0.01
    %v516 = vmul.f32 %v320, 0.01
    %v517 = vmul.f32 %v322, 0.01
    %v518 = vmul.f32 %v326, 0.01
    %v519 = vmul.f32 %v328, 0.01
    %v520 = vmul.f32 %v330, 0.01
    %v521 = vmul.f32 %v332, 0.01
    %v522 = vmul.f32 %v336, 0.01
    %v523 = vmul.f32 %v338, 0.01
    %v524 = vmul.f32 %v340, 0.01
    %v525 = vmul.f32 %v342, 0.01
    %v526 = vmul.f32 %v346, 0.01
    %v527 = vmul.f32 %v348, 0.01
    %v528 = vmul.f32 %v350, 0.01
    %v529 = vmul.f32 %v352, 0.01
    %v530 = vmul.f32 %v356, 0.01
    %v531 = vmul.f32 %v358, 0.01
    %v532 = vmul.f32 %v360, 0.01
    %v533 = vmul.f32 %v362, 0.01
    %v534 = vmul.f32 %v366, 0.01
    %v535 = vmul.f32 %v368, 0.01
    %v536 = vmul.f32 %v370, 0.01
    %v537 = vmul.f32 %v372, 0.01
    %v538 = vmul.f32 %v376, 0.01
    %v539 = vmul.f32 %v378, 0.01
    %v540 = vmul.f32 %v380, 0.01
    %v541 = vmul.f32 %v382, 0.01
    %v542 = vmul.f32 %v386, 0.01
    %v543 = vmul.f32 %v388, 0.01
    %v544 = vmul.f32 %v390, 0.01
    %v545 = vmul.f32 %v392, 0.01
    %v546 = vmul.f32 %v396, 0.01
    %v547 = vmul.f32 %v398, 0.01
    %v548 = vmul.f32 %v400, 0.01
    %v549 = vmul.f32 %v402, 0.01
    %v550 = vmul.f32 %v406, 0.01
    %v551 = vmul.f32 %v408, 0.01
    %v552 = vmul.f32 %v410, 0.01
    %v553 = vmul.f32 %v412, 0.01
    %v554 = vmul.f32 %v416, 0.01
    %v555 = vmul.f32 %v418, 0.01
    %v556 = vmul.f32 %v420, 0.01
    %v557 = vmul.f32 %v422, 0.01
    %v558 = vmul.f32 %v426, 0.01
    %v559 = vmul.f32 %v428, 0.01
    %v560 = vmul.f32 %v430, 0.01
    %v561 = vmul.f32 %v432, 0.01
    %v562 = vsel %vm434, %v276, %v498
    %v563 = vsel %vm435, %v278, %v499
    %v564 = vsel %vm436, %v280, %v500
    %v565 = vsel %vm437, %v282, %v501
    %v566 = vsel %vm438, %v286, %v502
    %v567 = vsel %vm439, %v288, %v503
    %v568 = vsel %vm440, %v290, %v504
    %v569 = vsel %vm441, %v292, %v505
    %v570 = vsel %vm442, %v296, %v506
    %v571 = vsel %vm443, %v298, %v507
    %v572 = vsel %vm444, %v300, %v508
    %v573 = vsel %vm445, %v302, %v509
    %v574 = vsel %vm446, %v306, %v510
    %v575 = vsel %vm447, %v308, %v511
    %v576 = vsel %vm448, %v310, %v512
    %v577 = vsel %vm449, %v312, %v513
    %v578 = vsel %vm450, %v316, %v514
    %v579 = vsel %vm451, %v318, %v515
    %v580 = vsel %vm452, %v320, %v516
    %v581 = vsel %vm453, %v322, %v517
    %v582 = vsel %vm454, %v326, %v518
    %v583 = vsel %vm455, %v328, %v519
    %v584 = vsel %vm456, %v330, %v520
    %v585 = vsel %vm457, %v332, %v521
    %v586 = vsel %vm458, %v336, %v522
    %v587 = vsel %vm459, %v338, %v523
    %v588 = vsel %vm460, %v340, %v524
    %v589 = vsel %vm461, %v342, %v525
    %v590 = vsel %vm462, %v346, %v526
    %v591 = vsel %vm463, %v348, %v527
    %v592 = vsel %vm464, %v350, %v528
    %v593 = vsel %vm465, %v352, %v529
    %v594 = vsel %vm466, %v356, %v530
    %v595 = vsel %vm467, %v358, %v531
    %v596 = vsel %vm468, %v360, %v532
    %v597 = vsel %vm469, %v362, %v533
    %v598 = vsel %vm470, %v366, %v534
    %v599 = vsel %vm471, %v368, %v535
    %v600 = vsel %vm472, %v370, %v536
    %v601 = vsel %vm473, %v372, %v537
    %v602 = vsel %vm474, %v376, %v538
    %v603 = vsel %vm475, %v378, %v539
    %v604 = vsel %vm476, %v380, %v540
    %v605 = vsel %vm477, %v382, %v541
    %v606 = vsel %vm478, %v386, %v542
    %v607 = vsel %vm479, %v388, %v543
    %v608 = vsel %vm480, %v390, %v544
    %v609 = vsel %vm481, %v392, %v545
    %v610 = vsel %vm482, %v396, %v546
    %v611 = vsel %vm483, %v398, %v547
    %v612 = vsel %vm484, %v400, %v548
    %v613 = vsel %vm485, %v402, %v549
    %v614 = vsel %vm486, %v406, %v550
    %v615 = vsel %vm487, %v408, %v551
    %v616 = vsel %vm488, %v410, %v552
    %v617 = vsel %vm489, %v412, %v553
    %v618 = vsel %vm490, %v416, %v554
    %v619 = vsel %vm491, %v418, %v555
    %v620 = vsel %vm492, %v420, %v556
    %v621 = vsel %vm493, %v422, %v557
    %v622 = vsel %vm494, %v426, %v558
    %v623 = vsel %vm495, %v428, %v559
    %v624 = vsel %vm496, %v430, %v560
    %v625 = vsel %vm497, %v432, %v561
    %v626 = vpack.c.bf16 %v564, %v562
    %v627 = vpack.c.bf16 %v565, %v563
    %v628 = vpack.c.bf16 %v568, %v566
    %v629 = vpack.c.bf16 %v569, %v567
    %v630 = vpack.c.bf16 %v572, %v570
    %v631 = vpack.c.bf16 %v573, %v571
    %v632 = vpack.c.bf16 %v576, %v574
    %v633 = vpack.c.bf16 %v577, %v575
    %v634 = vpack.c.bf16 %v580, %v578
    %v635 = vpack.c.bf16 %v581, %v579
    %v636 = vpack.c.bf16 %v584, %v582
    %v637 = vpack.c.bf16 %v585, %v583
    %v638 = vpack.c.bf16 %v588, %v586
    %v639 = vpack.c.bf16 %v589, %v587
    %v640 = vpack.c.bf16 %v592, %v590
    %v641 = vpack.c.bf16 %v593, %v591
    %v642 = vpack.c.bf16 %v596, %v594
    %v643 = vpack.c.bf16 %v597, %v595
    %v644 = vpack.c.bf16 %v600, %v598
    %v645 = vpack.c.bf16 %v601, %v599
    %v646 = vpack.c.bf16 %v604, %v602
    %v647 = vpack.c.bf16 %v605, %v603
    %v648 = vpack.c.bf16 %v608, %v606
    %v649 = vpack.c.bf16 %v609, %v607
    %v650 = vpack.c.bf16 %v612, %v610
    %v651 = vpack.c.bf16 %v613, %v611
    %v652 = vpack.c.bf16 %v616, %v614
    %v653 = vpack.c.bf16 %v617, %v615
    %v654 = vpack.c.bf16 %v620, %v618
    %v655 = vpack.c.bf16 %v621, %v619
    %v656 = vpack.c.bf16 %v624, %v622
    %v657 = vpack.c.bf16 %v625, %v623
    %v658 = vld [vmem:[%s3] sm:$0xff]
    %v659 = vld [vmem:[%s3 + $0x8] sm:$0xff]
    %v660 = vld [vmem:[%s3 + $0x10] sm:$0xff]
    %v661 = vld [vmem:[%s3 + $0x18] sm:$0xff]
    %v662 = vld [vmem:[%s3 + $0x20] sm:$0xff]
    %v663 = vld [vmem:[%s3 + $0x28] sm:$0xff]
    %v664 = vld [vmem:[%s3 + $0x30] sm:$0xff]
    %v665 = vld [vmem:[%s3 + $0x38] sm:$0xff]
    %v666 = vld [vmem:[%s3 + $0x40] sm:$0xff]
    %v667 = vld [vmem:[%s3 + $0x48] sm:$0xff]
    %v668 = vld [vmem:[%s3 + $0x50] sm:$0xff]
    %v669 = vld [vmem:[%s3 + $0x58] sm:$0xff]
    %v670 = vld [vmem:[%s3 + $0x60] sm:$0xff]
    %v671 = vld [vmem:[%s3 + $0x68] sm:$0xff]
    %v672 = vld [vmem:[%s3 + $0x70] sm:$0xff]
    %v673 = vld [vmem:[%s3 + $0x78] sm:$0xff]
    %v674 = vld [vmem:[%s3 + $0x80] sm:$0xff]
    %v675 = vld [vmem:[%s3 + $0x88] sm:$0xff]
    %v676 = vld [vmem:[%s3 + $0x90] sm:$0xff]
    %v677 = vld [vmem:[%s3 + $0x98] sm:$0xff]
    %v678 = vld [vmem:[%s3 + $0xa0] sm:$0xff]
    %v679 = vld [vmem:[%s3 + $0xa8] sm:$0xff]
    %v680 = vld [vmem:[%s3 + $0xb0] sm:$0xff]
    %v681 = vld [vmem:[%s3 + $0xb8] sm:$0xff]
    %v682 = vld [vmem:[%s3 + $0xc0] sm:$0xff]
    %v683 = vld [vmem:[%s3 + $0xc8] sm:$0xff]
    %v684 = vld [vmem:[%s3 + $0xd0] sm:$0xff]
    %v685 = vld [vmem:[%s3 + $0xd8] sm:$0xff]
    %v686 = vld [vmem:[%s3 + $0xe0] sm:$0xff]
    %v687 = vld [vmem:[%s3 + $0xe8] sm:$0xff]
    %v688 = vld [vmem:[%s3 + $0xf0] sm:$0xff]
    %v689 = vld [vmem:[%s3 + $0xf8] sm:$0xff]
    %v690 = vld [vmem:[%s4] sm:$0x3]
    %v692 = vlaneseq
    %v693 = vshrl.u32 %v692, 7
    %v694 = vsub.s32 0, %v693
    %v695 = vrot.slane %v690, %v694
    %v696 = vlaneseq
    %v697 = vshrl.u32 %v696, 7
    %v698 = vsub.s32 1, %v697
    %v699 = vrot.slane %v690, %v698
    %v734 = vunpack.c.l.b16 %v658
    %v735 = vunpack.c.h.b16 %v658
    %v736 = vunpack.c.l.b16 %v659
    %v737 = vunpack.c.h.b16 %v659
    %v738 = vunpack.c.l.b16 %v660
    %v739 = vunpack.c.h.b16 %v660
    %v740 = vunpack.c.l.b16 %v661
    %v741 = vunpack.c.h.b16 %v661
    %v742 = vunpack.c.l.b16 %v662
    %v743 = vunpack.c.h.b16 %v662
    %v744 = vunpack.c.l.b16 %v663
    %v745 = vunpack.c.h.b16 %v663
    %v746 = vunpack.c.l.b16 %v664
    %v747 = vunpack.c.h.b16 %v664
    %v748 = vunpack.c.l.b16 %v665
    %v749 = vunpack.c.h.b16 %v665
    %v750 = vunpack.c.l.b16 %v666
    %v751 = vunpack.c.h.b16 %v666
    %v752 = vunpack.c.l.b16 %v667
    %v753 = vunpack.c.h.b16 %v667
    %v754 = vunpack.c.l.b16 %v668
    %v755 = vunpack.c.h.b16 %v668
    %v756 = vunpack.c.l.b16 %v669
    %v757 = vunpack.c.h.b16 %v669
    %v758 = vunpack.c.l.b16 %v670
    %v759 = vunpack.c.h.b16 %v670
    %v760 = vunpack.c.l.b16 %v671
    %v761 = vunpack.c.h.b16 %v671
    %v762 = vunpack.c.l.b16 %v672
    %v763 = vunpack.c.h.b16 %v672
    %v764 = vunpack.c.l.b16 %v673
    %v765 = vunpack.c.h.b16 %v673
    %v766 = vunpack.c.l.b16 %v674
    %v767 = vunpack.c.h.b16 %v674
    %v768 = vunpack.c.l.b16 %v675
    %v769 = vunpack.c.h.b16 %v675
    %v770 = vunpack.c.l.b16 %v676
    %v771 = vunpack.c.h.b16 %v676
    %v772 = vunpack.c.l.b16 %v677
    %v773 = vunpack.c.h.b16 %v677
    %v774 = vunpack.c.l.b16 %v678
    %v775 = vunpack.c.h.b16 %v678
    %v776 = vunpack.c.l.b16 %v679
    %v777 = vunpack.c.h.b16 %v679
    %v778 = vunpack.c.l.b16 %v680
    %v779 = vunpack.c.h.b16 %v680
    %v780 = vunpack.c.l.b16 %v681
    %v781 = vunpack.c.h.b16 %v681
    %v782 = vunpack.c.l.b16 %v682
    %v783 = vunpack.c.h.b16 %v682
    %v784 = vunpack.c.l.b16 %v683
    %v785 = vunpack.c.h.b16 %v683
    %v786 = vunpack.c.l.b16 %v684
    %v787 = vunpack.c.h.b16 %v684
    %v788 = vunpack.c.l.b16 %v685
    %v789 = vunpack.c.h.b16 %v685
    %v790 = vunpack.c.l.b16 %v686
    %v791 = vunpack.c.h.b16 %v686
    %v792 = vunpack.c.l.b16 %v687
    %v793 = vunpack.c.h.b16 %v687
    %v794 = vunpack.c.l.b16 %v688
    %v795 = vunpack.c.h.b16 %v688
    %v796 = vunpack.c.l.b16 %v689
    %v797 = vunpack.c.h.b16 %v689
    %v798 = vpack.c.b16 %v736, %v734
    %v799 = vpack.c.b16 %v737, %v735
    %v800 = vpack.c.b16 %v740, %v738
    %v801 = vpack.c.b16 %v741, %v739
    %v802 = vpack.c.b16 %v744, %v742
    %v803 = vpack.c.b16 %v745, %v743
    %v804 = vpack.c.b16 %v748, %v746
    %v805 = vpack.c.b16 %v749, %v747
    %v806 = vpack.c.b16 %v752, %v750
    %v807 = vpack.c.b16 %v753, %v751
    %v808 = vpack.c.b16 %v756, %v754
    %v809 = vpack.c.b16 %v757, %v755
    %v810 = vpack.c.b16 %v760, %v758
    %v811 = vpack.c.b16 %v761, %v759
    %v812 = vpack.c.b16 %v764, %v762
    %v813 = vpack.c.b16 %v765, %v763
    %v814 = vpack.c.b16 %v768, %v766
    %v815 = vpack.c.b16 %v769, %v767
    %v816 = vpack.c.b16 %v772, %v770
    %v817 = vpack.c.b16 %v773, %v771
    %v818 = vpack.c.b16 %v776, %v774
    %v819 = vpack.c.b16 %v777, %v775
    %v820 = vpack.c.b16 %v780, %v778
    %v821 = vpack.c.b16 %v781, %v779
    %v822 = vpack.c.b16 %v784, %v782
    %v823 = vpack.c.b16 %v785, %v783
    %v824 = vpack.c.b16 %v788, %v786
    %v825 = vpack.c.b16 %v789, %v787
    %v826 = vpack.c.b16 %v792, %v790
    %v827 = vpack.c.b16 %v793, %v791
    %v828 = vpack.c.b16 %v796, %v794
    %v829 = vpack.c.b16 %v797, %v795
    %862 = vmatprep.subr.bf16.mxu0 %v799
    %863 = vmatpush1.bf16.msra.mxu0 %v798
    %864 = vmatprep.subr.bf16.mxu0 %v801
    %865 = vmatpush1.bf16.msra.mxu0 %v800
    %866 = vmatprep.subr.bf16.mxu0 %v803
    %867 = vmatpush1.bf16.msra.mxu0 %v802
    %868 = vmatprep.subr.bf16.mxu0 %v805
    %869 = vmatpush1.bf16.msra.mxu0 %v804
    %870 = vmatprep.subr.bf16.mxu0 %v807
    %871 = vmatpush1.bf16.msra.mxu0 %v806
    %872 = vmatprep.subr.bf16.mxu0 %v809
    %873 = vmatpush1.bf16.msra.mxu0 %v808
    %874 = vmatprep.subr.bf16.mxu0 %v811
    %875 = vmatpush1.bf16.msra.mxu0 %v810
    %876 = vmatprep.subr.bf16.mxu0 %v813
    %877 = vmatpush1.bf16.msra.mxu0 %v812
    %878 = vmatprep.subr.bf16.mxu0 %v815
    %879 = vmatpush1.bf16.msra.mxu0 %v814
    %880 = vmatprep.subr.bf16.mxu0 %v817
    %881 = vmatpush1.bf16.msra.mxu0 %v816
    %882 = vmatprep.subr.bf16.mxu0 %v819
    %883 = vmatpush1.bf16.msra.mxu0 %v818
    %884 = vmatprep.subr.bf16.mxu0 %v821
    %885 = vmatpush1.bf16.msra.mxu0 %v820
    %886 = vmatprep.subr.bf16.mxu0 %v823
    %887 = vmatpush1.bf16.msra.mxu0 %v822
    %888 = vmatprep.subr.bf16.mxu0 %v825
    %889 = vmatpush1.bf16.msra.mxu0 %v824
    %890 = vmatprep.subr.bf16.mxu0 %v827
    %891 = vmatpush1.bf16.msra.mxu0 %v826
    %892 = vmatprep.subr.bf16.mxu0 %v829
    %893 = vmatpush1.bf16.msra.mxu0 %v828
    %894 = vmatprep.mubr.bf16.mxu0 %v627
    %895 = vmatmul.mubr.bf16.gmra.mrb[0].mxu0 %v626
    %v896 = vpop.f32.mrb[0].mxu0
    %v897 = vadd.f32 %v695, %v896
    %v898 = vpop.f32.mrb[0].mxu0
    %v899 = vadd.f32 %v699, %v898
    %v900 = vpop.f32.mrb[0].mxu0
    %v901 = vadd.f32 %v695, %v900
    %v902 = vpop.f32.mrb[0].mxu0
    %v903 = vadd.f32 %v699, %v902
    %904 = vmatprep.mubr.bf16.mxu0 %v629
    %905 = vmatmul.mubr.bf16.gmra.mrb[0].mxu0 %v628
    %v906 = vpop.f32.mrb[0].mxu0
    %v907 = vadd.f32 %v695, %v906
    %v908 = vpop.f32.mrb[0].mxu0
    %v909 = vadd.f32 %v699, %v908
    %v910 = vpop.f32.mrb[0].mxu0
    %v911 = vadd.f32 %v695, %v910
    %v912 = vpop.f32.mrb[0].mxu0
    %v913 = vadd.f32 %v699, %v912
    %914 = vmatprep.mubr.bf16.mxu0 %v631
    %915 = vmatmul.mubr.bf16.gmra.mrb[0].mxu0 %v630
    %v916 = vpop.f32.mrb[0].mxu0
    %v917 = vadd.f32 %v695, %v916
    %v918 = vpop.f32.mrb[0].mxu0
    %v919 = vadd.f32 %v699, %v918
    %v920 = vpop.f32.mrb[0].mxu0
    %v921 = vadd.f32 %v695, %v920
    %v922 = vpop.f32.mrb[0].mxu0
    %v923 = vadd.f32 %v699, %v922
    %924 = vmatprep.mubr.bf16.mxu0 %v633
    %925 = vmatmul.mubr.bf16.gmra.mrb[0].mxu0 %v632
    %v926 = vpop.f32.mrb[0].mxu0
    %v927 = vadd.f32 %v695, %v926
    %v928 = vpop.f32.mrb[0].mxu0
    %v929 = vadd.f32 %v699, %v928
    %v930 = vpop.f32.mrb[0].mxu0
    %v931 = vadd.f32 %v695, %v930
    %v932 = vpop.f32.mrb[0].mxu0
    %v933 = vadd.f32 %v699, %v932
    %934 = vmatprep.mubr.bf16.mxu0 %v635
    %935 = vmatmul.mubr.bf16.gmra.mrb[0].mxu0 %v634
    %v936 = vpop.f32.mrb[0].mxu0
    %v937 = vadd.f32 %v695, %v936
    %v938 = vpop.f32.mrb[0].mxu0
    %v939 = vadd.f32 %v699, %v938
    %v940 = vpop.f32.mrb[0].mxu0
    %v941 = vadd.f32 %v695, %v940
    %v942 = vpop.f32.mrb[0].mxu0
    %v943 = vadd.f32 %v699, %v942
    %944 = vmatprep.mubr.bf16.mxu0 %v637
    %945 = vmatmul.mubr.bf16.gmra.mrb[0].mxu0 %v636
    %v946 = vpop.f32.mrb[0].mxu0
    %v947 = vadd.f32 %v695, %v946
    %v948 = vpop.f32.mrb[0].mxu0
    %v949 = vadd.f32 %v699, %v948
    %v950 = vpop.f32.mrb[0].mxu0
    %v951 = vadd.f32 %v695, %v950
    %v952 = vpop.f32.mrb[0].mxu0
    %v953 = vadd.f32 %v699, %v952
    %954 = vmatprep.mubr.bf16.mxu0 %v639
    %955 = vmatmul.mubr.bf16.gmra.mrb[0].mxu0 %v638
    %v956 = vpop.f32.mrb[0].mxu0
    %v957 = vadd.f32 %v695, %v956
    %v958 = vpop.f32.mrb[0].mxu0
    %v959 = vadd.f32 %v699, %v958
    %v960 = vpop.f32.mrb[0].mxu0
    %v961 = vadd.f32 %v695, %v960
    %v962 = vpop.f32.mrb[0].mxu0
    %v963 = vadd.f32 %v699, %v962
    %964 = vmatprep.mubr.bf16.mxu0 %v641
    %965 = vmatmul.mubr.bf16.gmra.mrb[0].mxu0 %v640
    %v966 = vpop.f32.mrb[0].mxu0
    %v967 = vadd.f32 %v695, %v966
    %v968 = vpop.f32.mrb[0].mxu0
    %v969 = vadd.f32 %v699, %v968
    %v970 = vpop.f32.mrb[0].mxu0
    %v971 = vadd.f32 %v695, %v970
    %v972 = vpop.f32.mrb[0].mxu0
    %v973 = vadd.f32 %v699, %v972
    %974 = vmatprep.mubr.bf16.mxu0 %v643
    %975 = vmatmul.mubr.bf16.gmra.mrb[0].mxu0 %v642
    %v976 = vpop.f32.mrb[0].mxu0
    %v977 = vadd.f32 %v695, %v976
    %v978 = vpop.f32.mrb[0].mxu0
    %v979 = vadd.f32 %v699, %v978
    %v980 = vpop.f32.mrb[0].mxu0
    %v981 = vadd.f32 %v695, %v980
    %v982 = vpop.f32.mrb[0].mxu0
    %v983 = vadd.f32 %v699, %v982
    %984 = vmatprep.mubr.bf16.mxu0 %v645
    %985 = vmatmul.mubr.bf16.gmra.mrb[0].mxu0 %v644
    %v986 = vpop.f32.mrb[0].mxu0
    %v987 = vadd.f32 %v695, %v986
    %v988 = vpop.f32.mrb[0].mxu0
    %v989 = vadd.f32 %v699, %v988
    %v990 = vpop.f32.mrb[0].mxu0
    %v991 = vadd.f32 %v695, %v990
    %v992 = vpop.f32.mrb[0].mxu0
    %v993 = vadd.f32 %v699, %v992
    %994 = vmatprep.mubr.bf16.mxu0 %v647
    %995 = vmatmul.mubr.bf16.gmra.mrb[0].mxu0 %v646
    %v996 = vpop.f32.mrb[0].mxu0
    %v997 = vadd.f32 %v695, %v996
    %v998 = vpop.f32.mrb[0].mxu0
    %v999 = vadd.f32 %v699, %v998
    %v1000 = vpop.f32.mrb[0].mxu0
    %v1001 = vadd.f32 %v695, %v1000
    %v1002 = vpop.f32.mrb[0].mxu0
    %v1003 = vadd.f32 %v699, %v1002
    %1004 = vmatprep.mubr.bf16.mxu0 %v649
    %1005 = vmatmul.mubr.bf16.gmra.mrb[0].mxu0 %v648
    %v1006 = vpop.f32.mrb[0].mxu0
    %v1007 = vadd.f32 %v695, %v1006
    %v1008 = vpop.f32.mrb[0].mxu0
    %v1009 = vadd.f32 %v699, %v1008
    %v1010 = vpop.f32.mrb[0].mxu0
    %v1011 = vadd.f32 %v695, %v1010
    %v1012 = vpop.f32.mrb[0].mxu0
    %v1013 = vadd.f32 %v699, %v1012
    %1014 = vmatprep.mubr.bf16.mxu0 %v651
    %1015 = vmatmul.mubr.bf16.gmra.mrb[0].mxu0 %v650
    %v1016 = vpop.f32.mrb[0].mxu0
    %v1017 = vadd.f32 %v695, %v1016
    %v1018 = vpop.f32.mrb[0].mxu0
    %v1019 = vadd.f32 %v699, %v1018
    %v1020 = vpop.f32.mrb[0].mxu0
    %v1021 = vadd.f32 %v695, %v1020
    %v1022 = vpop.f32.mrb[0].mxu0
    %v1023 = vadd.f32 %v699, %v1022
    %1024 = vmatprep.mubr.bf16.mxu0 %v653
    %1025 = vmatmul.mubr.bf16.gmra.mrb[0].mxu0 %v652
    %v1026 = vpop.f32.mrb[0].mxu0
    %v1027 = vadd.f32 %v695, %v1026
    %v1028 = vpop.f32.mrb[0].mxu0
    %v1029 = vadd.f32 %v699, %v1028
    %v1030 = vpop.f32.mrb[0].mxu0
    %v1031 = vadd.f32 %v695, %v1030
    %v1032 = vpop.f32.mrb[0].mxu0
    %v1033 = vadd.f32 %v699, %v1032
    %1034 = vmatprep.mubr.bf16.mxu0 %v655
    %1035 = vmatmul.mubr.bf16.gmra.mrb[0].mxu0 %v654
    %v1036 = vpop.f32.mrb[0].mxu0
    %v1037 = vadd.f32 %v695, %v1036
    %v1038 = vpop.f32.mrb[0].mxu0
    %v1039 = vadd.f32 %v699, %v1038
    %v1040 = vpop.f32.mrb[0].mxu0
    %v1041 = vadd.f32 %v695, %v1040
    %v1042 = vpop.f32.mrb[0].mxu0
    %v1043 = vadd.f32 %v699, %v1042
    %1044 = vmatprep.mubr.bf16.mxu0 %v657
    %1045 = vmatmul.mubr.bf16.gmra.mrb[0].mxu0 %v656
    %v1046 = vpop.f32.mrb[0].mxu0
    %v1047 = vadd.f32 %v695, %v1046
    %v1048 = vpop.f32.mrb[0].mxu0
    %v1049 = vadd.f32 %v699, %v1048
    %v1050 = vpop.f32.mrb[0].mxu0
    %v1051 = vadd.f32 %v695, %v1050
    %v1052 = vpop.f32.mrb[0].mxu0
    %v1053 = vadd.f32 %v699, %v1052
    %1054 = vdwg.mxu0
    %vm1055 = vcmp.gt.f32.partialorder %v897, 0.0
    %vm1056 = vcmp.gt.f32.partialorder %v899, 0.0
    %vm1057 = vcmp.gt.f32.partialorder %v901, 0.0
    %vm1058 = vcmp.gt.f32.partialorder %v903, 0.0
    %vm1059 = vcmp.gt.f32.partialorder %v907, 0.0
    %vm1060 = vcmp.gt.f32.partialorder %v909, 0.0
    %vm1061 = vcmp.gt.f32.partialorder %v911, 0.0
    %vm1062 = vcmp.gt.f32.partialorder %v913, 0.0
    %vm1063 = vcmp.gt.f32.partialorder %v917, 0.0
    %vm1064 = vcmp.gt.f32.partialorder %v919, 0.0
    %vm1065 = vcmp.gt.f32.partialorder %v921, 0.0
    %vm1066 = vcmp.gt.f32.partialorder %v923, 0.0
    %vm1067 = vcmp.gt.f32.partialorder %v927, 0.0
    %vm1068 = vcmp.gt.f32.partialorder %v929, 0.0
    %vm1069 = vcmp.gt.f32.partialorder %v931, 0.0
    %vm1070 = vcmp.gt.f32.partialorder %v933, 0.0
    %vm1071 = vcmp.gt.f32.partialorder %v937, 0.0
    %vm1072 = vcmp.gt.f32.partialorder %v939, 0.0
    %vm1073 = vcmp.gt.f32.partialorder %v941, 0.0
    %vm1074 = vcmp.gt.f32.partialorder %v943, 0.0
    %vm1075 = vcmp.gt.f32.partialorder %v947, 0.0
    %vm1076 = vcmp.gt.f32.partialorder %v949, 0.0
    %vm1077 = vcmp.gt.f32.partialorder %v951, 0.0
    %vm1078 = vcmp.gt.f32.partialorder %v953, 0.0
    %vm1079 = vcmp.gt.f32.partialorder %v957, 0.0
    %vm1080 = vcmp.gt.f32.partialorder %v959, 0.0
    %vm1081 = vcmp.gt.f32.partialorder %v961, 0.0
    %vm1082 = vcmp.gt.f32.partialorder %v963, 0.0
    %vm1083 = vcmp.gt.f32.partialorder %v967, 0.0
    %vm1084 = vcmp.gt.f32.partialorder %v969, 0.0
    %vm1085 = vcmp.gt.f32.partialorder %v971, 0.0
    %vm1086 = vcmp.gt.f32.partialorder %v973, 0.0
    %vm1087 = vcmp.gt.f32.partialorder %v977, 0.0
    %vm1088 = vcmp.gt.f32.partialorder %v979, 0.0
    %vm1089 = vcmp.gt.f32.partialorder %v981, 0.0
    %vm1090 = vcmp.gt.f32.partialorder %v983, 0.0
    %vm1091 = vcmp.gt.f32.partialorder %v987, 0.0
    %vm1092 = vcmp.gt.f32.partialorder %v989, 0.0
    %vm1093 = vcmp.gt.f32.partialorder %v991, 0.0
    %vm1094 = vcmp.gt.f32.partialorder %v993, 0.0
    %vm1095 = vcmp.gt.f32.partialorder %v997, 0.0
    %vm1096 = vcmp.gt.f32.partialorder %v999, 0.0
    %vm1097 = vcmp.gt.f32.partialorder %v1001, 0.0
    %vm1098 = vcmp.gt.f32.partialorder %v1003, 0.0
    %vm1099 = vcmp.gt.f32.partialorder %v1007, 0.0
    %vm1100 = vcmp.gt.f32.partialorder %v1009, 0.0
    %vm1101 = vcmp.gt.f32.partialorder %v1011, 0.0
    %vm1102 = vcmp.gt.f32.partialorder %v1013, 0.0
    %vm1103 = vcmp.gt.f32.partialorder %v1017, 0.0
    %vm1104 = vcmp.gt.f32.partialorder %v1019, 0.0
    %vm1105 = vcmp.gt.f32.partialorder %v1021, 0.0
    %vm1106 = vcmp.gt.f32.partialorder %v1023, 0.0
    %vm1107 = vcmp.gt.f32.partialorder %v1027, 0.0
    %vm1108 = vcmp.gt.f32.partialorder %v1029, 0.0
    %vm1109 = vcmp.gt.f32.partialorder %v1031, 0.0
    %vm1110 = vcmp.gt.f32.partialorder %v1033, 0.0
    %vm1111 = vcmp.gt.f32.partialorder %v1037, 0.0
    %vm1112 = vcmp.gt.f32.partialorder %v1039, 0.0
    %vm1113 = vcmp.gt.f32.partialorder %v1041, 0.0
    %vm1114 = vcmp.gt.f32.partialorder %v1043, 0.0
    %vm1115 = vcmp.gt.f32.partialorder %v1047, 0.0
    %vm1116 = vcmp.gt.f32.partialorder %v1049, 0.0
    %vm1117 = vcmp.gt.f32.partialorder %v1051, 0.0
    %vm1118 = vcmp.gt.f32.partialorder %v1053, 0.0
    %v1119 = vmul.f32 %v897, 0.01
    %v1120 = vmul.f32 %v899, 0.01
    %v1121 = vmul.f32 %v901, 0.01
    %v1122 = vmul.f32 %v903, 0.01
    %v1123 = vmul.f32 %v907, 0.01
    %v1124 = vmul.f32 %v909, 0.01
    %v1125 = vmul.f32 %v911, 0.01
    %v1126 = vmul.f32 %v913, 0.01
    %v1127 = vmul.f32 %v917, 0.01
    %v1128 = vmul.f32 %v919, 0.01
    %v1129 = vmul.f32 %v921, 0.01
    %v1130 = vmul.f32 %v923, 0.01
    %v1131 = vmul.f32 %v927, 0.01
    %v1132 = vmul.f32 %v929, 0.01
    %v1133 = vmul.f32 %v931, 0.01
    %v1134 = vmul.f32 %v933, 0.01
    %v1135 = vmul.f32 %v937, 0.01
    %v1136 = vmul.f32 %v939, 0.01
    %v1137 = vmul.f32 %v941, 0.01
    %v1138 = vmul.f32 %v943, 0.01
    %v1139 = vmul.f32 %v947, 0.01
    %v1140 = vmul.f32 %v949, 0.01
    %v1141 = vmul.f32 %v951, 0.01
    %v1142 = vmul.f32 %v953, 0.01
    %v1143 = vmul.f32 %v957, 0.01
    %v1144 = vmul.f32 %v959, 0.01
    %v1145 = vmul.f32 %v961, 0.01
    %v1146 = vmul.f32 %v963, 0.01
    %v1147 = vmul.f32 %v967, 0.01
    %v1148 = vmul.f32 %v969, 0.01
    %v1149 = vmul.f32 %v971, 0.01
    %v1150 = vmul.f32 %v973, 0.01
    %v1151 = vmul.f32 %v977, 0.01
    %v1152 = vmul.f32 %v979, 0.01
    %v1153 = vmul.f32 %v981, 0.01
    %v1154 = vmul.f32 %v983, 0.01
    %v1155 = vmul.f32 %v987, 0.01
    %v1156 = vmul.f32 %v989, 0.01
    %v1157 = vmul.f32 %v991, 0.01
    %v1158 = vmul.f32 %v993, 0.01
    %v1159 = vmul.f32 %v997, 0.01
    %v1160 = vmul.f32 %v999, 0.01
    %v1161 = vmul.f32 %v1001, 0.01
    %v1162 = vmul.f32 %v1003, 0.01
    %v1163 = vmul.f32 %v1007, 0.01
    %v1164 = vmul.f32 %v1009, 0.01
    %v1165 = vmul.f32 %v1011, 0.01
    %v1166 = vmul.f32 %v1013, 0.01
    %v1167 = vmul.f32 %v1017, 0.01
    %v1168 = vmul.f32 %v1019, 0.01
    %v1169 = vmul.f32 %v1021, 0.01
    %v1170 = vmul.f32 %v1023, 0.01
    %v1171 = vmul.f32 %v1027, 0.01
    %v1172 = vmul.f32 %v1029, 0.01
    %v1173 = vmul.f32 %v1031, 0.01
    %v1174 = vmul.f32 %v1033, 0.01
    %v1175 = vmul.f32 %v1037, 0.01
    %v1176 = vmul.f32 %v1039, 0.01
    %v1177 = vmul.f32 %v1041, 0.01
    %v1178 = vmul.f32 %v1043, 0.01
    %v1179 = vmul.f32 %v1047, 0.01
    %v1180 = vmul.f32 %v1049, 0.01
    %v1181 = vmul.f32 %v1051, 0.01
    %v1182 = vmul.f32 %v1053, 0.01
    %v1183 = vsel %vm1055, %v897, %v1119
    %v1184 = vsel %vm1056, %v899, %v1120
    %v1185 = vsel %vm1057, %v901, %v1121
    %v1186 = vsel %vm1058, %v903, %v1122
    %v1187 = vsel %vm1059, %v907, %v1123
    %v1188 = vsel %vm1060, %v909, %v1124
    %v1189 = vsel %vm1061, %v911, %v1125
    %v1190 = vsel %vm1062, %v913, %v1126
    %v1191 = vsel %vm1063, %v917, %v1127
    %v1192 = vsel %vm1064, %v919, %v1128
    %v1193 = vsel %vm1065, %v921, %v1129
    %v1194 = vsel %vm1066, %v923, %v1130
    %v1195 = vsel %vm1067, %v927, %v1131
    %v1196 = vsel %vm1068, %v929, %v1132
    %v1197 = vsel %vm1069, %v931, %v1133
    %v1198 = vsel %vm1070, %v933, %v1134
    %v1199 = vsel %vm1071, %v937, %v1135
    %v1200 = vsel %vm1072, %v939, %v1136
    %v1201 = vsel %vm1073, %v941, %v1137
    %v1202 = vsel %vm1074, %v943, %v1138
    %v1203 = vsel %vm1075, %v947, %v1139
    %v1204 = vsel %vm1076, %v949, %v1140
    %v1205 = vsel %vm1077, %v951, %v1141
    %v1206 = vsel %vm1078, %v953, %v1142
    %v1207 = vsel %vm1079, %v957, %v1143
    %v1208 = vsel %vm1080, %v959, %v1144
    %v1209 = vsel %vm1081, %v961, %v1145
    %v1210 = vsel %vm1082, %v963, %v1146
    %v1211 = vsel %vm1083, %v967, %v1147
    %v1212 = vsel %vm1084, %v969, %v1148
    %v1213 = vsel %vm1085, %v971, %v1149
    %v1214 = vsel %vm1086, %v973, %v1150
    %v1215 = vsel %vm1087, %v977, %v1151
    %v1216 = vsel %vm1088, %v979, %v1152
    %v1217 = vsel %vm1089, %v981, %v1153
    %v1218 = vsel %vm1090, %v983, %v1154
    %v1219 = vsel %vm1091, %v987, %v1155
    %v1220 = vsel %vm1092, %v989, %v1156
    %v1221 = vsel %vm1093, %v991, %v1157
    %v1222 = vsel %vm1094, %v993, %v1158
    %v1223 = vsel %vm1095, %v997, %v1159
    %v1224 = vsel %vm1096, %v999, %v1160
    %v1225 = vsel %vm1097, %v1001, %v1161
    %v1226 = vsel %vm1098, %v1003, %v1162
    %v1227 = vsel %vm1099, %v1007, %v1163
    %v1228 = vsel %vm1100, %v1009, %v1164
    %v1229 = vsel %vm1101, %v1011, %v1165
    %v1230 = vsel %vm1102, %v1013, %v1166
    %v1231 = vsel %vm1103, %v1017, %v1167
    %v1232 = vsel %vm1104, %v1019, %v1168
    %v1233 = vsel %vm1105, %v1021, %v1169
    %v1234 = vsel %vm1106, %v1023, %v1170
    %v1235 = vsel %vm1107, %v1027, %v1171
    %v1236 = vsel %vm1108, %v1029, %v1172
    %v1237 = vsel %vm1109, %v1031, %v1173
    %v1238 = vsel %vm1110, %v1033, %v1174
    %v1239 = vsel %vm1111, %v1037, %v1175
    %v1240 = vsel %vm1112, %v1039, %v1176
    %v1241 = vsel %vm1113, %v1041, %v1177
    %v1242 = vsel %vm1114, %v1043, %v1178
    %v1243 = vsel %vm1115, %v1047, %v1179
    %v1244 = vsel %vm1116, %v1049, %v1180
    %v1245 = vsel %vm1117, %v1051, %v1181
    %v1246 = vsel %vm1118, %v1053, %v1182
    %v1247 = vpack.c.bf16 %v1185, %v1183
    %v1248 = vpack.c.bf16 %v1186, %v1184
    %v1249 = vpack.c.bf16 %v1189, %v1187
    %v1250 = vpack.c.bf16 %v1190, %v1188
    %v1251 = vpack.c.bf16 %v1193, %v1191
    %v1252 = vpack.c.bf16 %v1194, %v1192
    %v1253 = vpack.c.bf16 %v1197, %v1195
    %v1254 = vpack.c.bf16 %v1198, %v1196
    %v1255 = vpack.c.bf16 %v1201, %v1199
    %v1256 = vpack.c.bf16 %v1202, %v1200
    %v1257 = vpack.c.bf16 %v1205, %v1203
    %v1258 = vpack.c.bf16 %v1206, %v1204
    %v1259 = vpack.c.bf16 %v1209, %v1207
    %v1260 = vpack.c.bf16 %v1210, %v1208
    %v1261 = vpack.c.bf16 %v1213, %v1211
    %v1262 = vpack.c.bf16 %v1214, %v1212
    %v1263 = vpack.c.bf16 %v1217, %v1215
    %v1264 = vpack.c.bf16 %v1218, %v1216
    %v1265 = vpack.c.bf16 %v1221, %v1219
    %v1266 = vpack.c.bf16 %v1222, %v1220
    %v1267 = vpack.c.bf16 %v1225, %v1223
    %v1268 = vpack.c.bf16 %v1226, %v1224
    %v1269 = vpack.c.bf16 %v1229, %v1227
    %v1270 = vpack.c.bf16 %v1230, %v1228
    %v1271 = vpack.c.bf16 %v1233, %v1231
    %v1272 = vpack.c.bf16 %v1234, %v1232
    %v1273 = vpack.c.bf16 %v1237, %v1235
    %v1274 = vpack.c.bf16 %v1238, %v1236
    %v1275 = vpack.c.bf16 %v1241, %v1239
    %v1276 = vpack.c.bf16 %v1242, %v1240
    %v1277 = vpack.c.bf16 %v1245, %v1243
    %v1278 = vpack.c.bf16 %v1246, %v1244
    %v1279 = vld [vmem:[#allocation2] sm:$0xff]
    %v1280 = vld [vmem:[#allocation2 + $0x8] sm:$0xff]
    %v1281 = vld [vmem:[#allocation2 + $0x10] sm:$0xff]
    %v1282 = vld [vmem:[#allocation2 + $0x18] sm:$0xff]
    %v1283 = vld [vmem:[#allocation2 + $0x20] sm:$0xff]
    %v1284 = vld [vmem:[#allocation2 + $0x28] sm:$0xff]
    %v1285 = vld [vmem:[#allocation2 + $0x30] sm:$0xff]
    %v1286 = vld [vmem:[#allocation2 + $0x38] sm:$0xff]
    %v1287 = vld [vmem:[#allocation2 + $0x40] sm:$0xff]
    %v1288 = vld [vmem:[#allocation2 + $0x48] sm:$0xff]
    %v1289 = vld [vmem:[#allocation2 + $0x50] sm:$0xff]
    %v1290 = vld [vmem:[#allocation2 + $0x58] sm:$0xff]
    %v1291 = vld [vmem:[#allocation2 + $0x60] sm:$0xff]
    %v1292 = vld [vmem:[#allocation2 + $0x68] sm:$0xff]
    %v1293 = vld [vmem:[#allocation2 + $0x70] sm:$0xff]
    %v1294 = vld [vmem:[#allocation2 + $0x78] sm:$0xff]
    %v1295 = vld [vmem:[#allocation2 + $0x80] sm:$0xff]
    %v1296 = vld [vmem:[#allocation2 + $0x88] sm:$0xff]
    %v1297 = vld [vmem:[#allocation2 + $0x90] sm:$0xff]
    %v1298 = vld [vmem:[#allocation2 + $0x98] sm:$0xff]
    %v1299 = vld [vmem:[#allocation2 + $0xa0] sm:$0xff]
    %v1300 = vld [vmem:[#allocation2 + $0xa8] sm:$0xff]
    %v1301 = vld [vmem:[#allocation2 + $0xb0] sm:$0xff]
    %v1302 = vld [vmem:[#allocation2 + $0xb8] sm:$0xff]
    %v1303 = vld [vmem:[#allocation2 + $0xc0] sm:$0xff]
    %v1304 = vld [vmem:[#allocation2 + $0xc8] sm:$0xff]
    %v1305 = vld [vmem:[#allocation2 + $0xd0] sm:$0xff]
    %v1306 = vld [vmem:[#allocation2 + $0xd8] sm:$0xff]
    %v1307 = vld [vmem:[#allocation2 + $0xe0] sm:$0xff]
    %v1308 = vld [vmem:[#allocation2 + $0xe8] sm:$0xff]
    %v1309 = vld [vmem:[#allocation2 + $0xf0] sm:$0xff]
    %v1310 = vld [vmem:[#allocation2 + $0xf8] sm:$0xff]
    %v1311 = vld [vmem:[%s6] sm:$0x3]
    %v1313 = vlaneseq
    %v1314 = vshrl.u32 %v1313, 7
    %v1315 = vsub.s32 0, %v1314
    %v1316 = vrot.slane %v1311, %v1315
    %v1317 = vlaneseq
    %v1318 = vshrl.u32 %v1317, 7
    %v1319 = vsub.s32 1, %v1318
    %v1320 = vrot.slane %v1311, %v1319
    %v1355 = vunpack.c.l.b16 %v1279
    %v1356 = vunpack.c.h.b16 %v1279
    %v1357 = vunpack.c.l.b16 %v1280
    %v1358 = vunpack.c.h.b16 %v1280
    %v1359 = vunpack.c.l.b16 %v1281
    %v1360 = vunpack.c.h.b16 %v1281
    %v1361 = vunpack.c.l.b16 %v1282
    %v1362 = vunpack.c.h.b16 %v1282
    %v1363 = vunpack.c.l.b16 %v1283
    %v1364 = vunpack.c.h.b16 %v1283
    %v1365 = vunpack.c.l.b16 %v1284
    %v1366 = vunpack.c.h.b16 %v1284
    %v1367 = vunpack.c.l.b16 %v1285
    %v1368 = vunpack.c.h.b16 %v1285
    %v1369 = vunpack.c.l.b16 %v1286
    %v1370 = vunpack.c.h.b16 %v1286
    %v1371 = vunpack.c.l.b16 %v1287
    %v1372 = vunpack.c.h.b16 %v1287
    %v1373 = vunpack.c.l.b16 %v1288
    %v1374 = vunpack.c.h.b16 %v1288
    %v1375 = vunpack.c.l.b16 %v1289
    %v1376 = vunpack.c.h.b16 %v1289
    %v1377 = vunpack.c.l.b16 %v1290
    %v1378 = vunpack.c.h.b16 %v1290
    %v1379 = vunpack.c.l.b16 %v1291
    %v1380 = vunpack.c.h.b16 %v1291
    %v1381 = vunpack.c.l.b16 %v1292
    %v1382 = vunpack.c.h.b16 %v1292
    %v1383 = vunpack.c.l.b16 %v1293
    %v1384 = vunpack.c.h.b16 %v1293
    %v1385 = vunpack.c.l.b16 %v1294
    %v1386 = vunpack.c.h.b16 %v1294
    %v1387 = vunpack.c.l.b16 %v1295
    %v1388 = vunpack.c.h.b16 %v1295
    %v1389 = vunpack.c.l.b16 %v1296
    %v1390 = vunpack.c.h.b16 %v1296
    %v1391 = vunpack.c.l.b16 %v1297
    %v1392 = vunpack.c.h.b16 %v1297
    %v1393 = vunpack.c.l.b16 %v1298
    %v1394 = vunpack.c.h.b16 %v1298
    %v1395 = vunpack.c.l.b16 %v1299
    %v1396 = vunpack.c.h.b16 %v1299
    %v1397 = vunpack.c.l.b16 %v1300
    %v1398 = vunpack.c.h.b16 %v1300
    %v1399 = vunpack.c.l.b16 %v1301
    %v1400 = vunpack.c.h.b16 %v1301
    %v1401 = vunpack.c.l.b16 %v1302
    %v1402 = vunpack.c.h.b16 %v1302
    %v1403 = vunpack.c.l.b16 %v1303
    %v1404 = vunpack.c.h.b16 %v1303
    %v1405 = vunpack.c.l.b16 %v1304
    %v1406 = vunpack.c.h.b16 %v1304
    %v1407 = vunpack.c.l.b16 %v1305
    %v1408 = vunpack.c.h.b16 %v1305
    %v1409 = vunpack.c.l.b16 %v1306
    %v1410 = vunpack.c.h.b16 %v1306
    %v1411 = vunpack.c.l.b16 %v1307
    %v1412 = vunpack.c.h.b16 %v1307
    %v1413 = vunpack.c.l.b16 %v1308
    %v1414 = vunpack.c.h.b16 %v1308
    %v1415 = vunpack.c.l.b16 %v1309
    %v1416 = vunpack.c.h.b16 %v1309
    %v1417 = vunpack.c.l.b16 %v1310
    %v1418 = vunpack.c.h.b16 %v1310
    %v1419 = vpack.c.b16 %v1357, %v1355
    %v1420 = vpack.c.b16 %v1358, %v1356
    %v1421 = vpack.c.b16 %v1361, %v1359
    %v1422 = vpack.c.b16 %v1362, %v1360
    %v1423 = vpack.c.b16 %v1365, %v1363
    %v1424 = vpack.c.b16 %v1366, %v1364
    %v1425 = vpack.c.b16 %v1369, %v1367
    %v1426 = vpack.c.b16 %v1370, %v1368
    %v1427 = vpack.c.b16 %v1373, %v1371
    %v1428 = vpack.c.b16 %v1374, %v1372
    %v1429 = vpack.c.b16 %v1377, %v1375
    %v1430 = vpack.c.b16 %v1378, %v1376
    %v1431 = vpack.c.b16 %v1381, %v1379
    %v1432 = vpack.c.b16 %v1382, %v1380
    %v1433 = vpack.c.b16 %v1385, %v1383
    %v1434 = vpack.c.b16 %v1386, %v1384
    %v1435 = vpack.c.b16 %v1389, %v1387
    %v1436 = vpack.c.b16 %v1390, %v1388
    %v1437 = vpack.c.b16 %v1393, %v1391
    %v1438 = vpack.c.b16 %v1394, %v1392
    %v1439 = vpack.c.b16 %v1397, %v1395
    %v1440 = vpack.c.b16 %v1398, %v1396
    %v1441 = vpack.c.b16 %v1401, %v1399
    %v1442 = vpack.c.b16 %v1402, %v1400
    %v1443 = vpack.c.b16 %v1405, %v1403
    %v1444 = vpack.c.b16 %v1406, %v1404
    %v1445 = vpack.c.b16 %v1409, %v1407
    %v1446 = vpack.c.b16 %v1410, %v1408
    %v1447 = vpack.c.b16 %v1413, %v1411
    %v1448 = vpack.c.b16 %v1414, %v1412
    %v1449 = vpack.c.b16 %v1417, %v1415
    %v1450 = vpack.c.b16 %v1418, %v1416
    %1483 = vmatprep.subr.bf16.mxu0 %v1420
    %1484 = vmatpush1.bf16.msra.mxu0 %v1419
    %1485 = vmatprep.subr.bf16.mxu0 %v1422
    %1486 = vmatpush1.bf16.msra.mxu0 %v1421
    %1487 = vmatprep.subr.bf16.mxu0 %v1424
    %1488 = vmatpush1.bf16.msra.mxu0 %v1423
    %1489 = vmatprep.subr.bf16.mxu0 %v1426
    %1490 = vmatpush1.bf16.msra.mxu0 %v1425
    %1491 = vmatprep.subr.bf16.mxu0 %v1428
    %1492 = vmatpush1.bf16.msra.mxu0 %v1427
    %1493 = vmatprep.subr.bf16.mxu0 %v1430
    %1494 = vmatpush1.bf16.msra.mxu0 %v1429
    %1495 = vmatprep.subr.bf16.mxu0 %v1432
    %1496 = vmatpush1.bf16.msra.mxu0 %v1431
    %1497 = vmatprep.subr.bf16.mxu0 %v1434
    %1498 = vmatpush1.bf16.msra.mxu0 %v1433
    %1499 = vmatprep.subr.bf16.mxu0 %v1436
    %1500 = vmatpush1.bf16.msra.mxu0 %v1435
    %1501 = vmatprep.subr.bf16.mxu0 %v1438
    %1502 = vmatpush1.bf16.msra.mxu0 %v1437
    %1503 = vmatprep.subr.bf16.mxu0 %v1440
    %1504 = vmatpush1.bf16.msra.mxu0 %v1439
    %1505 = vmatprep.subr.bf16.mxu0 %v1442
    %1506 = vmatpush1.bf16.msra.mxu0 %v1441
    %1507 = vmatprep.subr.bf16.mxu0 %v1444
    %1508 = vmatpush1.bf16.msra.mxu0 %v1443
    %1509 = vmatprep.subr.bf16.mxu0 %v1446
    %1510 = vmatpush1.bf16.msra.mxu0 %v1445
    %1511 = vmatprep.subr.bf16.mxu0 %v1448
    %1512 = vmatpush1.bf16.msra.mxu0 %v1447
    %1513 = vmatprep.subr.bf16.mxu0 %v1450
    %1514 = vmatpush1.bf16.msra.mxu0 %v1449
    %1515 = vmatprep.mubr.bf16.mxu0 %v1248
    %1516 = vmatmul.mubr.bf16.gmra.mrb[0].mxu0 %v1247
    %v1517 = vpop.f32.mrb[0].mxu0
    %v1518 = vadd.f32 %v1316, %v1517
    %v1519 = vpop.f32.mrb[0].mxu0
    %v1520 = vadd.f32 %v1320, %v1519
    %v1521 = vpop.f32.mrb[0].mxu0
    %v1522 = vadd.f32 %v1316, %v1521
    %v1523 = vpop.f32.mrb[0].mxu0
    %v1524 = vadd.f32 %v1320, %v1523
    %1525 = vmatprep.mubr.bf16.mxu0 %v1250
    %1526 = vmatmul.mubr.bf16.gmra.mrb[0].mxu0 %v1249
    %v1527 = vpop.f32.mrb[0].mxu0
    %v1528 = vadd.f32 %v1316, %v1527
    %v1529 = vpop.f32.mrb[0].mxu0
    %v1530 = vadd.f32 %v1320, %v1529
    %v1531 = vpop.f32.mrb[0].mxu0
    %v1532 = vadd.f32 %v1316, %v1531
    %v1533 = vpop.f32.mrb[0].mxu0
    %v1534 = vadd.f32 %v1320, %v1533
    %1535 = vmatprep.mubr.bf16.mxu0 %v1252
    %1536 = vmatmul.mubr.bf16.gmra.mrb[0].mxu0 %v1251
    %v1537 = vpop.f32.mrb[0].mxu0
    %v1538 = vadd.f32 %v1316, %v1537
    %v1539 = vpop.f32.mrb[0].mxu0
    %v1540 = vadd.f32 %v1320, %v1539
    %v1541 = vpop.f32.mrb[0].mxu0
    %v1542 = vadd.f32 %v1316, %v1541
    %v1543 = vpop.f32.mrb[0].mxu0
    %v1544 = vadd.f32 %v1320, %v1543
    %1545 = vmatprep.mubr.bf16.mxu0 %v1254
    %1546 = vmatmul.mubr.bf16.gmra.mrb[0].mxu0 %v1253
    %v1547 = vpop.f32.mrb[0].mxu0
    %v1548 = vadd.f32 %v1316, %v1547
    %v1549 = vpop.f32.mrb[0].mxu0
    %v1550 = vadd.f32 %v1320, %v1549
    %v1551 = vpop.f32.mrb[0].mxu0
    %v1552 = vadd.f32 %v1316, %v1551
    %v1553 = vpop.f32.mrb[0].mxu0
    %v1554 = vadd.f32 %v1320, %v1553
    %1555 = vmatprep.mubr.bf16.mxu0 %v1256
    %1556 = vmatmul.mubr.bf16.gmra.mrb[0].mxu0 %v1255
    %v1557 = vpop.f32.mrb[0].mxu0
    %v1558 = vadd.f32 %v1316, %v1557
    %v1559 = vpop.f32.mrb[0].mxu0
    %v1560 = vadd.f32 %v1320, %v1559
    %v1561 = vpop.f32.mrb[0].mxu0
    %v1562 = vadd.f32 %v1316, %v1561
    %v1563 = vpop.f32.mrb[0].mxu0
    %v1564 = vadd.f32 %v1320, %v1563
    %1565 = vmatprep.mubr.bf16.mxu0 %v1258
    %1566 = vmatmul.mubr.bf16.gmra.mrb[0].mxu0 %v1257
    %v1567 = vpop.f32.mrb[0].mxu0
    %v1568 = vadd.f32 %v1316, %v1567
    %v1569 = vpop.f32.mrb[0].mxu0
    %v1570 = vadd.f32 %v1320, %v1569
    %v1571 = vpop.f32.mrb[0].mxu0
    %v1572 = vadd.f32 %v1316, %v1571
    %v1573 = vpop.f32.mrb[0].mxu0
    %v1574 = vadd.f32 %v1320, %v1573
    %1575 = vmatprep.mubr.bf16.mxu0 %v1260
    %1576 = vmatmul.mubr.bf16.gmra.mrb[0].mxu0 %v1259
    %v1577 = vpop.f32.mrb[0].mxu0
    %v1578 = vadd.f32 %v1316, %v1577
    %v1579 = vpop.f32.mrb[0].mxu0
    %v1580 = vadd.f32 %v1320, %v1579
    %v1581 = vpop.f32.mrb[0].mxu0
    %v1582 = vadd.f32 %v1316, %v1581
    %v1583 = vpop.f32.mrb[0].mxu0
    %v1584 = vadd.f32 %v1320, %v1583
    %1585 = vmatprep.mubr.bf16.mxu0 %v1262
    %1586 = vmatmul.mubr.bf16.gmra.mrb[0].mxu0 %v1261
    %v1587 = vpop.f32.mrb[0].mxu0
    %v1588 = vadd.f32 %v1316, %v1587
    %v1589 = vpop.f32.mrb[0].mxu0
    %v1590 = vadd.f32 %v1320, %v1589
    %v1591 = vpop.f32.mrb[0].mxu0
    %v1592 = vadd.f32 %v1316, %v1591
    %v1593 = vpop.f32.mrb[0].mxu0
    %v1594 = vadd.f32 %v1320, %v1593
    %1595 = vmatprep.mubr.bf16.mxu0 %v1264
    %1596 = vmatmul.mubr.bf16.gmra.mrb[0].mxu0 %v1263
    %v1597 = vpop.f32.mrb[0].mxu0
    %v1598 = vadd.f32 %v1316, %v1597
    %v1599 = vpop.f32.mrb[0].mxu0
    %v1600 = vadd.f32 %v1320, %v1599
    %v1601 = vpop.f32.mrb[0].mxu0
    %v1602 = vadd.f32 %v1316, %v1601
    %v1603 = vpop.f32.mrb[0].mxu0
    %v1604 = vadd.f32 %v1320, %v1603
    %1605 = vmatprep.mubr.bf16.mxu0 %v1266
    %1606 = vmatmul.mubr.bf16.gmra.mrb[0].mxu0 %v1265
    %v1607 = vpop.f32.mrb[0].mxu0
    %v1608 = vadd.f32 %v1316, %v1607
    %v1609 = vpop.f32.mrb[0].mxu0
    %v1610 = vadd.f32 %v1320, %v1609
    %v1611 = vpop.f32.mrb[0].mxu0
    %v1612 = vadd.f32 %v1316, %v1611
    %v1613 = vpop.f32.mrb[0].mxu0
    %v1614 = vadd.f32 %v1320, %v1613
    %1615 = vmatprep.mubr.bf16.mxu0 %v1268
    %1616 = vmatmul.mubr.bf16.gmra.mrb[0].mxu0 %v1267
    %v1617 = vpop.f32.mrb[0].mxu0
    %v1618 = vadd.f32 %v1316, %v1617
    %v1619 = vpop.f32.mrb[0].mxu0
    %v1620 = vadd.f32 %v1320, %v1619
    %v1621 = vpop.f32.mrb[0].mxu0
    %v1622 = vadd.f32 %v1316, %v1621
    %v1623 = vpop.f32.mrb[0].mxu0
    %v1624 = vadd.f32 %v1320, %v1623
    %1625 = vmatprep.mubr.bf16.mxu0 %v1270
    %1626 = vmatmul.mubr.bf16.gmra.mrb[0].mxu0 %v1269
    %v1627 = vpop.f32.mrb[0].mxu0
    %v1628 = vadd.f32 %v1316, %v1627
    %v1629 = vpop.f32.mrb[0].mxu0
    %v1630 = vadd.f32 %v1320, %v1629
    %v1631 = vpop.f32.mrb[0].mxu0
    %v1632 = vadd.f32 %v1316, %v1631
    %v1633 = vpop.f32.mrb[0].mxu0
    %v1634 = vadd.f32 %v1320, %v1633
    %1635 = vmatprep.mubr.bf16.mxu0 %v1272
    %1636 = vmatmul.mubr.bf16.gmra.mrb[0].mxu0 %v1271
    %v1637 = vpop.f32.mrb[0].mxu0
    %v1638 = vadd.f32 %v1316, %v1637
    %v1639 = vpop.f32.mrb[0].mxu0
    %v1640 = vadd.f32 %v1320, %v1639
    %v1641 = vpop.f32.mrb[0].mxu0
    %v1642 = vadd.f32 %v1316, %v1641
    %v1643 = vpop.f32.mrb[0].mxu0
    %v1644 = vadd.f32 %v1320, %v1643
    %1645 = vmatprep.mubr.bf16.mxu0 %v1274
    %1646 = vmatmul.mubr.bf16.gmra.mrb[0].mxu0 %v1273
    %v1647 = vpop.f32.mrb[0].mxu0
    %v1648 = vadd.f32 %v1316, %v1647
    %v1649 = vpop.f32.mrb[0].mxu0
    %v1650 = vadd.f32 %v1320, %v1649
    %v1651 = vpop.f32.mrb[0].mxu0
    %v1652 = vadd.f32 %v1316, %v1651
    %v1653 = vpop.f32.mrb[0].mxu0
    %v1654 = vadd.f32 %v1320, %v1653
    %1655 = vmatprep.mubr.bf16.mxu0 %v1276
    %1656 = vmatmul.mubr.bf16.gmra.mrb[0].mxu0 %v1275
    %v1657 = vpop.f32.mrb[0].mxu0
    %v1658 = vadd.f32 %v1316, %v1657
    %v1659 = vpop.f32.mrb[0].mxu0
    %v1660 = vadd.f32 %v1320, %v1659
    %v1661 = vpop.f32.mrb[0].mxu0
    %v1662 = vadd.f32 %v1316, %v1661
    %v1663 = vpop.f32.mrb[0].mxu0
    %v1664 = vadd.f32 %v1320, %v1663
    %1665 = vmatprep.mubr.bf16.mxu0 %v1278
    %1666 = vmatmul.mubr.bf16.gmra.mrb[0].mxu0 %v1277
    %v1667 = vpop.f32.mrb[0].mxu0
    %v1668 = vadd.f32 %v1316, %v1667
    %v1669 = vpop.f32.mrb[0].mxu0
    %v1670 = vadd.f32 %v1320, %v1669
    %v1671 = vpop.f32.mrb[0].mxu0
    %v1672 = vadd.f32 %v1316, %v1671
    %v1673 = vpop.f32.mrb[0].mxu0
    %v1674 = vadd.f32 %v1320, %v1673
    %1675 = vdwg.mxu0
    %vm1676 = vcmp.gt.f32.partialorder %v1518, 0.0
    %vm1677 = vcmp.gt.f32.partialorder %v1520, 0.0
    %vm1678 = vcmp.gt.f32.partialorder %v1522, 0.0
    %vm1679 = vcmp.gt.f32.partialorder %v1524, 0.0
    %vm1680 = vcmp.gt.f32.partialorder %v1528, 0.0
    %vm1681 = vcmp.gt.f32.partialorder %v1530, 0.0
    %vm1682 = vcmp.gt.f32.partialorder %v1532, 0.0
    %vm1683 = vcmp.gt.f32.partialorder %v1534, 0.0
    %vm1684 = vcmp.gt.f32.partialorder %v1538, 0.0
    %vm1685 = vcmp.gt.f32.partialorder %v1540, 0.0
    %vm1686 = vcmp.gt.f32.partialorder %v1542, 0.0
    %vm1687 = vcmp.gt.f32.partialorder %v1544, 0.0
    %vm1688 = vcmp.gt.f32.partialorder %v1548, 0.0
    %vm1689 = vcmp.gt.f32.partialorder %v1550, 0.0
    %vm1690 = vcmp.gt.f32.partialorder %v1552, 0.0
    %vm1691 = vcmp.gt.f32.partialorder %v1554, 0.0
    %vm1692 = vcmp.gt.f32.partialorder %v1558, 0.0
    %vm1693 = vcmp.gt.f32.partialorder %v1560, 0.0
    %vm1694 = vcmp.gt.f32.partialorder %v1562, 0.0
    %vm1695 = vcmp.gt.f32.partialorder %v1564, 0.0
    %vm1696 = vcmp.gt.f32.partialorder %v1568, 0.0
    %vm1697 = vcmp.gt.f32.partialorder %v1570, 0.0
    %vm1698 = vcmp.gt.f32.partialorder %v1572, 0.0
    %vm1699 = vcmp.gt.f32.partialorder %v1574, 0.0
    %vm1700 = vcmp.gt.f32.partialorder %v1578, 0.0
    %vm1701 = vcmp.gt.f32.partialorder %v1580, 0.0
    %vm1702 = vcmp.gt.f32.partialorder %v1582, 0.0
    %vm1703 = vcmp.gt.f32.partialorder %v1584, 0.0
    %vm1704 = vcmp.gt.f32.partialorder %v1588, 0.0
    %vm1705 = vcmp.gt.f32.partialorder %v1590, 0.0
    %vm1706 = vcmp.gt.f32.partialorder %v1592, 0.0
    %vm1707 = vcmp.gt.f32.partialorder %v1594, 0.0
    %vm1708 = vcmp.gt.f32.partialorder %v1598, 0.0
    %vm1709 = vcmp.gt.f32.partialorder %v1600, 0.0
    %vm1710 = vcmp.gt.f32.partialorder %v1602, 0.0
    %vm1711 = vcmp.gt.f32.partialorder %v1604, 0.0
    %vm1712 = vcmp.gt.f32.partialorder %v1608, 0.0
    %vm1713 = vcmp.gt.f32.partialorder %v1610, 0.0
    %vm1714 = vcmp.gt.f32.partialorder %v1612, 0.0
    %vm1715 = vcmp.gt.f32.partialorder %v1614, 0.0
    %vm1716 = vcmp.gt.f32.partialorder %v1618, 0.0
    %vm1717 = vcmp.gt.f32.partialorder %v1620, 0.0
    %vm1718 = vcmp.gt.f32.partialorder %v1622, 0.0
    %vm1719 = vcmp.gt.f32.partialorder %v1624, 0.0
    %vm1720 = vcmp.gt.f32.partialorder %v1628, 0.0
    %vm1721 = vcmp.gt.f32.partialorder %v1630, 0.0
    %vm1722 = vcmp.gt.f32.partialorder %v1632, 0.0
    %vm1723 = vcmp.gt.f32.partialorder %v1634, 0.0
    %vm1724 = vcmp.gt.f32.partialorder %v1638, 0.0
    %vm1725 = vcmp.gt.f32.partialorder %v1640, 0.0
    %vm1726 = vcmp.gt.f32.partialorder %v1642, 0.0
    %vm1727 = vcmp.gt.f32.partialorder %v1644, 0.0
    %vm1728 = vcmp.gt.f32.partialorder %v1648, 0.0
    %vm1729 = vcmp.gt.f32.partialorder %v1650, 0.0
    %vm1730 = vcmp.gt.f32.partialorder %v1652, 0.0
    %vm1731 = vcmp.gt.f32.partialorder %v1654, 0.0
    %vm1732 = vcmp.gt.f32.partialorder %v1658, 0.0
    %vm1733 = vcmp.gt.f32.partialorder %v1660, 0.0
    %vm1734 = vcmp.gt.f32.partialorder %v1662, 0.0
    %vm1735 = vcmp.gt.f32.partialorder %v1664, 0.0
    %vm1736 = vcmp.gt.f32.partialorder %v1668, 0.0
    %vm1737 = vcmp.gt.f32.partialorder %v1670, 0.0
    %vm1738 = vcmp.gt.f32.partialorder %v1672, 0.0
    %vm1739 = vcmp.gt.f32.partialorder %v1674, 0.0
    %v1740 = vmul.f32 %v1518, 0.01
    %v1741 = vmul.f32 %v1520, 0.01
    %v1742 = vmul.f32 %v1522, 0.01
    %v1743 = vmul.f32 %v1524, 0.01
    %v1744 = vmul.f32 %v1528, 0.01
    %v1745 = vmul.f32 %v1530, 0.01
    %v1746 = vmul.f32 %v1532, 0.01
    %v1747 = vmul.f32 %v1534, 0.01
    %v1748 = vmul.f32 %v1538, 0.01
    %v1749 = vmul.f32 %v1540, 0.01
    %v1750 = vmul.f32 %v1542, 0.01
    %v1751 = vmul.f32 %v1544, 0.01
    %v1752 = vmul.f32 %v1548, 0.01
    %v1753 = vmul.f32 %v1550, 0.01
    %v1754 = vmul.f32 %v1552, 0.01
    %v1755 = vmul.f32 %v1554, 0.01
    %v1756 = vmul.f32 %v1558, 0.01
    %v1757 = vmul.f32 %v1560, 0.01
    %v1758 = vmul.f32 %v1562, 0.01
    %v1759 = vmul.f32 %v1564, 0.01
    %v1760 = vmul.f32 %v1568, 0.01
    %v1761 = vmul.f32 %v1570, 0.01
    %v1762 = vmul.f32 %v1572, 0.01
    %v1763 = vmul.f32 %v1574, 0.01
    %v1764 = vmul.f32 %v1578, 0.01
    %v1765 = vmul.f32 %v1580, 0.01
    %v1766 = vmul.f32 %v1582, 0.01
    %v1767 = vmul.f32 %v1584, 0.01
    %v1768 = vmul.f32 %v1588, 0.01
    %v1769 = vmul.f32 %v1590, 0.01
    %v1770 = vmul.f32 %v1592, 0.01
    %v1771 = vmul.f32 %v1594, 0.01
    %v1772 = vmul.f32 %v1598, 0.01
    %v1773 = vmul.f32 %v1600, 0.01
    %v1774 = vmul.f32 %v1602, 0.01
    %v1775 = vmul.f32 %v1604, 0.01
    %v1776 = vmul.f32 %v1608, 0.01
    %v1777 = vmul.f32 %v1610, 0.01
    %v1778 = vmul.f32 %v1612, 0.01
    %v1779 = vmul.f32 %v1614, 0.01
    %v1780 = vmul.f32 %v1618, 0.01
    %v1781 = vmul.f32 %v1620, 0.01
    %v1782 = vmul.f32 %v1622, 0.01
    %v1783 = vmul.f32 %v1624, 0.01
    %v1784 = vmul.f32 %v1628, 0.01
    %v1785 = vmul.f32 %v1630, 0.01
    %v1786 = vmul.f32 %v1632, 0.01
    %v1787 = vmul.f32 %v1634, 0.01
    %v1788 = vmul.f32 %v1638, 0.01
    %v1789 = vmul.f32 %v1640, 0.01
    %v1790 = vmul.f32 %v1642, 0.01
    %v1791 = vmul.f32 %v1644, 0.01
    %v1792 = vmul.f32 %v1648, 0.01
    %v1793 = vmul.f32 %v1650, 0.01
    %v1794 = vmul.f32 %v1652, 0.01
    %v1795 = vmul.f32 %v1654, 0.01
    %v1796 = vmul.f32 %v1658, 0.01
    %v1797 = vmul.f32 %v1660, 0.01
    %v1798 = vmul.f32 %v1662, 0.01
    %v1799 = vmul.f32 %v1664, 0.01
    %v1800 = vmul.f32 %v1668, 0.01
    %v1801 = vmul.f32 %v1670, 0.01
    %v1802 = vmul.f32 %v1672, 0.01
    %v1803 = vmul.f32 %v1674, 0.01
    %v1804 = vsel %vm1676, %v1518, %v1740
    %v1805 = vsel %vm1677, %v1520, %v1741
    %v1806 = vsel %vm1678, %v1522, %v1742
    %v1807 = vsel %vm1679, %v1524, %v1743
    %v1808 = vsel %vm1680, %v1528, %v1744
    %v1809 = vsel %vm1681, %v1530, %v1745
    %v1810 = vsel %vm1682, %v1532, %v1746
    %v1811 = vsel %vm1683, %v1534, %v1747
    %v1812 = vsel %vm1684, %v1538, %v1748
    %v1813 = vsel %vm1685, %v1540, %v1749
    %v1814 = vsel %vm1686, %v1542, %v1750
    %v1815 = vsel %vm1687, %v1544, %v1751
    %v1816 = vsel %vm1688, %v1548, %v1752
    %v1817 = vsel %vm1689, %v1550, %v1753
    %v1818 = vsel %vm1690, %v1552, %v1754
    %v1819 = vsel %vm1691, %v1554, %v1755
    %v1820 = vsel %vm1692, %v1558, %v1756
    %v1821 = vsel %vm1693, %v1560, %v1757
    %v1822 = vsel %vm1694, %v1562, %v1758
    %v1823 = vsel %vm1695, %v1564, %v1759
    %v1824 = vsel %vm1696, %v1568, %v1760
    %v1825 = vsel %vm1697, %v1570, %v1761
    %v1826 = vsel %vm1698, %v1572, %v1762
    %v1827 = vsel %vm1699, %v1574, %v1763
    %v1828 = vsel %vm1700, %v1578, %v1764
    %v1829 = vsel %vm1701, %v1580, %v1765
    %v1830 = vsel %vm1702, %v1582, %v1766
    %v1831 = vsel %vm1703, %v1584, %v1767
    %v1832 = vsel %vm1704, %v1588, %v1768
    %v1833 = vsel %vm1705, %v1590, %v1769
    %v1834 = vsel %vm1706, %v1592, %v1770
    %v1835 = vsel %vm1707, %v1594, %v1771
    %v1836 = vsel %vm1708, %v1598, %v1772
    %v1837 = vsel %vm1709, %v1600, %v1773
    %v1838 = vsel %vm1710, %v1602, %v1774
    %v1839 = vsel %vm1711, %v1604, %v1775
    %v1840 = vsel %vm1712, %v1608, %v1776
    %v1841 = vsel %vm1713, %v1610, %v1777
    %v1842 = vsel %vm1714, %v1612, %v1778
    %v1843 = vsel %vm1715, %v1614, %v1779
    %v1844 = vsel %vm1716, %v1618, %v1780
    %v1845 = vsel %vm1717, %v1620, %v1781
    %v1846 = vsel %vm1718, %v1622, %v1782
    %v1847 = vsel %vm1719, %v1624, %v1783
    %v1848 = vsel %vm1720, %v1628, %v1784
    %v1849 = vsel %vm1721, %v1630, %v1785
    %v1850 = vsel %vm1722, %v1632, %v1786
    %v1851 = vsel %vm1723, %v1634, %v1787
    %v1852 = vsel %vm1724, %v1638, %v1788
    %v1853 = vsel %vm1725, %v1640, %v1789
    %v1854 = vsel %vm1726, %v1642, %v1790
    %v1855 = vsel %vm1727, %v1644, %v1791
    %v1856 = vsel %vm1728, %v1648, %v1792
    %v1857 = vsel %vm1729, %v1650, %v1793
    %v1858 = vsel %vm1730, %v1652, %v1794
    %v1859 = vsel %vm1731, %v1654, %v1795
    %v1860 = vsel %vm1732, %v1658, %v1796
    %v1861 = vsel %vm1733, %v1660, %v1797
    %v1862 = vsel %vm1734, %v1662, %v1798
    %v1863 = vsel %vm1735, %v1664, %v1799
    %v1864 = vsel %vm1736, %v1668, %v1800
    %v1865 = vsel %vm1737, %v1670, %v1801
    %v1866 = vsel %vm1738, %v1672, %v1802
    %v1867 = vsel %vm1739, %v1674, %v1803
    %v1868 = vpack.c.bf16 %v1806, %v1804
    %v1869 = vpack.c.bf16 %v1807, %v1805
    %v1870 = vpack.c.bf16 %v1810, %v1808
    %v1871 = vpack.c.bf16 %v1811, %v1809
    %v1872 = vpack.c.bf16 %v1814, %v1812
    %v1873 = vpack.c.bf16 %v1815, %v1813
    %v1874 = vpack.c.bf16 %v1818, %v1816
    %v1875 = vpack.c.bf16 %v1819, %v1817
    %v1876 = vpack.c.bf16 %v1822, %v1820
    %v1877 = vpack.c.bf16 %v1823, %v1821
    %v1878 = vpack.c.bf16 %v1826, %v1824
    %v1879 = vpack.c.bf16 %v1827, %v1825
    %v1880 = vpack.c.bf16 %v1830, %v1828
    %v1881 = vpack.c.bf16 %v1831, %v1829
    %v1882 = vpack.c.bf16 %v1834, %v1832
    %v1883 = vpack.c.bf16 %v1835, %v1833
    %v1884 = vpack.c.bf16 %v1838, %v1836
    %v1885 = vpack.c.bf16 %v1839, %v1837
    %v1886 = vpack.c.bf16 %v1842, %v1840
    %v1887 = vpack.c.bf16 %v1843, %v1841
    %v1888 = vpack.c.bf16 %v1846, %v1844
    %v1889 = vpack.c.bf16 %v1847, %v1845
    %v1890 = vpack.c.bf16 %v1850, %v1848
    %v1891 = vpack.c.bf16 %v1851, %v1849
    %v1892 = vpack.c.bf16 %v1854, %v1852
    %v1893 = vpack.c.bf16 %v1855, %v1853
    %v1894 = vpack.c.bf16 %v1858, %v1856
    %v1895 = vpack.c.bf16 %v1859, %v1857
    %v1896 = vpack.c.bf16 %v1862, %v1860
    %v1897 = vpack.c.bf16 %v1863, %v1861
    %v1898 = vpack.c.bf16 %v1866, %v1864
    %v1899 = vpack.c.bf16 %v1867, %v1865
    %v1900 = vld [vmem:[#allocation4] sm:$0xff]
    %v1901 = vld [vmem:[#allocation4 + $0x8] sm:$0xff]
    %v1902 = vld [vmem:[#allocation4 + $0x10] sm:$0xff]
    %v1903 = vld [vmem:[#allocation4 + $0x18] sm:$0xff]
    %v1904 = vld [vmem:[#allocation4 + $0x20] sm:$0xff]
    %v1905 = vld [vmem:[#allocation4 + $0x28] sm:$0xff]
    %v1906 = vld [vmem:[#allocation4 + $0x30] sm:$0xff]
    %v1907 = vld [vmem:[#allocation4 + $0x38] sm:$0xff]
    %v1908 = vld [vmem:[#allocation4 + $0x40] sm:$0xff]
    %v1909 = vld [vmem:[#allocation4 + $0x48] sm:$0xff]
    %v1910 = vld [vmem:[#allocation4 + $0x50] sm:$0xff]
    %v1911 = vld [vmem:[#allocation4 + $0x58] sm:$0xff]
    %v1912 = vld [vmem:[#allocation4 + $0x60] sm:$0xff]
    %v1913 = vld [vmem:[#allocation4 + $0x68] sm:$0xff]
    %v1914 = vld [vmem:[#allocation4 + $0x70] sm:$0xff]
    %v1915 = vld [vmem:[#allocation4 + $0x78] sm:$0xff]
    %v1916 = vld [vmem:[#allocation4 + $0x80] sm:$0xff]
    %v1917 = vld [vmem:[#allocation4 + $0x88] sm:$0xff]
    %v1918 = vld [vmem:[#allocation4 + $0x90] sm:$0xff]
    %v1919 = vld [vmem:[#allocation4 + $0x98] sm:$0xff]
    %v1920 = vld [vmem:[#allocation4 + $0xa0] sm:$0xff]
    %v1921 = vld [vmem:[#allocation4 + $0xa8] sm:$0xff]
    %v1922 = vld [vmem:[#allocation4 + $0xb0] sm:$0xff]
    %v1923 = vld [vmem:[#allocation4 + $0xb8] sm:$0xff]
    %v1924 = vld [vmem:[#allocation4 + $0xc0] sm:$0xff]
    %v1925 = vld [vmem:[#allocation4 + $0xc8] sm:$0xff]
    %v1926 = vld [vmem:[#allocation4 + $0xd0] sm:$0xff]
    %v1927 = vld [vmem:[#allocation4 + $0xd8] sm:$0xff]
    %v1928 = vld [vmem:[#allocation4 + $0xe0] sm:$0xff]
    %v1929 = vld [vmem:[#allocation4 + $0xe8] sm:$0xff]
    %v1930 = vld [vmem:[#allocation4 + $0xf0] sm:$0xff]
    %v1931 = vld [vmem:[#allocation4 + $0xf8] sm:$0xff]
    %v1932 = vld [vmem:[%s8] sm:$0x3]
    %v1934 = vlaneseq
    %v1935 = vshrl.u32 %v1934, 7
    %v1936 = vsub.s32 0, %v1935
    %v1937 = vrot.slane %v1932, %v1936
    %v1938 = vlaneseq
    %v1939 = vshrl.u32 %v1938, 7
    %v1940 = vsub.s32 1, %v1939
    %v1941 = vrot.slane %v1932, %v1940
    %v1976 = vunpack.c.l.b16 %v1900
    %v1977 = vunpack.c.h.b16 %v1900
    %v1978 = vunpack.c.l.b16 %v1901
    %v1979 = vunpack.c.h.b16 %v1901
    %v1980 = vunpack.c.l.b16 %v1902
    %v1981 = vunpack.c.h.b16 %v1902
    %v1982 = vunpack.c.l.b16 %v1903
    %v1983 = vunpack.c.h.b16 %v1903
    %v1984 = vunpack.c.l.b16 %v1904
    %v1985 = vunpack.c.h.b16 %v1904
    %v1986 = vunpack.c.l.b16 %v1905
    %v1987 = vunpack.c.h.b16 %v1905
    %v1988 = vunpack.c.l.b16 %v1906
    %v1989 = vunpack.c.h.b16 %v1906
    %v1990 = vunpack.c.l.b16 %v1907
    %v1991 = vunpack.c.h.b16 %v1907
    %v1992 = vunpack.c.l.b16 %v1908
    %v1993 = vunpack.c.h.b16 %v1908
    %v1994 = vunpack.c.l.b16 %v1909
    %v1995 = vunpack.c.h.b16 %v1909
    %v1996 = vunpack.c.l.b16 %v1910
    %v1997 = vunpack.c.h.b16 %v1910
    %v1998 = vunpack.c.l.b16 %v1911
    %v1999 = vunpack.c.h.b16 %v1911
    %v2000 = vunpack.c.l.b16 %v1912
    %v2001 = vunpack.c.h.b16 %v1912
    %v2002 = vunpack.c.l.b16 %v1913
    %v2003 = vunpack.c.h.b16 %v1913
    %v2004 = vunpack.c.l.b16 %v1914
    %v2005 = vunpack.c.h.b16 %v1914
    %v2006 = vunpack.c.l.b16 %v1915
    %v2007 = vunpack.c.h.b16 %v1915
    %v2008 = vunpack.c.l.b16 %v1916
    %v2009 = vunpack.c.h.b16 %v1916
    %v2010 = vunpack.c.l.b16 %v1917
    %v2011 = vunpack.c.h.b16 %v1917
    %v2012 = vunpack.c.l.b16 %v1918
    %v2013 = vunpack.c.h.b16 %v1918
    %v2014 = vunpack.c.l.b16 %v1919
    %v2015 = vunpack.c.h.b16 %v1919
    %v2016 = vunpack.c.l.b16 %v1920
    %v2017 = vunpack.c.h.b16 %v1920
    %v2018 = vunpack.c.l.b16 %v1921
    %v2019 = vunpack.c.h.b16 %v1921
    %v2020 = vunpack.c.l.b16 %v1922
    %v2021 = vunpack.c.h.b16 %v1922
    %v2022 = vunpack.c.l.b16 %v1923
    %v2023 = vunpack.c.h.b16 %v1923
    %v2024 = vunpack.c.l.b16 %v1924
    %v2025 = vunpack.c.h.b16 %v1924
    %v2026 = vunpack.c.l.b16 %v1925
    %v2027 = vunpack.c.h.b16 %v1925
    %v2028 = vunpack.c.l.b16 %v1926
    %v2029 = vunpack.c.h.b16 %v1926
    %v2030 = vunpack.c.l.b16 %v1927
    %v2031 = vunpack.c.h.b16 %v1927
    %v2032 = vunpack.c.l.b16 %v1928
    %v2033 = vunpack.c.h.b16 %v1928
    %v2034 = vunpack.c.l.b16 %v1929
    %v2035 = vunpack.c.h.b16 %v1929
    %v2036 = vunpack.c.l.b16 %v1930
    %v2037 = vunpack.c.h.b16 %v1930
    %v2038 = vunpack.c.l.b16 %v1931
    %v2039 = vunpack.c.h.b16 %v1931
    %v2040 = vpack.c.b16 %v1978, %v1976
    %v2041 = vpack.c.b16 %v1979, %v1977
    %v2042 = vpack.c.b16 %v1982, %v1980
    %v2043 = vpack.c.b16 %v1983, %v1981
    %v2044 = vpack.c.b16 %v1986, %v1984
    %v2045 = vpack.c.b16 %v1987, %v1985
    %v2046 = vpack.c.b16 %v1990, %v1988
    %v2047 = vpack.c.b16 %v1991, %v1989
    %v2048 = vpack.c.b16 %v1994, %v1992
    %v2049 = vpack.c.b16 %v1995, %v1993
    %v2050 = vpack.c.b16 %v1998, %v1996
    %v2051 = vpack.c.b16 %v1999, %v1997
    %v2052 = vpack.c.b16 %v2002, %v2000
    %v2053 = vpack.c.b16 %v2003, %v2001
    %v2054 = vpack.c.b16 %v2006, %v2004
    %v2055 = vpack.c.b16 %v2007, %v2005
    %v2056 = vpack.c.b16 %v2010, %v2008
    %v2057 = vpack.c.b16 %v2011, %v2009
    %v2058 = vpack.c.b16 %v2014, %v2012
    %v2059 = vpack.c.b16 %v2015, %v2013
    %v2060 = vpack.c.b16 %v2018, %v2016
    %v2061 = vpack.c.b16 %v2019, %v2017
    %v2062 = vpack.c.b16 %v2022, %v2020
    %v2063 = vpack.c.b16 %v2023, %v2021
    %v2064 = vpack.c.b16 %v2026, %v2024
    %v2065 = vpack.c.b16 %v2027, %v2025
    %v2066 = vpack.c.b16 %v2030, %v2028
    %v2067 = vpack.c.b16 %v2031, %v2029
    %v2068 = vpack.c.b16 %v2034, %v2032
    %v2069 = vpack.c.b16 %v2035, %v2033
    %v2070 = vpack.c.b16 %v2038, %v2036
    %v2071 = vpack.c.b16 %v2039, %v2037
    %2104 = vmatprep.subr.bf16.mxu0 %v2041
    %2105 = vmatpush1.bf16.msra.mxu0 %v2040
    %2106 = vmatprep.subr.bf16.mxu0 %v2043
    %2107 = vmatpush1.bf16.msra.mxu0 %v2042
    %2108 = vmatprep.subr.bf16.mxu0 %v2045
    %2109 = vmatpush1.bf16.msra.mxu0 %v2044
    %2110 = vmatprep.subr.bf16.mxu0 %v2047
    %2111 = vmatpush1.bf16.msra.mxu0 %v2046
    %2112 = vmatprep.subr.bf16.mxu0 %v2049
    %2113 = vmatpush1.bf16.msra.mxu0 %v2048
    %2114 = vmatprep.subr.bf16.mxu0 %v2051
    %2115 = vmatpush1.bf16.msra.mxu0 %v2050
    %2116 = vmatprep.subr.bf16.mxu0 %v2053
    %2117 = vmatpush1.bf16.msra.mxu0 %v2052
    %2118 = vmatprep.subr.bf16.mxu0 %v2055
    %2119 = vmatpush1.bf16.msra.mxu0 %v2054
    %2120 = vmatprep.subr.bf16.mxu0 %v2057
    %2121 = vmatpush1.bf16.msra.mxu0 %v2056
    %2122 = vmatprep.subr.bf16.mxu0 %v2059
    %2123 = vmatpush1.bf16.msra.mxu0 %v2058
    %2124 = vmatprep.subr.bf16.mxu0 %v2061
    %2125 = vmatpush1.bf16.msra.mxu0 %v2060
    %2126 = vmatprep.subr.bf16.mxu0 %v2063
    %2127 = vmatpush1.bf16.msra.mxu0 %v2062
    %2128 = vmatprep.subr.bf16.mxu0 %v2065
    %2129 = vmatpush1.bf16.msra.mxu0 %v2064
    %2130 = vmatprep.subr.bf16.mxu0 %v2067
    %2131 = vmatpush1.bf16.msra.mxu0 %v2066
    %2132 = vmatprep.subr.bf16.mxu0 %v2069
    %2133 = vmatpush1.bf16.msra.mxu0 %v2068
    %2134 = vmatprep.subr.bf16.mxu0 %v2071
    %2135 = vmatpush1.bf16.msra.mxu0 %v2070
    %2136 = vmatprep.mubr.bf16.mxu0 %v1869
    %2137 = vmatmul.mubr.bf16.gmra.mrb[0].mxu0 %v1868
    %v2138 = vpop.f32.mrb[0].mxu0
    %v2139 = vadd.f32 %v1937, %v2138
    %v2140 = vpop.f32.mrb[0].mxu0
    %v2141 = vadd.f32 %v1941, %v2140
    %v2142 = vpop.f32.mrb[0].mxu0
    %v2143 = vadd.f32 %v1937, %v2142
    %v2144 = vpop.f32.mrb[0].mxu0
    %v2145 = vadd.f32 %v1941, %v2144
    %2146 = vmatprep.mubr.bf16.mxu0 %v1871
    %2147 = vmatmul.mubr.bf16.gmra.mrb[0].mxu0 %v1870
    %v2148 = vpop.f32.mrb[0].mxu0
    %v2149 = vadd.f32 %v1937, %v2148
    %v2150 = vpop.f32.mrb[0].mxu0
    %v2151 = vadd.f32 %v1941, %v2150
    %v2152 = vpop.f32.mrb[0].mxu0
    %v2153 = vadd.f32 %v1937, %v2152
    %v2154 = vpop.f32.mrb[0].mxu0
    %v2155 = vadd.f32 %v1941, %v2154
    %2156 = vmatprep.mubr.bf16.mxu0 %v1873
    %2157 = vmatmul.mubr.bf16.gmra.mrb[0].mxu0 %v1872
    %v2158 = vpop.f32.mrb[0].mxu0
    %v2159 = vadd.f32 %v1937, %v2158
    %v2160 = vpop.f32.mrb[0].mxu0
    %v2161 = vadd.f32 %v1941, %v2160
    %v2162 = vpop.f32.mrb[0].mxu0
    %v2163 = vadd.f32 %v1937, %v2162
    %v2164 = vpop.f32.mrb[0].mxu0
    %v2165 = vadd.f32 %v1941, %v2164
    %2166 = vmatprep.mubr.bf16.mxu0 %v1875
    %2167 = vmatmul.mubr.bf16.gmra.mrb[0].mxu0 %v1874
    %v2168 = vpop.f32.mrb[0].mxu0
    %v2169 = vadd.f32 %v1937, %v2168
    %v2170 = vpop.f32.mrb[0].mxu0
    %v2171 = vadd.f32 %v1941, %v2170
    %v2172 = vpop.f32.mrb[0].mxu0
    %v2173 = vadd.f32 %v1937, %v2172
    %v2174 = vpop.f32.mrb[0].mxu0
    %v2175 = vadd.f32 %v1941, %v2174
    %2176 = vmatprep.mubr.bf16.mxu0 %v1877
    %2177 = vmatmul.mubr.bf16.gmra.mrb[0].mxu0 %v1876
    %v2178 = vpop.f32.mrb[0].mxu0
    %v2179 = vadd.f32 %v1937, %v2178
    %v2180 = vpop.f32.mrb[0].mxu0
    %v2181 = vadd.f32 %v1941, %v2180
    %v2182 = vpop.f32.mrb[0].mxu0
    %v2183 = vadd.f32 %v1937, %v2182
    %v2184 = vpop.f32.mrb[0].mxu0
    %v2185 = vadd.f32 %v1941, %v2184
    %2186 = vmatprep.mubr.bf16.mxu0 %v1879
    %2187 = vmatmul.mubr.bf16.gmra.mrb[0].mxu0 %v1878
    %v2188 = vpop.f32.mrb[0].mxu0
    %v2189 = vadd.f32 %v1937, %v2188
    %v2190 = vpop.f32.mrb[0].mxu0
    %v2191 = vadd.f32 %v1941, %v2190
    %v2192 = vpop.f32.mrb[0].mxu0
    %v2193 = vadd.f32 %v1937, %v2192
    %v2194 = vpop.f32.mrb[0].mxu0
    %v2195 = vadd.f32 %v1941, %v2194
    %2196 = vmatprep.mubr.bf16.mxu0 %v1881
    %2197 = vmatmul.mubr.bf16.gmra.mrb[0].mxu0 %v1880
    %v2198 = vpop.f32.mrb[0].mxu0
    %v2199 = vadd.f32 %v1937, %v2198
    %v2200 = vpop.f32.mrb[0].mxu0
    %v2201 = vadd.f32 %v1941, %v2200
    %v2202 = vpop.f32.mrb[0].mxu0
    %v2203 = vadd.f32 %v1937, %v2202
    %v2204 = vpop.f32.mrb[0].mxu0
    %v2205 = vadd.f32 %v1941, %v2204
    %2206 = vmatprep.mubr.bf16.mxu0 %v1883
    %2207 = vmatmul.mubr.bf16.gmra.mrb[0].mxu0 %v1882
    %v2208 = vpop.f32.mrb[0].mxu0
    %v2209 = vadd.f32 %v1937, %v2208
    %v2210 = vpop.f32.mrb[0].mxu0
    %v2211 = vadd.f32 %v1941, %v2210
    %v2212 = vpop.f32.mrb[0].mxu0
    %v2213 = vadd.f32 %v1937, %v2212
    %v2214 = vpop.f32.mrb[0].mxu0
    %v2215 = vadd.f32 %v1941, %v2214
    %2216 = vmatprep.mubr.bf16.mxu0 %v1885
    %2217 = vmatmul.mubr.bf16.gmra.mrb[0].mxu0 %v1884
    %v2218 = vpop.f32.mrb[0].mxu0
    %v2219 = vadd.f32 %v1937, %v2218
    %v2220 = vpop.f32.mrb[0].mxu0
    %v2221 = vadd.f32 %v1941, %v2220
    %v2222 = vpop.f32.mrb[0].mxu0
    %v2223 = vadd.f32 %v1937, %v2222
    %v2224 = vpop.f32.mrb[0].mxu0
    %v2225 = vadd.f32 %v1941, %v2224
    %2226 = vmatprep.mubr.bf16.mxu0 %v1887
    %2227 = vmatmul.mubr.bf16.gmra.mrb[0].mxu0 %v1886
    %v2228 = vpop.f32.mrb[0].mxu0
    %v2229 = vadd.f32 %v1937, %v2228
    %v2230 = vpop.f32.mrb[0].mxu0
    %v2231 = vadd.f32 %v1941, %v2230
    %v2232 = vpop.f32.mrb[0].mxu0
    %v2233 = vadd.f32 %v1937, %v2232
    %v2234 = vpop.f32.mrb[0].mxu0
    %v2235 = vadd.f32 %v1941, %v2234
    %2236 = vmatprep.mubr.bf16.mxu0 %v1889
    %2237 = vmatmul.mubr.bf16.gmra.mrb[0].mxu0 %v1888
    %v2238 = vpop.f32.mrb[0].mxu0
    %v2239 = vadd.f32 %v1937, %v2238
    %v2240 = vpop.f32.mrb[0].mxu0
    %v2241 = vadd.f32 %v1941, %v2240
    %v2242 = vpop.f32.mrb[0].mxu0
    %v2243 = vadd.f32 %v1937, %v2242
    %v2244 = vpop.f32.mrb[0].mxu0
    %v2245 = vadd.f32 %v1941, %v2244
    %2246 = vmatprep.mubr.bf16.mxu0 %v1891
    %2247 = vmatmul.mubr.bf16.gmra.mrb[0].mxu0 %v1890
    %v2248 = vpop.f32.mrb[0].mxu0
    %v2249 = vadd.f32 %v1937, %v2248
    %v2250 = vpop.f32.mrb[0].mxu0
    %v2251 = vadd.f32 %v1941, %v2250
    %v2252 = vpop.f32.mrb[0].mxu0
    %v2253 = vadd.f32 %v1937, %v2252
    %v2254 = vpop.f32.mrb[0].mxu0
    %v2255 = vadd.f32 %v1941, %v2254
    %2256 = vmatprep.mubr.bf16.mxu0 %v1893
    %2257 = vmatmul.mubr.bf16.gmra.mrb[0].mxu0 %v1892
    %v2258 = vpop.f32.mrb[0].mxu0
    %v2259 = vadd.f32 %v1937, %v2258
    %v2260 = vpop.f32.mrb[0].mxu0
    %v2261 = vadd.f32 %v1941, %v2260
    %v2262 = vpop.f32.mrb[0].mxu0
    %v2263 = vadd.f32 %v1937, %v2262
    %v2264 = vpop.f32.mrb[0].mxu0
    %v2265 = vadd.f32 %v1941, %v2264
    %2266 = vmatprep.mubr.bf16.mxu0 %v1895
    %2267 = vmatmul.mubr.bf16.gmra.mrb[0].mxu0 %v1894
    %v2268 = vpop.f32.mrb[0].mxu0
    %v2269 = vadd.f32 %v1937, %v2268
    %v2270 = vpop.f32.mrb[0].mxu0
    %v2271 = vadd.f32 %v1941, %v2270
    %v2272 = vpop.f32.mrb[0].mxu0
    %v2273 = vadd.f32 %v1937, %v2272
    %v2274 = vpop.f32.mrb[0].mxu0
    %v2275 = vadd.f32 %v1941, %v2274
    %2276 = vmatprep.mubr.bf16.mxu0 %v1897
    %2277 = vmatmul.mubr.bf16.gmra.mrb[0].mxu0 %v1896
    %v2278 = vpop.f32.mrb[0].mxu0
    %v2279 = vadd.f32 %v1937, %v2278
    %v2280 = vpop.f32.mrb[0].mxu0
    %v2281 = vadd.f32 %v1941, %v2280
    %v2282 = vpop.f32.mrb[0].mxu0
    %v2283 = vadd.f32 %v1937, %v2282
    %v2284 = vpop.f32.mrb[0].mxu0
    %v2285 = vadd.f32 %v1941, %v2284
    %2286 = vmatprep.mubr.bf16.mxu0 %v1899
    %2287 = vmatmul.mubr.bf16.gmra.mrb[0].mxu0 %v1898
    %v2288 = vpop.f32.mrb[0].mxu0
    %v2289 = vadd.f32 %v1937, %v2288
    %v2290 = vpop.f32.mrb[0].mxu0
    %v2291 = vadd.f32 %v1941, %v2290
    %v2292 = vpop.f32.mrb[0].mxu0
    %v2293 = vadd.f32 %v1937, %v2292
    %v2294 = vpop.f32.mrb[0].mxu0
    %v2295 = vadd.f32 %v1941, %v2294
    %2296 = vdwg.mxu0
    %vm2297 = vcmp.gt.f32.partialorder %v2139, 0.0
    %vm2298 = vcmp.gt.f32.partialorder %v2141, 0.0
    %vm2299 = vcmp.gt.f32.partialorder %v2143, 0.0
    %vm2300 = vcmp.gt.f32.partialorder %v2145, 0.0
    %vm2301 = vcmp.gt.f32.partialorder %v2149, 0.0
    %vm2302 = vcmp.gt.f32.partialorder %v2151, 0.0
    %vm2303 = vcmp.gt.f32.partialorder %v2153, 0.0
    %vm2304 = vcmp.gt.f32.partialorder %v2155, 0.0
    %vm2305 = vcmp.gt.f32.partialorder %v2159, 0.0
    %vm2306 = vcmp.gt.f32.partialorder %v2161, 0.0
    %vm2307 = vcmp.gt.f32.partialorder %v2163, 0.0
    %vm2308 = vcmp.gt.f32.partialorder %v2165, 0.0
    %vm2309 = vcmp.gt.f32.partialorder %v2169, 0.0
    %vm2310 = vcmp.gt.f32.partialorder %v2171, 0.0
    %vm2311 = vcmp.gt.f32.partialorder %v2173, 0.0
    %vm2312 = vcmp.gt.f32.partialorder %v2175, 0.0
    %vm2313 = vcmp.gt.f32.partialorder %v2179, 0.0
    %vm2314 = vcmp.gt.f32.partialorder %v2181, 0.0
    %vm2315 = vcmp.gt.f32.partialorder %v2183, 0.0
    %vm2316 = vcmp.gt.f32.partialorder %v2185, 0.0
    %vm2317 = vcmp.gt.f32.partialorder %v2189, 0.0
    %vm2318 = vcmp.gt.f32.partialorder %v2191, 0.0
    %vm2319 = vcmp.gt.f32.partialorder %v2193, 0.0
    %vm2320 = vcmp.gt.f32.partialorder %v2195, 0.0
    %vm2321 = vcmp.gt.f32.partialorder %v2199, 0.0
    %vm2322 = vcmp.gt.f32.partialorder %v2201, 0.0
    %vm2323 = vcmp.gt.f32.partialorder %v2203, 0.0
    %vm2324 = vcmp.gt.f32.partialorder %v2205, 0.0
    %vm2325 = vcmp.gt.f32.partialorder %v2209, 0.0
    %vm2326 = vcmp.gt.f32.partialorder %v2211, 0.0
    %vm2327 = vcmp.gt.f32.partialorder %v2213, 0.0
    %vm2328 = vcmp.gt.f32.partialorder %v2215, 0.0
    %vm2329 = vcmp.gt.f32.partialorder %v2219, 0.0
    %vm2330 = vcmp.gt.f32.partialorder %v2221, 0.0
    %vm2331 = vcmp.gt.f32.partialorder %v2223, 0.0
    %vm2332 = vcmp.gt.f32.partialorder %v2225, 0.0
    %vm2333 = vcmp.gt.f32.partialorder %v2229, 0.0
    %vm2334 = vcmp.gt.f32.partialorder %v2231, 0.0
    %vm2335 = vcmp.gt.f32.partialorder %v2233, 0.0
    %vm2336 = vcmp.gt.f32.partialorder %v2235, 0.0
    %vm2337 = vcmp.gt.f32.partialorder %v2239, 0.0
    %vm2338 = vcmp.gt.f32.partialorder %v2241, 0.0
    %vm2339 = vcmp.gt.f32.partialorder %v2243, 0.0
    %vm2340 = vcmp.gt.f32.partialorder %v2245, 0.0
    %vm2341 = vcmp.gt.f32.partialorder %v2249, 0.0
    %vm2342 = vcmp.gt.f32.partialorder %v2251, 0.0
    %vm2343 = vcmp.gt.f32.partialorder %v2253, 0.0
    %vm2344 = vcmp.gt.f32.partialorder %v2255, 0.0
    %vm2345 = vcmp.gt.f32.partialorder %v2259, 0.0
    %vm2346 = vcmp.gt.f32.partialorder %v2261, 0.0
    %vm2347 = vcmp.gt.f32.partialorder %v2263, 0.0
    %vm2348 = vcmp.gt.f32.partialorder %v2265, 0.0
    %vm2349 = vcmp.gt.f32.partialorder %v2269, 0.0
    %vm2350 = vcmp.gt.f32.partialorder %v2271, 0.0
    %vm2351 = vcmp.gt.f32.partialorder %v2273, 0.0
    %vm2352 = vcmp.gt.f32.partialorder %v2275, 0.0
    %vm2353 = vcmp.gt.f32.partialorder %v2279, 0.0
    %vm2354 = vcmp.gt.f32.partialorder %v2281, 0.0
    %vm2355 = vcmp.gt.f32.partialorder %v2283, 0.0
    %vm2356 = vcmp.gt.f32.partialorder %v2285, 0.0
    %vm2357 = vcmp.gt.f32.partialorder %v2289, 0.0
    %vm2358 = vcmp.gt.f32.partialorder %v2291, 0.0
    %vm2359 = vcmp.gt.f32.partialorder %v2293, 0.0
    %vm2360 = vcmp.gt.f32.partialorder %v2295, 0.0
    %v2361 = vmul.f32 %v2139, 0.01
    %v2362 = vmul.f32 %v2141, 0.01
    %v2363 = vmul.f32 %v2143, 0.01
    %v2364 = vmul.f32 %v2145, 0.01
    %v2365 = vmul.f32 %v2149, 0.01
    %v2366 = vmul.f32 %v2151, 0.01
    %v2367 = vmul.f32 %v2153, 0.01
    %v2368 = vmul.f32 %v2155, 0.01
    %v2369 = vmul.f32 %v2159, 0.01
    %v2370 = vmul.f32 %v2161, 0.01
    %v2371 = vmul.f32 %v2163, 0.01
    %v2372 = vmul.f32 %v2165, 0.01
    %v2373 = vmul.f32 %v2169, 0.01
    %v2374 = vmul.f32 %v2171, 0.01
    %v2375 = vmul.f32 %v2173, 0.01
    %v2376 = vmul.f32 %v2175, 0.01
    %v2377 = vmul.f32 %v2179, 0.01
    %v2378 = vmul.f32 %v2181, 0.01
    %v2379 = vmul.f32 %v2183, 0.01
    %v2380 = vmul.f32 %v2185, 0.01
    %v2381 = vmul.f32 %v2189, 0.01
    %v2382 = vmul.f32 %v2191, 0.01
    %v2383 = vmul.f32 %v2193, 0.01
    %v2384 = vmul.f32 %v2195, 0.01
    %v2385 = vmul.f32 %v2199, 0.01
    %v2386 = vmul.f32 %v2201, 0.01
    %v2387 = vmul.f32 %v2203, 0.01
    %v2388 = vmul.f32 %v2205, 0.01
    %v2389 = vmul.f32 %v2209, 0.01
    %v2390 = vmul.f32 %v2211, 0.01
    %v2391 = vmul.f32 %v2213, 0.01
    %v2392 = vmul.f32 %v2215, 0.01
    %v2393 = vmul.f32 %v2219, 0.01
    %v2394 = vmul.f32 %v2221, 0.01
    %v2395 = vmul.f32 %v2223, 0.01
    %v2396 = vmul.f32 %v2225, 0.01
    %v2397 = vmul.f32 %v2229, 0.01
    %v2398 = vmul.f32 %v2231, 0.01
    %v2399 = vmul.f32 %v2233, 0.01
    %v2400 = vmul.f32 %v2235, 0.01
    %v2401 = vmul.f32 %v2239, 0.01
    %v2402 = vmul.f32 %v2241, 0.01
    %v2403 = vmul.f32 %v2243, 0.01
    %v2404 = vmul.f32 %v2245, 0.01
    %v2405 = vmul.f32 %v2249, 0.01
    %v2406 = vmul.f32 %v2251, 0.01
    %v2407 = vmul.f32 %v2253, 0.01
    %v2408 = vmul.f32 %v2255, 0.01
    %v2409 = vmul.f32 %v2259, 0.01
    %v2410 = vmul.f32 %v2261, 0.01
    %v2411 = vmul.f32 %v2263, 0.01
    %v2412 = vmul.f32 %v2265, 0.01
    %v2413 = vmul.f32 %v2269, 0.01
    %v2414 = vmul.f32 %v2271, 0.01
    %v2415 = vmul.f32 %v2273, 0.01
    %v2416 = vmul.f32 %v2275, 0.01
    %v2417 = vmul.f32 %v2279, 0.01
    %v2418 = vmul.f32 %v2281, 0.01
    %v2419 = vmul.f32 %v2283, 0.01
    %v2420 = vmul.f32 %v2285, 0.01
    %v2421 = vmul.f32 %v2289, 0.01
    %v2422 = vmul.f32 %v2291, 0.01
    %v2423 = vmul.f32 %v2293, 0.01
    %v2424 = vmul.f32 %v2295, 0.01
    %v2425 = vsel %vm2297, %v2139, %v2361
    %v2426 = vsel %vm2298, %v2141, %v2362
    %v2427 = vsel %vm2299, %v2143, %v2363
    %v2428 = vsel %vm2300, %v2145, %v2364
    %v2429 = vsel %vm2301, %v2149, %v2365
    %v2430 = vsel %vm2302, %v2151, %v2366
    %v2431 = vsel %vm2303, %v2153, %v2367
    %v2432 = vsel %vm2304, %v2155, %v2368
    %v2433 = vsel %vm2305, %v2159, %v2369
    %v2434 = vsel %vm2306, %v2161, %v2370
    %v2435 = vsel %vm2307, %v2163, %v2371
    %v2436 = vsel %vm2308, %v2165, %v2372
    %v2437 = vsel %vm2309, %v2169, %v2373
    %v2438 = vsel %vm2310, %v2171, %v2374
    %v2439 = vsel %vm2311, %v2173, %v2375
    %v2440 = vsel %vm2312, %v2175, %v2376
    %v2441 = vsel %vm2313, %v2179, %v2377
    %v2442 = vsel %vm2314, %v2181, %v2378
    %v2443 = vsel %vm2315, %v2183, %v2379
    %v2444 = vsel %vm2316, %v2185, %v2380
    %v2445 = vsel %vm2317, %v2189, %v2381
    %v2446 = vsel %vm2318, %v2191, %v2382
    %v2447 = vsel %vm2319, %v2193, %v2383
    %v2448 = vsel %vm2320, %v2195, %v2384
    %v2449 = vsel %vm2321, %v2199, %v2385
    %v2450 = vsel %vm2322, %v2201, %v2386
    %v2451 = vsel %vm2323, %v2203, %v2387
    %v2452 = vsel %vm2324, %v2205, %v2388
    %v2453 = vsel %vm2325, %v2209, %v2389
    %v2454 = vsel %vm2326, %v2211, %v2390
    %v2455 = vsel %vm2327, %v2213, %v2391
    %v2456 = vsel %vm2328, %v2215, %v2392
    %v2457 = vsel %vm2329, %v2219, %v2393
    %v2458 = vsel %vm2330, %v2221, %v2394
    %v2459 = vsel %vm2331, %v2223, %v2395
    %v2460 = vsel %vm2332, %v2225, %v2396
    %v2461 = vsel %vm2333, %v2229, %v2397
    %v2462 = vsel %vm2334, %v2231, %v2398
    %v2463 = vsel %vm2335, %v2233, %v2399
    %v2464 = vsel %vm2336, %v2235, %v2400
    %v2465 = vsel %vm2337, %v2239, %v2401
    %v2466 = vsel %vm2338, %v2241, %v2402
    %v2467 = vsel %vm2339, %v2243, %v2403
    %v2468 = vsel %vm2340, %v2245, %v2404
    %v2469 = vsel %vm2341, %v2249, %v2405
    %v2470 = vsel %vm2342, %v2251, %v2406
    %v2471 = vsel %vm2343, %v2253, %v2407
    %v2472 = vsel %vm2344, %v2255, %v2408
    %v2473 = vsel %vm2345, %v2259, %v2409
    %v2474 = vsel %vm2346, %v2261, %v2410
    %v2475 = vsel %vm2347, %v2263, %v2411
    %v2476 = vsel %vm2348, %v2265, %v2412
    %v2477 = vsel %vm2349, %v2269, %v2413
    %v2478 = vsel %vm2350, %v2271, %v2414
    %v2479 = vsel %vm2351, %v2273, %v2415
    %v2480 = vsel %vm2352, %v2275, %v2416
    %v2481 = vsel %vm2353, %v2279, %v2417
    %v2482 = vsel %vm2354, %v2281, %v2418
    %v2483 = vsel %vm2355, %v2283, %v2419
    %v2484 = vsel %vm2356, %v2285, %v2420
    %v2485 = vsel %vm2357, %v2289, %v2421
    %v2486 = vsel %vm2358, %v2291, %v2422
    %v2487 = vsel %vm2359, %v2293, %v2423
    %v2488 = vsel %vm2360, %v2295, %v2424
    %v2489 = vpack.c.bf16 %v2427, %v2425
    %v2490 = vpack.c.bf16 %v2428, %v2426
    %v2491 = vpack.c.bf16 %v2431, %v2429
    %v2492 = vpack.c.bf16 %v2432, %v2430
    %v2493 = vpack.c.bf16 %v2435, %v2433
    %v2494 = vpack.c.bf16 %v2436, %v2434
    %v2495 = vpack.c.bf16 %v2439, %v2437
    %v2496 = vpack.c.bf16 %v2440, %v2438
    %v2497 = vpack.c.bf16 %v2443, %v2441
    %v2498 = vpack.c.bf16 %v2444, %v2442
    %v2499 = vpack.c.bf16 %v2447, %v2445
    %v2500 = vpack.c.bf16 %v2448, %v2446
    %v2501 = vpack.c.bf16 %v2451, %v2449
    %v2502 = vpack.c.bf16 %v2452, %v2450
    %v2503 = vpack.c.bf16 %v2455, %v2453
    %v2504 = vpack.c.bf16 %v2456, %v2454
    %v2505 = vpack.c.bf16 %v2459, %v2457
    %v2506 = vpack.c.bf16 %v2460, %v2458
    %v2507 = vpack.c.bf16 %v2463, %v2461
    %v2508 = vpack.c.bf16 %v2464, %v2462
    %v2509 = vpack.c.bf16 %v2467, %v2465
    %v2510 = vpack.c.bf16 %v2468, %v2466
    %v2511 = vpack.c.bf16 %v2471, %v2469
    %v2512 = vpack.c.bf16 %v2472, %v2470
    %v2513 = vpack.c.bf16 %v2475, %v2473
    %v2514 = vpack.c.bf16 %v2476, %v2474
    %v2515 = vpack.c.bf16 %v2479, %v2477
    %v2516 = vpack.c.bf16 %v2480, %v2478
    %v2517 = vpack.c.bf16 %v2483, %v2481
    %v2518 = vpack.c.bf16 %v2484, %v2482
    %v2519 = vpack.c.bf16 %v2487, %v2485
    %v2520 = vpack.c.bf16 %v2488, %v2486
    %v2521 = vld [vmem:[#allocation6] sm:$0xff]
    %v2522 = vld [vmem:[#allocation6 + $0x8] sm:$0xff]
    %v2523 = vld [vmem:[#allocation6 + $0x10] sm:$0xff]
    %v2524 = vld [vmem:[#allocation6 + $0x18] sm:$0xff]
    %v2525 = vld [vmem:[#allocation6 + $0x20] sm:$0xff]
    %v2526 = vld [vmem:[#allocation6 + $0x28] sm:$0xff]
    %v2527 = vld [vmem:[#allocation6 + $0x30] sm:$0xff]
    %v2528 = vld [vmem:[#allocation6 + $0x38] sm:$0xff]
    %v2529 = vld [vmem:[#allocation6 + $0x40] sm:$0xff]
    %v2530 = vld [vmem:[#allocation6 + $0x48] sm:$0xff]
    %v2531 = vld [vmem:[#allocation6 + $0x50] sm:$0xff]
    %v2532 = vld [vmem:[#allocation6 + $0x58] sm:$0xff]
    %v2533 = vld [vmem:[#allocation6 + $0x60] sm:$0xff]
    %v2534 = vld [vmem:[#allocation6 + $0x68] sm:$0xff]
    %v2535 = vld [vmem:[#allocation6 + $0x70] sm:$0xff]
    %v2536 = vld [vmem:[#allocation6 + $0x78] sm:$0xff]
    %v2537 = vld [vmem:[#allocation6 + $0x80] sm:$0xff]
    %v2538 = vld [vmem:[#allocation6 + $0x88] sm:$0xff]
    %v2539 = vld [vmem:[#allocation6 + $0x90] sm:$0xff]
    %v2540 = vld [vmem:[#allocation6 + $0x98] sm:$0xff]
    %v2541 = vld [vmem:[#allocation6 + $0xa0] sm:$0xff]
    %v2542 = vld [vmem:[#allocation6 + $0xa8] sm:$0xff]
    %v2543 = vld [vmem:[#allocation6 + $0xb0] sm:$0xff]
    %v2544 = vld [vmem:[#allocation6 + $0xb8] sm:$0xff]
    %v2545 = vld [vmem:[#allocation6 + $0xc0] sm:$0xff]
    %v2546 = vld [vmem:[#allocation6 + $0xc8] sm:$0xff]
    %v2547 = vld [vmem:[#allocation6 + $0xd0] sm:$0xff]
    %v2548 = vld [vmem:[#allocation6 + $0xd8] sm:$0xff]
    %v2549 = vld [vmem:[#allocation6 + $0xe0] sm:$0xff]
    %v2550 = vld [vmem:[#allocation6 + $0xe8] sm:$0xff]
    %v2551 = vld [vmem:[#allocation6 + $0xf0] sm:$0xff]
    %v2552 = vld [vmem:[#allocation6 + $0xf8] sm:$0xff]
    %v2553 = vld [vmem:[%s10] sm:$0x3]
    %v2555 = vlaneseq
    %v2556 = vshrl.u32 %v2555, 7
    %v2557 = vsub.s32 0, %v2556
    %v2558 = vrot.slane %v2553, %v2557
    %v2559 = vlaneseq
    %v2560 = vshrl.u32 %v2559, 7
    %v2561 = vsub.s32 1, %v2560
    %v2562 = vrot.slane %v2553, %v2561
    %v2597 = vunpack.c.l.b16 %v2521
    %v2598 = vunpack.c.h.b16 %v2521
    %v2599 = vunpack.c.l.b16 %v2522
    %v2600 = vunpack.c.h.b16 %v2522
    %v2601 = vunpack.c.l.b16 %v2523
    %v2602 = vunpack.c.h.b16 %v2523
    %v2603 = vunpack.c.l.b16 %v2524
    %v2604 = vunpack.c.h.b16 %v2524
    %v2605 = vunpack.c.l.b16 %v2525
    %v2606 = vunpack.c.h.b16 %v2525
    %v2607 = vunpack.c.l.b16 %v2526
    %v2608 = vunpack.c.h.b16 %v2526
    %v2609 = vunpack.c.l.b16 %v2527
    %v2610 = vunpack.c.h.b16 %v2527
    %v2611 = vunpack.c.l.b16 %v2528
    %v2612 = vunpack.c.h.b16 %v2528
    %v2613 = vunpack.c.l.b16 %v2529
    %v2614 = vunpack.c.h.b16 %v2529
    %v2615 = vunpack.c.l.b16 %v2530
    %v2616 = vunpack.c.h.b16 %v2530
    %v2617 = vunpack.c.l.b16 %v2531
    %v2618 = vunpack.c.h.b16 %v2531
    %v2619 = vunpack.c.l.b16 %v2532
    %v2620 = vunpack.c.h.b16 %v2532
    %v2621 = vunpack.c.l.b16 %v2533
    %v2622 = vunpack.c.h.b16 %v2533
    %v2623 = vunpack.c.l.b16 %v2534
    %v2624 = vunpack.c.h.b16 %v2534
    %v2625 = vunpack.c.l.b16 %v2535
    %v2626 = vunpack.c.h.b16 %v2535
    %v2627 = vunpack.c.l.b16 %v2536
    %v2628 = vunpack.c.h.b16 %v2536
    %v2629 = vunpack.c.l.b16 %v2537
    %v2630 = vunpack.c.h.b16 %v2537
    %v2631 = vunpack.c.l.b16 %v2538
    %v2632 = vunpack.c.h.b16 %v2538
    %v2633 = vunpack.c.l.b16 %v2539
    %v2634 = vunpack.c.h.b16 %v2539
    %v2635 = vunpack.c.l.b16 %v2540
    %v2636 = vunpack.c.h.b16 %v2540
    %v2637 = vunpack.c.l.b16 %v2541
    %v2638 = vunpack.c.h.b16 %v2541
    %v2639 = vunpack.c.l.b16 %v2542
    %v2640 = vunpack.c.h.b16 %v2542
    %v2641 = vunpack.c.l.b16 %v2543
    %v2642 = vunpack.c.h.b16 %v2543
    %v2643 = vunpack.c.l.b16 %v2544
    %v2644 = vunpack.c.h.b16 %v2544
    %v2645 = vunpack.c.l.b16 %v2545
    %v2646 = vunpack.c.h.b16 %v2545
    %v2647 = vunpack.c.l.b16 %v2546
    %v2648 = vunpack.c.h.b16 %v2546
    %v2649 = vunpack.c.l.b16 %v2547
    %v2650 = vunpack.c.h.b16 %v2547
    %v2651 = vunpack.c.l.b16 %v2548
    %v2652 = vunpack.c.h.b16 %v2548
    %v2653 = vunpack.c.l.b16 %v2549
    %v2654 = vunpack.c.h.b16 %v2549
    %v2655 = vunpack.c.l.b16 %v2550
    %v2656 = vunpack.c.h.b16 %v2550
    %v2657 = vunpack.c.l.b16 %v2551
    %v2658 = vunpack.c.h.b16 %v2551
    %v2659 = vunpack.c.l.b16 %v2552
    %v2660 = vunpack.c.h.b16 %v2552
    %v2661 = vpack.c.b16 %v2599, %v2597
    %v2662 = vpack.c.b16 %v2600, %v2598
    %v2663 = vpack.c.b16 %v2603, %v2601
    %v2664 = vpack.c.b16 %v2604, %v2602
    %v2665 = vpack.c.b16 %v2607, %v2605
    %v2666 = vpack.c.b16 %v2608, %v2606
    %v2667 = vpack.c.b16 %v2611, %v2609
    %v2668 = vpack.c.b16 %v2612, %v2610
    %v2669 = vpack.c.b16 %v2615, %v2613
    %v2670 = vpack.c.b16 %v2616, %v2614
    %v2671 = vpack.c.b16 %v2619, %v2617
    %v2672 = vpack.c.b16 %v2620, %v2618
    %v2673 = vpack.c.b16 %v2623, %v2621
    %v2674 = vpack.c.b16 %v2624, %v2622
    %v2675 = vpack.c.b16 %v2627, %v2625
    %v2676 = vpack.c.b16 %v2628, %v2626
    %v2677 = vpack.c.b16 %v2631, %v2629
    %v2678 = vpack.c.b16 %v2632, %v2630
    %v2679 = vpack.c.b16 %v2635, %v2633
    %v2680 = vpack.c.b16 %v2636, %v2634
    %v2681 = vpack.c.b16 %v2639, %v2637
    %v2682 = vpack.c.b16 %v2640, %v2638
    %v2683 = vpack.c.b16 %v2643, %v2641
    %v2684 = vpack.c.b16 %v2644, %v2642
    %v2685 = vpack.c.b16 %v2647, %v2645
    %v2686 = vpack.c.b16 %v2648, %v2646
    %v2687 = vpack.c.b16 %v2651, %v2649
    %v2688 = vpack.c.b16 %v2652, %v2650
    %v2689 = vpack.c.b16 %v2655, %v2653
    %v2690 = vpack.c.b16 %v2656, %v2654
    %v2691 = vpack.c.b16 %v2659, %v2657
    %v2692 = vpack.c.b16 %v2660, %v2658
    %2725 = vmatprep.subr.bf16.mxu0 %v2662
    %2726 = vmatpush1.bf16.msra.mxu0 %v2661
    %2727 = vmatprep.subr.bf16.mxu0 %v2664
    %2728 = vmatpush1.bf16.msra.mxu0 %v2663
    %2729 = vmatprep.subr.bf16.mxu0 %v2666
    %2730 = vmatpush1.bf16.msra.mxu0 %v2665
    %2731 = vmatprep.subr.bf16.mxu0 %v2668
    %2732 = vmatpush1.bf16.msra.mxu0 %v2667
    %2733 = vmatprep.subr.bf16.mxu0 %v2670
    %2734 = vmatpush1.bf16.msra.mxu0 %v2669
    %2735 = vmatprep.subr.bf16.mxu0 %v2672
    %2736 = vmatpush1.bf16.msra.mxu0 %v2671
    %2737 = vmatprep.subr.bf16.mxu0 %v2674
    %2738 = vmatpush1.bf16.msra.mxu0 %v2673
    %2739 = vmatprep.subr.bf16.mxu0 %v2676
    %2740 = vmatpush1.bf16.msra.mxu0 %v2675
    %2741 = vmatprep.subr.bf16.mxu0 %v2678
    %2742 = vmatpush1.bf16.msra.mxu0 %v2677
    %2743 = vmatprep.subr.bf16.mxu0 %v2680
    %2744 = vmatpush1.bf16.msra.mxu0 %v2679
    %2745 = vmatprep.subr.bf16.mxu0 %v2682
    %2746 = vmatpush1.bf16.msra.mxu0 %v2681
    %2747 = vmatprep.subr.bf16.mxu0 %v2684
    %2748 = vmatpush1.bf16.msra.mxu0 %v2683
    %2749 = vmatprep.subr.bf16.mxu0 %v2686
    %2750 = vmatpush1.bf16.msra.mxu0 %v2685
    %2751 = vmatprep.subr.bf16.mxu0 %v2688
    %2752 = vmatpush1.bf16.msra.mxu0 %v2687
    %2753 = vmatprep.subr.bf16.mxu0 %v2690
    %2754 = vmatpush1.bf16.msra.mxu0 %v2689
    %2755 = vmatprep.subr.bf16.mxu0 %v2692
    %2756 = vmatpush1.bf16.msra.mxu0 %v2691
    %2757 = vmatprep.mubr.bf16.mxu0 %v2490
    %2758 = vmatmul.mubr.bf16.gmra.mrb[0].mxu0 %v2489
    %v2759 = vpop.f32.mrb[0].mxu0
    %v2760 = vadd.f32 %v2558, %v2759
    %v2761 = vpop.f32.mrb[0].mxu0
    %v2762 = vadd.f32 %v2562, %v2761
    %v2763 = vpop.f32.mrb[0].mxu0
    %v2764 = vadd.f32 %v2558, %v2763
    %v2765 = vpop.f32.mrb[0].mxu0
    %v2766 = vadd.f32 %v2562, %v2765
    %2767 = vmatprep.mubr.bf16.mxu0 %v2492
    %2768 = vmatmul.mubr.bf16.gmra.mrb[0].mxu0 %v2491
    %v2769 = vpop.f32.mrb[0].mxu0
    %v2770 = vadd.f32 %v2558, %v2769
    %v2771 = vpop.f32.mrb[0].mxu0
    %v2772 = vadd.f32 %v2562, %v2771
    %v2773 = vpop.f32.mrb[0].mxu0
    %v2774 = vadd.f32 %v2558, %v2773
    %v2775 = vpop.f32.mrb[0].mxu0
    %v2776 = vadd.f32 %v2562, %v2775
    %2777 = vmatprep.mubr.bf16.mxu0 %v2494
    %2778 = vmatmul.mubr.bf16.gmra.mrb[0].mxu0 %v2493
    %v2779 = vpop.f32.mrb[0].mxu0
    %v2780 = vadd.f32 %v2558, %v2779
    %v2781 = vpop.f32.mrb[0].mxu0
    %v2782 = vadd.f32 %v2562, %v2781
    %v2783 = vpop.f32.mrb[0].mxu0
    %v2784 = vadd.f32 %v2558, %v2783
    %v2785 = vpop.f32.mrb[0].mxu0
    %v2786 = vadd.f32 %v2562, %v2785
    %2787 = vmatprep.mubr.bf16.mxu0 %v2496
    %2788 = vmatmul.mubr.bf16.gmra.mrb[0].mxu0 %v2495
    %v2789 = vpop.f32.mrb[0].mxu0
    %v2790 = vadd.f32 %v2558, %v2789
    %v2791 = vpop.f32.mrb[0].mxu0
    %v2792 = vadd.f32 %v2562, %v2791
    %v2793 = vpop.f32.mrb[0].mxu0
    %v2794 = vadd.f32 %v2558, %v2793
    %v2795 = vpop.f32.mrb[0].mxu0
    %v2796 = vadd.f32 %v2562, %v2795
    %2797 = vmatprep.mubr.bf16.mxu0 %v2498
    %2798 = vmatmul.mubr.bf16.gmra.mrb[0].mxu0 %v2497
    %v2799 = vpop.f32.mrb[0].mxu0
    %v2800 = vadd.f32 %v2558, %v2799
    %v2801 = vpop.f32.mrb[0].mxu0
    %v2802 = vadd.f32 %v2562, %v2801
    %v2803 = vpop.f32.mrb[0].mxu0
    %v2804 = vadd.f32 %v2558, %v2803
    %v2805 = vpop.f32.mrb[0].mxu0
    %v2806 = vadd.f32 %v2562, %v2805
    %2807 = vmatprep.mubr.bf16.mxu0 %v2500
    %2808 = vmatmul.mubr.bf16.gmra.mrb[0].mxu0 %v2499
    %v2809 = vpop.f32.mrb[0].mxu0
    %v2810 = vadd.f32 %v2558, %v2809
    %v2811 = vpop.f32.mrb[0].mxu0
    %v2812 = vadd.f32 %v2562, %v2811
    %v2813 = vpop.f32.mrb[0].mxu0
    %v2814 = vadd.f32 %v2558, %v2813
    %v2815 = vpop.f32.mrb[0].mxu0
    %v2816 = vadd.f32 %v2562, %v2815
    %2817 = vmatprep.mubr.bf16.mxu0 %v2502
    %2818 = vmatmul.mubr.bf16.gmra.mrb[0].mxu0 %v2501
    %v2819 = vpop.f32.mrb[0].mxu0
    %v2820 = vadd.f32 %v2558, %v2819
    %v2821 = vpop.f32.mrb[0].mxu0
    %v2822 = vadd.f32 %v2562, %v2821
    %v2823 = vpop.f32.mrb[0].mxu0
    %v2824 = vadd.f32 %v2558, %v2823
    %v2825 = vpop.f32.mrb[0].mxu0
    %v2826 = vadd.f32 %v2562, %v2825
    %2827 = vmatprep.mubr.bf16.mxu0 %v2504
    %2828 = vmatmul.mubr.bf16.gmra.mrb[0].mxu0 %v2503
    %v2829 = vpop.f32.mrb[0].mxu0
    %v2830 = vadd.f32 %v2558, %v2829
    %v2831 = vpop.f32.mrb[0].mxu0
    %v2832 = vadd.f32 %v2562, %v2831
    %v2833 = vpop.f32.mrb[0].mxu0
    %v2834 = vadd.f32 %v2558, %v2833
    %v2835 = vpop.f32.mrb[0].mxu0
    %v2836 = vadd.f32 %v2562, %v2835
    %2837 = vmatprep.mubr.bf16.mxu0 %v2506
    %2838 = vmatmul.mubr.bf16.gmra.mrb[0].mxu0 %v2505
    %v2839 = vpop.f32.mrb[0].mxu0
    %v2840 = vadd.f32 %v2558, %v2839
    %v2841 = vpop.f32.mrb[0].mxu0
    %v2842 = vadd.f32 %v2562, %v2841
    %v2843 = vpop.f32.mrb[0].mxu0
    %v2844 = vadd.f32 %v2558, %v2843
    %v2845 = vpop.f32.mrb[0].mxu0
    %v2846 = vadd.f32 %v2562, %v2845
    %2847 = vmatprep.mubr.bf16.mxu0 %v2508
    %2848 = vmatmul.mubr.bf16.gmra.mrb[0].mxu0 %v2507
    %v2849 = vpop.f32.mrb[0].mxu0
    %v2850 = vadd.f32 %v2558, %v2849
    %v2851 = vpop.f32.mrb[0].mxu0
    %v2852 = vadd.f32 %v2562, %v2851
    %v2853 = vpop.f32.mrb[0].mxu0
    %v2854 = vadd.f32 %v2558, %v2853
    %v2855 = vpop.f32.mrb[0].mxu0
    %v2856 = vadd.f32 %v2562, %v2855
    %2857 = vmatprep.mubr.bf16.mxu0 %v2510
    %2858 = vmatmul.mubr.bf16.gmra.mrb[0].mxu0 %v2509
    %v2859 = vpop.f32.mrb[0].mxu0
    %v2860 = vadd.f32 %v2558, %v2859
    %v2861 = vpop.f32.mrb[0].mxu0
    %v2862 = vadd.f32 %v2562, %v2861
    %v2863 = vpop.f32.mrb[0].mxu0
    %v2864 = vadd.f32 %v2558, %v2863
    %v2865 = vpop.f32.mrb[0].mxu0
    %v2866 = vadd.f32 %v2562, %v2865
    %2867 = vmatprep.mubr.bf16.mxu0 %v2512
    %2868 = vmatmul.mubr.bf16.gmra.mrb[0].mxu0 %v2511
    %v2869 = vpop.f32.mrb[0].mxu0
    %v2870 = vadd.f32 %v2558, %v2869
    %v2871 = vpop.f32.mrb[0].mxu0
    %v2872 = vadd.f32 %v2562, %v2871
    %v2873 = vpop.f32.mrb[0].mxu0
    %v2874 = vadd.f32 %v2558, %v2873
    %v2875 = vpop.f32.mrb[0].mxu0
    %v2876 = vadd.f32 %v2562, %v2875
    %2877 = vmatprep.mubr.bf16.mxu0 %v2514
    %2878 = vmatmul.mubr.bf16.gmra.mrb[0].mxu0 %v2513
    %v2879 = vpop.f32.mrb[0].mxu0
    %v2880 = vadd.f32 %v2558, %v2879
    %v2881 = vpop.f32.mrb[0].mxu0
    %v2882 = vadd.f32 %v2562, %v2881
    %v2883 = vpop.f32.mrb[0].mxu0
    %v2884 = vadd.f32 %v2558, %v2883
    %v2885 = vpop.f32.mrb[0].mxu0
    %v2886 = vadd.f32 %v2562, %v2885
    %2887 = vmatprep.mubr.bf16.mxu0 %v2516
    %2888 = vmatmul.mubr.bf16.gmra.mrb[0].mxu0 %v2515
    %v2889 = vpop.f32.mrb[0].mxu0
    %v2890 = vadd.f32 %v2558, %v2889
    %v2891 = vpop.f32.mrb[0].mxu0
    %v2892 = vadd.f32 %v2562, %v2891
    %v2893 = vpop.f32.mrb[0].mxu0
    %v2894 = vadd.f32 %v2558, %v2893
    %v2895 = vpop.f32.mrb[0].mxu0
    %v2896 = vadd.f32 %v2562, %v2895
    %2897 = vmatprep.mubr.bf16.mxu0 %v2518
    %2898 = vmatmul.mubr.bf16.gmra.mrb[0].mxu0 %v2517
    %v2899 = vpop.f32.mrb[0].mxu0
    %v2900 = vadd.f32 %v2558, %v2899
    %v2901 = vpop.f32.mrb[0].mxu0
    %v2902 = vadd.f32 %v2562, %v2901
    %v2903 = vpop.f32.mrb[0].mxu0
    %v2904 = vadd.f32 %v2558, %v2903
    %v2905 = vpop.f32.mrb[0].mxu0
    %v2906 = vadd.f32 %v2562, %v2905
    %2907 = vmatprep.mubr.bf16.mxu0 %v2520
    %2908 = vmatmul.mubr.bf16.gmra.mrb[0].mxu0 %v2519
    %v2909 = vpop.f32.mrb[0].mxu0
    %v2910 = vadd.f32 %v2558, %v2909
    %v2911 = vpop.f32.mrb[0].mxu0
    %v2912 = vadd.f32 %v2562, %v2911
    %v2913 = vpop.f32.mrb[0].mxu0
    %v2914 = vadd.f32 %v2558, %v2913
    %v2915 = vpop.f32.mrb[0].mxu0
    %v2916 = vadd.f32 %v2562, %v2915
    %2917 = vdwg.mxu0
    %vm2918 = vcmp.gt.f32.partialorder %v2760, 0.0
    %vm2919 = vcmp.gt.f32.partialorder %v2762, 0.0
    %vm2920 = vcmp.gt.f32.partialorder %v2764, 0.0
    %vm2921 = vcmp.gt.f32.partialorder %v2766, 0.0
    %vm2922 = vcmp.gt.f32.partialorder %v2770, 0.0
    %vm2923 = vcmp.gt.f32.partialorder %v2772, 0.0
    %vm2924 = vcmp.gt.f32.partialorder %v2774, 0.0
    %vm2925 = vcmp.gt.f32.partialorder %v2776, 0.0
    %vm2926 = vcmp.gt.f32.partialorder %v2780, 0.0
    %vm2927 = vcmp.gt.f32.partialorder %v2782, 0.0
    %vm2928 = vcmp.gt.f32.partialorder %v2784, 0.0
    %vm2929 = vcmp.gt.f32.partialorder %v2786, 0.0
    %vm2930 = vcmp.gt.f32.partialorder %v2790, 0.0
    %vm2931 = vcmp.gt.f32.partialorder %v2792, 0.0
    %vm2932 = vcmp.gt.f32.partialorder %v2794, 0.0
    %vm2933 = vcmp.gt.f32.partialorder %v2796, 0.0
    %vm2934 = vcmp.gt.f32.partialorder %v2800, 0.0
    %vm2935 = vcmp.gt.f32.partialorder %v2802, 0.0
    %vm2936 = vcmp.gt.f32.partialorder %v2804, 0.0
    %vm2937 = vcmp.gt.f32.partialorder %v2806, 0.0
    %vm2938 = vcmp.gt.f32.partialorder %v2810, 0.0
    %vm2939 = vcmp.gt.f32.partialorder %v2812, 0.0
    %vm2940 = vcmp.gt.f32.partialorder %v2814, 0.0
    %vm2941 = vcmp.gt.f32.partialorder %v2816, 0.0
    %vm2942 = vcmp.gt.f32.partialorder %v2820, 0.0
    %vm2943 = vcmp.gt.f32.partialorder %v2822, 0.0
    %vm2944 = vcmp.gt.f32.partialorder %v2824, 0.0
    %vm2945 = vcmp.gt.f32.partialorder %v2826, 0.0
    %vm2946 = vcmp.gt.f32.partialorder %v2830, 0.0
    %vm2947 = vcmp.gt.f32.partialorder %v2832, 0.0
    %vm2948 = vcmp.gt.f32.partialorder %v2834, 0.0
    %vm2949 = vcmp.gt.f32.partialorder %v2836, 0.0
    %vm2950 = vcmp.gt.f32.partialorder %v2840, 0.0
    %vm2951 = vcmp.gt.f32.partialorder %v2842, 0.0
    %vm2952 = vcmp.gt.f32.partialorder %v2844, 0.0
    %vm2953 = vcmp.gt.f32.partialorder %v2846, 0.0
    %vm2954 = vcmp.gt.f32.partialorder %v2850, 0.0
    %vm2955 = vcmp.gt.f32.partialorder %v2852, 0.0
    %vm2956 = vcmp.gt.f32.partialorder %v2854, 0.0
    %vm2957 = vcmp.gt.f32.partialorder %v2856, 0.0
    %vm2958 = vcmp.gt.f32.partialorder %v2860, 0.0
    %vm2959 = vcmp.gt.f32.partialorder %v2862, 0.0
    %vm2960 = vcmp.gt.f32.partialorder %v2864, 0.0
    %vm2961 = vcmp.gt.f32.partialorder %v2866, 0.0
    %vm2962 = vcmp.gt.f32.partialorder %v2870, 0.0
    %vm2963 = vcmp.gt.f32.partialorder %v2872, 0.0
    %vm2964 = vcmp.gt.f32.partialorder %v2874, 0.0
    %vm2965 = vcmp.gt.f32.partialorder %v2876, 0.0
    %vm2966 = vcmp.gt.f32.partialorder %v2880, 0.0
    %vm2967 = vcmp.gt.f32.partialorder %v2882, 0.0
    %vm2968 = vcmp.gt.f32.partialorder %v2884, 0.0
    %vm2969 = vcmp.gt.f32.partialorder %v2886, 0.0
    %vm2970 = vcmp.gt.f32.partialorder %v2890, 0.0
    %vm2971 = vcmp.gt.f32.partialorder %v2892, 0.0
    %vm2972 = vcmp.gt.f32.partialorder %v2894, 0.0
    %vm2973 = vcmp.gt.f32.partialorder %v2896, 0.0
    %vm2974 = vcmp.gt.f32.partialorder %v2900, 0.0
    %vm2975 = vcmp.gt.f32.partialorder %v2902, 0.0
    %vm2976 = vcmp.gt.f32.partialorder %v2904, 0.0
    %vm2977 = vcmp.gt.f32.partialorder %v2906, 0.0
    %vm2978 = vcmp.gt.f32.partialorder %v2910, 0.0
    %vm2979 = vcmp.gt.f32.partialorder %v2912, 0.0
    %vm2980 = vcmp.gt.f32.partialorder %v2914, 0.0
    %vm2981 = vcmp.gt.f32.partialorder %v2916, 0.0
    %v2982 = vmul.f32 %v2760, 0.01
    %v2983 = vmul.f32 %v2762, 0.01
    %v2984 = vmul.f32 %v2764, 0.01
    %v2985 = vmul.f32 %v2766, 0.01
    %v2986 = vmul.f32 %v2770, 0.01
    %v2987 = vmul.f32 %v2772, 0.01
    %v2988 = vmul.f32 %v2774, 0.01
    %v2989 = vmul.f32 %v2776, 0.01
    %v2990 = vmul.f32 %v2780, 0.01
    %v2991 = vmul.f32 %v2782, 0.01
    %v2992 = vmul.f32 %v2784, 0.01
    %v2993 = vmul.f32 %v2786, 0.01
    %v2994 = vmul.f32 %v2790, 0.01
    %v2995 = vmul.f32 %v2792, 0.01
    %v2996 = vmul.f32 %v2794, 0.01
    %v2997 = vmul.f32 %v2796, 0.01
    %v2998 = vmul.f32 %v2800, 0.01
    %v2999 = vmul.f32 %v2802, 0.01
    %v3000 = vmul.f32 %v2804, 0.01
    %v3001 = vmul.f32 %v2806, 0.01
    %v3002 = vmul.f32 %v2810, 0.01
    %v3003 = vmul.f32 %v2812, 0.01
    %v3004 = vmul.f32 %v2814, 0.01
    %v3005 = vmul.f32 %v2816, 0.01
    %v3006 = vmul.f32 %v2820, 0.01
    %v3007 = vmul.f32 %v2822, 0.01
    %v3008 = vmul.f32 %v2824, 0.01
    %v3009 = vmul.f32 %v2826, 0.01
    %v3010 = vmul.f32 %v2830, 0.01
    %v3011 = vmul.f32 %v2832, 0.01
    %v3012 = vmul.f32 %v2834, 0.01
    %v3013 = vmul.f32 %v2836, 0.01
    %v3014 = vmul.f32 %v2840, 0.01
    %v3015 = vmul.f32 %v2842, 0.01
    %v3016 = vmul.f32 %v2844, 0.01
    %v3017 = vmul.f32 %v2846, 0.01
    %v3018 = vmul.f32 %v2850, 0.01
    %v3019 = vmul.f32 %v2852, 0.01
    %v3020 = vmul.f32 %v2854, 0.01
    %v3021 = vmul.f32 %v2856, 0.01
    %v3022 = vmul.f32 %v2860, 0.01
    %v3023 = vmul.f32 %v2862, 0.01
    %v3024 = vmul.f32 %v2864, 0.01
    %v3025 = vmul.f32 %v2866, 0.01
    %v3026 = vmul.f32 %v2870, 0.01
    %v3027 = vmul.f32 %v2872, 0.01
    %v3028 = vmul.f32 %v2874, 0.01
    %v3029 = vmul.f32 %v2876, 0.01
    %v3030 = vmul.f32 %v2880, 0.01
    %v3031 = vmul.f32 %v2882, 0.01
    %v3032 = vmul.f32 %v2884, 0.01
    %v3033 = vmul.f32 %v2886, 0.01
    %v3034 = vmul.f32 %v2890, 0.01
    %v3035 = vmul.f32 %v2892, 0.01
    %v3036 = vmul.f32 %v2894, 0.01
    %v3037 = vmul.f32 %v2896, 0.01
    %v3038 = vmul.f32 %v2900, 0.01
    %v3039 = vmul.f32 %v2902, 0.01
    %v3040 = vmul.f32 %v2904, 0.01
    %v3041 = vmul.f32 %v2906, 0.01
    %v3042 = vmul.f32 %v2910, 0.01
    %v3043 = vmul.f32 %v2912, 0.01
    %v3044 = vmul.f32 %v2914, 0.01
    %v3045 = vmul.f32 %v2916, 0.01
    %v3046 = vsel %vm2918, %v2760, %v2982
    %v3047 = vsel %vm2919, %v2762, %v2983
    %v3048 = vsel %vm2920, %v2764, %v2984
    %v3049 = vsel %vm2921, %v2766, %v2985
    %v3050 = vsel %vm2922, %v2770, %v2986
    %v3051 = vsel %vm2923, %v2772, %v2987
    %v3052 = vsel %vm2924, %v2774, %v2988
    %v3053 = vsel %vm2925, %v2776, %v2989
    %v3054 = vsel %vm2926, %v2780, %v2990
    %v3055 = vsel %vm2927, %v2782, %v2991
    %v3056 = vsel %vm2928, %v2784, %v2992
    %v3057 = vsel %vm2929, %v2786, %v2993
    %v3058 = vsel %vm2930, %v2790, %v2994
    %v3059 = vsel %vm2931, %v2792, %v2995
    %v3060 = vsel %vm2932, %v2794, %v2996
    %v3061 = vsel %vm2933, %v2796, %v2997
    %v3062 = vsel %vm2934, %v2800, %v2998
    %v3063 = vsel %vm2935, %v2802, %v2999
    %v3064 = vsel %vm2936, %v2804, %v3000
    %v3065 = vsel %vm2937, %v2806, %v3001
    %v3066 = vsel %vm2938, %v2810, %v3002
    %v3067 = vsel %vm2939, %v2812, %v3003
    %v3068 = vsel %vm2940, %v2814, %v3004
    %v3069 = vsel %vm2941, %v2816, %v3005
    %v3070 = vsel %vm2942, %v2820, %v3006
    %v3071 = vsel %vm2943, %v2822, %v3007
    %v3072 = vsel %vm2944, %v2824, %v3008
    %v3073 = vsel %vm2945, %v2826, %v3009
    %v3074 = vsel %vm2946, %v2830, %v3010
    %v3075 = vsel %vm2947, %v2832, %v3011
    %v3076 = vsel %vm2948, %v2834, %v3012
    %v3077 = vsel %vm2949, %v2836, %v3013
    %v3078 = vsel %vm2950, %v2840, %v3014
    %v3079 = vsel %vm2951, %v2842, %v3015
    %v3080 = vsel %vm2952, %v2844, %v3016
    %v3081 = vsel %vm2953, %v2846, %v3017
    %v3082 = vsel %vm2954, %v2850, %v3018
    %v3083 = vsel %vm2955, %v2852, %v3019
    %v3084 = vsel %vm2956, %v2854, %v3020
    %v3085 = vsel %vm2957, %v2856, %v3021
    %v3086 = vsel %vm2958, %v2860, %v3022
    %v3087 = vsel %vm2959, %v2862, %v3023
    %v3088 = vsel %vm2960, %v2864, %v3024
    %v3089 = vsel %vm2961, %v2866, %v3025
    %v3090 = vsel %vm2962, %v2870, %v3026
    %v3091 = vsel %vm2963, %v2872, %v3027
    %v3092 = vsel %vm2964, %v2874, %v3028
    %v3093 = vsel %vm2965, %v2876, %v3029
    %v3094 = vsel %vm2966, %v2880, %v3030
    %v3095 = vsel %vm2967, %v2882, %v3031
    %v3096 = vsel %vm2968, %v2884, %v3032
    %v3097 = vsel %vm2969, %v2886, %v3033
    %v3098 = vsel %vm2970, %v2890, %v3034
    %v3099 = vsel %vm2971, %v2892, %v3035
    %v3100 = vsel %vm2972, %v2894, %v3036
    %v3101 = vsel %vm2973, %v2896, %v3037
    %v3102 = vsel %vm2974, %v2900, %v3038
    %v3103 = vsel %vm2975, %v2902, %v3039
    %v3104 = vsel %vm2976, %v2904, %v3040
    %v3105 = vsel %vm2977, %v2906, %v3041
    %v3106 = vsel %vm2978, %v2910, %v3042
    %v3107 = vsel %vm2979, %v2912, %v3043
    %v3108 = vsel %vm2980, %v2914, %v3044
    %v3109 = vsel %vm2981, %v2916, %v3045
    %v3110 = vpack.c.bf16 %v3048, %v3046
    %v3111 = vpack.c.bf16 %v3049, %v3047
    %v3112 = vpack.c.bf16 %v3052, %v3050
    %v3113 = vpack.c.bf16 %v3053, %v3051
    %v3114 = vpack.c.bf16 %v3056, %v3054
    %v3115 = vpack.c.bf16 %v3057, %v3055
    %v3116 = vpack.c.bf16 %v3060, %v3058
    %v3117 = vpack.c.bf16 %v3061, %v3059
    %v3118 = vpack.c.bf16 %v3064, %v3062
    %v3119 = vpack.c.bf16 %v3065, %v3063
    %v3120 = vpack.c.bf16 %v3068, %v3066
    %v3121 = vpack.c.bf16 %v3069, %v3067
    %v3122 = vpack.c.bf16 %v3072, %v3070
    %v3123 = vpack.c.bf16 %v3073, %v3071
    %v3124 = vpack.c.bf16 %v3076, %v3074
    %v3125 = vpack.c.bf16 %v3077, %v3075
    %v3126 = vpack.c.bf16 %v3080, %v3078
    %v3127 = vpack.c.bf16 %v3081, %v3079
    %v3128 = vpack.c.bf16 %v3084, %v3082
    %v3129 = vpack.c.bf16 %v3085, %v3083
    %v3130 = vpack.c.bf16 %v3088, %v3086
    %v3131 = vpack.c.bf16 %v3089, %v3087
    %v3132 = vpack.c.bf16 %v3092, %v3090
    %v3133 = vpack.c.bf16 %v3093, %v3091
    %v3134 = vpack.c.bf16 %v3096, %v3094
    %v3135 = vpack.c.bf16 %v3097, %v3095
    %v3136 = vpack.c.bf16 %v3100, %v3098
    %v3137 = vpack.c.bf16 %v3101, %v3099
    %v3138 = vpack.c.bf16 %v3104, %v3102
    %v3139 = vpack.c.bf16 %v3105, %v3103
    %v3140 = vpack.c.bf16 %v3108, %v3106
    %v3141 = vpack.c.bf16 %v3109, %v3107
    %v3142 = vld [vmem:[#allocation7] sm:$0xff]
    %v3143 = vld [vmem:[#allocation7 + $0x8] sm:$0xff]
    %v3144 = vld [vmem:[#allocation7 + $0x10] sm:$0xff]
    %v3145 = vld [vmem:[#allocation7 + $0x18] sm:$0xff]
    %v3146 = vld [vmem:[#allocation7 + $0x20] sm:$0xff]
    %v3147 = vld [vmem:[#allocation7 + $0x28] sm:$0xff]
    %v3148 = vld [vmem:[#allocation7 + $0x30] sm:$0xff]
    %v3149 = vld [vmem:[#allocation7 + $0x38] sm:$0xff]
    %v3150 = vld [vmem:[#allocation7 + $0x40] sm:$0xff]
    %v3151 = vld [vmem:[#allocation7 + $0x48] sm:$0xff]
    %v3152 = vld [vmem:[#allocation7 + $0x50] sm:$0xff]
    %v3153 = vld [vmem:[#allocation7 + $0x58] sm:$0xff]
    %v3154 = vld [vmem:[#allocation7 + $0x60] sm:$0xff]
    %v3155 = vld [vmem:[#allocation7 + $0x68] sm:$0xff]
    %v3156 = vld [vmem:[#allocation7 + $0x70] sm:$0xff]
    %v3157 = vld [vmem:[#allocation7 + $0x78] sm:$0xff]
    %v3158 = vld [vmem:[#allocation7 + $0x80] sm:$0xff]
    %v3159 = vld [vmem:[#allocation7 + $0x88] sm:$0xff]
    %v3160 = vld [vmem:[#allocation7 + $0x90] sm:$0xff]
    %v3161 = vld [vmem:[#allocation7 + $0x98] sm:$0xff]
    %v3162 = vld [vmem:[#allocation7 + $0xa0] sm:$0xff]
    %v3163 = vld [vmem:[#allocation7 + $0xa8] sm:$0xff]
    %v3164 = vld [vmem:[#allocation7 + $0xb0] sm:$0xff]
    %v3165 = vld [vmem:[#allocation7 + $0xb8] sm:$0xff]
    %v3166 = vld [vmem:[#allocation7 + $0xc0] sm:$0xff]
    %v3167 = vld [vmem:[#allocation7 + $0xc8] sm:$0xff]
    %v3168 = vld [vmem:[#allocation7 + $0xd0] sm:$0xff]
    %v3169 = vld [vmem:[#allocation7 + $0xd8] sm:$0xff]
    %v3170 = vld [vmem:[#allocation7 + $0xe0] sm:$0xff]
    %v3171 = vld [vmem:[#allocation7 + $0xe8] sm:$0xff]
    %v3172 = vld [vmem:[#allocation7 + $0xf0] sm:$0xff]
    %v3173 = vld [vmem:[#allocation7 + $0xf8] sm:$0xff]
    %v3174 = vld [vmem:[%s12] sm:$0x3]
    %v3176 = vlaneseq
    %v3177 = vshrl.u32 %v3176, 7
    %v3178 = vsub.s32 0, %v3177
    %v3179 = vrot.slane %v3174, %v3178
    %v3180 = vlaneseq
    %v3181 = vshrl.u32 %v3180, 7
    %v3182 = vsub.s32 1, %v3181
    %v3183 = vrot.slane %v3174, %v3182
    %v3218 = vunpack.c.l.b16 %v3142
    %v3219 = vunpack.c.h.b16 %v3142
    %v3220 = vunpack.c.l.b16 %v3143
    %v3221 = vunpack.c.h.b16 %v3143
    %v3222 = vunpack.c.l.b16 %v3144
    %v3223 = vunpack.c.h.b16 %v3144
    %v3224 = vunpack.c.l.b16 %v3145
    %v3225 = vunpack.c.h.b16 %v3145
    %v3226 = vunpack.c.l.b16 %v3146
    %v3227 = vunpack.c.h.b16 %v3146
    %v3228 = vunpack.c.l.b16 %v3147
    %v3229 = vunpack.c.h.b16 %v3147
    %v3230 = vunpack.c.l.b16 %v3148
    %v3231 = vunpack.c.h.b16 %v3148
    %v3232 = vunpack.c.l.b16 %v3149
    %v3233 = vunpack.c.h.b16 %v3149
    %v3234 = vunpack.c.l.b16 %v3150
    %v3235 = vunpack.c.h.b16 %v3150
    %v3236 = vunpack.c.l.b16 %v3151
    %v3237 = vunpack.c.h.b16 %v3151
    %v3238 = vunpack.c.l.b16 %v3152
    %v3239 = vunpack.c.h.b16 %v3152
    %v3240 = vunpack.c.l.b16 %v3153
    %v3241 = vunpack.c.h.b16 %v3153
    %v3242 = vunpack.c.l.b16 %v3154
    %v3243 = vunpack.c.h.b16 %v3154
    %v3244 = vunpack.c.l.b16 %v3155
    %v3245 = vunpack.c.h.b16 %v3155
    %v3246 = vunpack.c.l.b16 %v3156
    %v3247 = vunpack.c.h.b16 %v3156
    %v3248 = vunpack.c.l.b16 %v3157
    %v3249 = vunpack.c.h.b16 %v3157
    %v3250 = vunpack.c.l.b16 %v3158
    %v3251 = vunpack.c.h.b16 %v3158
    %v3252 = vunpack.c.l.b16 %v3159
    %v3253 = vunpack.c.h.b16 %v3159
    %v3254 = vunpack.c.l.b16 %v3160
    %v3255 = vunpack.c.h.b16 %v3160
    %v3256 = vunpack.c.l.b16 %v3161
    %v3257 = vunpack.c.h.b16 %v3161
    %v3258 = vunpack.c.l.b16 %v3162
    %v3259 = vunpack.c.h.b16 %v3162
    %v3260 = vunpack.c.l.b16 %v3163
    %v3261 = vunpack.c.h.b16 %v3163
    %v3262 = vunpack.c.l.b16 %v3164
    %v3263 = vunpack.c.h.b16 %v3164
    %v3264 = vunpack.c.l.b16 %v3165
    %v3265 = vunpack.c.h.b16 %v3165
    %v3266 = vunpack.c.l.b16 %v3166
    %v3267 = vunpack.c.h.b16 %v3166
    %v3268 = vunpack.c.l.b16 %v3167
    %v3269 = vunpack.c.h.b16 %v3167
    %v3270 = vunpack.c.l.b16 %v3168
    %v3271 = vunpack.c.h.b16 %v3168
    %v3272 = vunpack.c.l.b16 %v3169
    %v3273 = vunpack.c.h.b16 %v3169
    %v3274 = vunpack.c.l.b16 %v3170
    %v3275 = vunpack.c.h.b16 %v3170
    %v3276 = vunpack.c.l.b16 %v3171
    %v3277 = vunpack.c.h.b16 %v3171
    %v3278 = vunpack.c.l.b16 %v3172
    %v3279 = vunpack.c.h.b16 %v3172
    %v3280 = vunpack.c.l.b16 %v3173
    %v3281 = vunpack.c.h.b16 %v3173
    %v3282 = vpack.c.b16 %v3220, %v3218
    %v3283 = vpack.c.b16 %v3221, %v3219
    %v3284 = vpack.c.b16 %v3224, %v3222
    %v3285 = vpack.c.b16 %v3225, %v3223
    %v3286 = vpack.c.b16 %v3228, %v3226
    %v3287 = vpack.c.b16 %v3229, %v3227
    %v3288 = vpack.c.b16 %v3232, %v3230
    %v3289 = vpack.c.b16 %v3233, %v3231
    %v3290 = vpack.c.b16 %v3236, %v3234
    %v3291 = vpack.c.b16 %v3237, %v3235
    %v3292 = vpack.c.b16 %v3240, %v3238
    %v3293 = vpack.c.b16 %v3241, %v3239
    %v3294 = vpack.c.b16 %v3244, %v3242
    %v3295 = vpack.c.b16 %v3245, %v3243
    %v3296 = vpack.c.b16 %v3248, %v3246
    %v3297 = vpack.c.b16 %v3249, %v3247
    %v3298 = vpack.c.b16 %v3252, %v3250
    %v3299 = vpack.c.b16 %v3253, %v3251
    %v3300 = vpack.c.b16 %v3256, %v3254
    %v3301 = vpack.c.b16 %v3257, %v3255
    %v3302 = vpack.c.b16 %v3260, %v3258
    %v3303 = vpack.c.b16 %v3261, %v3259
    %v3304 = vpack.c.b16 %v3264, %v3262
    %v3305 = vpack.c.b16 %v3265, %v3263
    %v3306 = vpack.c.b16 %v3268, %v3266
    %v3307 = vpack.c.b16 %v3269, %v3267
    %v3308 = vpack.c.b16 %v3272, %v3270
    %v3309 = vpack.c.b16 %v3273, %v3271
    %v3310 = vpack.c.b16 %v3276, %v3274
    %v3311 = vpack.c.b16 %v3277, %v3275
    %v3312 = vpack.c.b16 %v3280, %v3278
    %v3313 = vpack.c.b16 %v3281, %v3279
    %3346 = vmatprep.subr.bf16.mxu0 %v3283
    %3347 = vmatpush1.bf16.msra.mxu0 %v3282
    %3348 = vmatprep.subr.bf16.mxu0 %v3285
    %3349 = vmatpush1.bf16.msra.mxu0 %v3284
    %3350 = vmatprep.subr.bf16.mxu0 %v3287
    %3351 = vmatpush1.bf16.msra.mxu0 %v3286
    %3352 = vmatprep.subr.bf16.mxu0 %v3289
    %3353 = vmatpush1.bf16.msra.mxu0 %v3288
    %3354 = vmatprep.subr.bf16.mxu0 %v3291
    %3355 = vmatpush1.bf16.msra.mxu0 %v3290
    %3356 = vmatprep.subr.bf16.mxu0 %v3293
    %3357 = vmatpush1.bf16.msra.mxu0 %v3292
    %3358 = vmatprep.subr.bf16.mxu0 %v3295
    %3359 = vmatpush1.bf16.msra.mxu0 %v3294
    %3360 = vmatprep.subr.bf16.mxu0 %v3297
    %3361 = vmatpush1.bf16.msra.mxu0 %v3296
    %3362 = vmatprep.subr.bf16.mxu0 %v3299
    %3363 = vmatpush1.bf16.msra.mxu0 %v3298
    %3364 = vmatprep.subr.bf16.mxu0 %v3301
    %3365 = vmatpush1.bf16.msra.mxu0 %v3300
    %3366 = vmatprep.subr.bf16.mxu0 %v3303
    %3367 = vmatpush1.bf16.msra.mxu0 %v3302
    %3368 = vmatprep.subr.bf16.mxu0 %v3305
    %3369 = vmatpush1.bf16.msra.mxu0 %v3304
    %3370 = vmatprep.subr.bf16.mxu0 %v3307
    %3371 = vmatpush1.bf16.msra.mxu0 %v3306
    %3372 = vmatprep.subr.bf16.mxu0 %v3309
    %3373 = vmatpush1.bf16.msra.mxu0 %v3308
    %3374 = vmatprep.subr.bf16.mxu0 %v3311
    %3375 = vmatpush1.bf16.msra.mxu0 %v3310
    %3376 = vmatprep.subr.bf16.mxu0 %v3313
    %3377 = vmatpush1.bf16.msra.mxu0 %v3312
    %3378 = vmatprep.mubr.bf16.mxu0 %v3111
    %3379 = vmatmul.mubr.bf16.gmra.mrb[0].mxu0 %v3110
    %v3380 = vpop.f32.mrb[0].mxu0
    %v3381 = vadd.f32 %v3179, %v3380
    %v3382 = vpop.f32.mrb[0].mxu0
    %v3383 = vadd.f32 %v3183, %v3382
    %v3384 = vpop.f32.mrb[0].mxu0
    %v3385 = vadd.f32 %v3179, %v3384
    %v3386 = vpop.f32.mrb[0].mxu0
    %v3387 = vadd.f32 %v3183, %v3386
    %3388 = vmatprep.mubr.bf16.mxu0 %v3113
    %3389 = vmatmul.mubr.bf16.gmra.mrb[0].mxu0 %v3112
    %v3390 = vpop.f32.mrb[0].mxu0
    %v3391 = vadd.f32 %v3179, %v3390
    %v3392 = vpop.f32.mrb[0].mxu0
    %v3393 = vadd.f32 %v3183, %v3392
    %v3394 = vpop.f32.mrb[0].mxu0
    %v3395 = vadd.f32 %v3179, %v3394
    %v3396 = vpop.f32.mrb[0].mxu0
    %v3397 = vadd.f32 %v3183, %v3396
    %3398 = vmatprep.mubr.bf16.mxu0 %v3115
    %3399 = vmatmul.mubr.bf16.gmra.mrb[0].mxu0 %v3114
    %v3400 = vpop.f32.mrb[0].mxu0
    %v3401 = vadd.f32 %v3179, %v3400
    %v3402 = vpop.f32.mrb[0].mxu0
    %v3403 = vadd.f32 %v3183, %v3402
    %v3404 = vpop.f32.mrb[0].mxu0
    %v3405 = vadd.f32 %v3179, %v3404
    %v3406 = vpop.f32.mrb[0].mxu0
    %v3407 = vadd.f32 %v3183, %v3406
    %3408 = vmatprep.mubr.bf16.mxu0 %v3117
    %3409 = vmatmul.mubr.bf16.gmra.mrb[0].mxu0 %v3116
    %v3410 = vpop.f32.mrb[0].mxu0
    %v3411 = vadd.f32 %v3179, %v3410
    %v3412 = vpop.f32.mrb[0].mxu0
    %v3413 = vadd.f32 %v3183, %v3412
    %v3414 = vpop.f32.mrb[0].mxu0
    %v3415 = vadd.f32 %v3179, %v3414
    %v3416 = vpop.f32.mrb[0].mxu0
    %v3417 = vadd.f32 %v3183, %v3416
    %3418 = vmatprep.mubr.bf16.mxu0 %v3119
    %3419 = vmatmul.mubr.bf16.gmra.mrb[0].mxu0 %v3118
    %v3420 = vpop.f32.mrb[0].mxu0
    %v3421 = vadd.f32 %v3179, %v3420
    %v3422 = vpop.f32.mrb[0].mxu0
    %v3423 = vadd.f32 %v3183, %v3422
    %v3424 = vpop.f32.mrb[0].mxu0
    %v3425 = vadd.f32 %v3179, %v3424
    %v3426 = vpop.f32.mrb[0].mxu0
    %v3427 = vadd.f32 %v3183, %v3426
    %3428 = vmatprep.mubr.bf16.mxu0 %v3121
    %3429 = vmatmul.mubr.bf16.gmra.mrb[0].mxu0 %v3120
    %v3430 = vpop.f32.mrb[0].mxu0
    %v3431 = vadd.f32 %v3179, %v3430
    %v3432 = vpop.f32.mrb[0].mxu0
    %v3433 = vadd.f32 %v3183, %v3432
    %v3434 = vpop.f32.mrb[0].mxu0
    %v3435 = vadd.f32 %v3179, %v3434
    %v3436 = vpop.f32.mrb[0].mxu0
    %v3437 = vadd.f32 %v3183, %v3436
    %3438 = vmatprep.mubr.bf16.mxu0 %v3123
    %3439 = vmatmul.mubr.bf16.gmra.mrb[0].mxu0 %v3122
    %v3440 = vpop.f32.mrb[0].mxu0
    %v3441 = vadd.f32 %v3179, %v3440
    %v3442 = vpop.f32.mrb[0].mxu0
    %v3443 = vadd.f32 %v3183, %v3442
    %v3444 = vpop.f32.mrb[0].mxu0
    %v3445 = vadd.f32 %v3179, %v3444
    %v3446 = vpop.f32.mrb[0].mxu0
    %v3447 = vadd.f32 %v3183, %v3446
    %3448 = vmatprep.mubr.bf16.mxu0 %v3125
    %3449 = vmatmul.mubr.bf16.gmra.mrb[0].mxu0 %v3124
    %v3450 = vpop.f32.mrb[0].mxu0
    %v3451 = vadd.f32 %v3179, %v3450
    %v3452 = vpop.f32.mrb[0].mxu0
    %v3453 = vadd.f32 %v3183, %v3452
    %v3454 = vpop.f32.mrb[0].mxu0
    %v3455 = vadd.f32 %v3179, %v3454
    %v3456 = vpop.f32.mrb[0].mxu0
    %v3457 = vadd.f32 %v3183, %v3456
    %3458 = vmatprep.mubr.bf16.mxu0 %v3127
    %3459 = vmatmul.mubr.bf16.gmra.mrb[0].mxu0 %v3126
    %v3460 = vpop.f32.mrb[0].mxu0
    %v3461 = vadd.f32 %v3179, %v3460
    %v3462 = vpop.f32.mrb[0].mxu0
    %v3463 = vadd.f32 %v3183, %v3462
    %v3464 = vpop.f32.mrb[0].mxu0
    %v3465 = vadd.f32 %v3179, %v3464
    %v3466 = vpop.f32.mrb[0].mxu0
    %v3467 = vadd.f32 %v3183, %v3466
    %3468 = vmatprep.mubr.bf16.mxu0 %v3129
    %3469 = vmatmul.mubr.bf16.gmra.mrb[0].mxu0 %v3128
    %v3470 = vpop.f32.mrb[0].mxu0
    %v3471 = vadd.f32 %v3179, %v3470
    %v3472 = vpop.f32.mrb[0].mxu0
    %v3473 = vadd.f32 %v3183, %v3472
    %v3474 = vpop.f32.mrb[0].mxu0
    %v3475 = vadd.f32 %v3179, %v3474
    %v3476 = vpop.f32.mrb[0].mxu0
    %v3477 = vadd.f32 %v3183, %v3476
    %3478 = vmatprep.mubr.bf16.mxu0 %v3131
    %3479 = vmatmul.mubr.bf16.gmra.mrb[0].mxu0 %v3130
    %v3480 = vpop.f32.mrb[0].mxu0
    %v3481 = vadd.f32 %v3179, %v3480
    %v3482 = vpop.f32.mrb[0].mxu0
    %v3483 = vadd.f32 %v3183, %v3482
    %v3484 = vpop.f32.mrb[0].mxu0
    %v3485 = vadd.f32 %v3179, %v3484
    %v3486 = vpop.f32.mrb[0].mxu0
    %v3487 = vadd.f32 %v3183, %v3486
    %3488 = vmatprep.mubr.bf16.mxu0 %v3133
    %3489 = vmatmul.mubr.bf16.gmra.mrb[0].mxu0 %v3132
    %v3490 = vpop.f32.mrb[0].mxu0
    %v3491 = vadd.f32 %v3179, %v3490
    %v3492 = vpop.f32.mrb[0].mxu0
    %v3493 = vadd.f32 %v3183, %v3492
    %v3494 = vpop.f32.mrb[0].mxu0
    %v3495 = vadd.f32 %v3179, %v3494
    %v3496 = vpop.f32.mrb[0].mxu0
    %v3497 = vadd.f32 %v3183, %v3496
    %3498 = vmatprep.mubr.bf16.mxu0 %v3135
    %3499 = vmatmul.mubr.bf16.gmra.mrb[0].mxu0 %v3134
    %v3500 = vpop.f32.mrb[0].mxu0
    %v3501 = vadd.f32 %v3179, %v3500
    %v3502 = vpop.f32.mrb[0].mxu0
    %v3503 = vadd.f32 %v3183, %v3502
    %v3504 = vpop.f32.mrb[0].mxu0
    %v3505 = vadd.f32 %v3179, %v3504
    %v3506 = vpop.f32.mrb[0].mxu0
    %v3507 = vadd.f32 %v3183, %v3506
    %3508 = vmatprep.mubr.bf16.mxu0 %v3137
    %3509 = vmatmul.mubr.bf16.gmra.mrb[0].mxu0 %v3136
    %v3510 = vpop.f32.mrb[0].mxu0
    %v3511 = vadd.f32 %v3179, %v3510
    %v3512 = vpop.f32.mrb[0].mxu0
    %v3513 = vadd.f32 %v3183, %v3512
    %v3514 = vpop.f32.mrb[0].mxu0
    %v3515 = vadd.f32 %v3179, %v3514
    %v3516 = vpop.f32.mrb[0].mxu0
    %v3517 = vadd.f32 %v3183, %v3516
    %3518 = vmatprep.mubr.bf16.mxu0 %v3139
    %3519 = vmatmul.mubr.bf16.gmra.mrb[0].mxu0 %v3138
    %v3520 = vpop.f32.mrb[0].mxu0
    %v3521 = vadd.f32 %v3179, %v3520
    %v3522 = vpop.f32.mrb[0].mxu0
    %v3523 = vadd.f32 %v3183, %v3522
    %v3524 = vpop.f32.mrb[0].mxu0
    %v3525 = vadd.f32 %v3179, %v3524
    %v3526 = vpop.f32.mrb[0].mxu0
    %v3527 = vadd.f32 %v3183, %v3526
    %3528 = vmatprep.mubr.bf16.mxu0 %v3141
    %3529 = vmatmul.mubr.bf16.gmra.mrb[0].mxu0 %v3140
    %v3530 = vpop.f32.mrb[0].mxu0
    %v3531 = vadd.f32 %v3179, %v3530
    %v3532 = vpop.f32.mrb[0].mxu0
    %v3533 = vadd.f32 %v3183, %v3532
    %v3534 = vpop.f32.mrb[0].mxu0
    %v3535 = vadd.f32 %v3179, %v3534
    %v3536 = vpop.f32.mrb[0].mxu0
    %v3537 = vadd.f32 %v3183, %v3536
    %3538 = vdwg.mxu0
    %vm3539 = vcmp.gt.f32.partialorder %v3381, 0.0
    %vm3540 = vcmp.gt.f32.partialorder %v3383, 0.0
    %vm3541 = vcmp.gt.f32.partialorder %v3385, 0.0
    %vm3542 = vcmp.gt.f32.partialorder %v3387, 0.0
    %vm3543 = vcmp.gt.f32.partialorder %v3391, 0.0
    %vm3544 = vcmp.gt.f32.partialorder %v3393, 0.0
    %vm3545 = vcmp.gt.f32.partialorder %v3395, 0.0
    %vm3546 = vcmp.gt.f32.partialorder %v3397, 0.0
    %vm3547 = vcmp.gt.f32.partialorder %v3401, 0.0
    %vm3548 = vcmp.gt.f32.partialorder %v3403, 0.0
    %vm3549 = vcmp.gt.f32.partialorder %v3405, 0.0
    %vm3550 = vcmp.gt.f32.partialorder %v3407, 0.0
    %vm3551 = vcmp.gt.f32.partialorder %v3411, 0.0
    %vm3552 = vcmp.gt.f32.partialorder %v3413, 0.0
    %vm3553 = vcmp.gt.f32.partialorder %v3415, 0.0
    %vm3554 = vcmp.gt.f32.partialorder %v3417, 0.0
    %vm3555 = vcmp.gt.f32.partialorder %v3421, 0.0
    %vm3556 = vcmp.gt.f32.partialorder %v3423, 0.0
    %vm3557 = vcmp.gt.f32.partialorder %v3425, 0.0
    %vm3558 = vcmp.gt.f32.partialorder %v3427, 0.0
    %vm3559 = vcmp.gt.f32.partialorder %v3431, 0.0
    %vm3560 = vcmp.gt.f32.partialorder %v3433, 0.0
    %vm3561 = vcmp.gt.f32.partialorder %v3435, 0.0
    %vm3562 = vcmp.gt.f32.partialorder %v3437, 0.0
    %vm3563 = vcmp.gt.f32.partialorder %v3441, 0.0
    %vm3564 = vcmp.gt.f32.partialorder %v3443, 0.0
    %vm3565 = vcmp.gt.f32.partialorder %v3445, 0.0
    %vm3566 = vcmp.gt.f32.partialorder %v3447, 0.0
    %vm3567 = vcmp.gt.f32.partialorder %v3451, 0.0
    %vm3568 = vcmp.gt.f32.partialorder %v3453, 0.0
    %vm3569 = vcmp.gt.f32.partialorder %v3455, 0.0
    %vm3570 = vcmp.gt.f32.partialorder %v3457, 0.0
    %vm3571 = vcmp.gt.f32.partialorder %v3461, 0.0
    %vm3572 = vcmp.gt.f32.partialorder %v3463, 0.0
    %vm3573 = vcmp.gt.f32.partialorder %v3465, 0.0
    %vm3574 = vcmp.gt.f32.partialorder %v3467, 0.0
    %vm3575 = vcmp.gt.f32.partialorder %v3471, 0.0
    %vm3576 = vcmp.gt.f32.partialorder %v3473, 0.0
    %vm3577 = vcmp.gt.f32.partialorder %v3475, 0.0
    %vm3578 = vcmp.gt.f32.partialorder %v3477, 0.0
    %vm3579 = vcmp.gt.f32.partialorder %v3481, 0.0
    %vm3580 = vcmp.gt.f32.partialorder %v3483, 0.0
    %vm3581 = vcmp.gt.f32.partialorder %v3485, 0.0
    %vm3582 = vcmp.gt.f32.partialorder %v3487, 0.0
    %vm3583 = vcmp.gt.f32.partialorder %v3491, 0.0
    %vm3584 = vcmp.gt.f32.partialorder %v3493, 0.0
    %vm3585 = vcmp.gt.f32.partialorder %v3495, 0.0
    %vm3586 = vcmp.gt.f32.partialorder %v3497, 0.0
    %vm3587 = vcmp.gt.f32.partialorder %v3501, 0.0
    %vm3588 = vcmp.gt.f32.partialorder %v3503, 0.0
    %vm3589 = vcmp.gt.f32.partialorder %v3505, 0.0
    %vm3590 = vcmp.gt.f32.partialorder %v3507, 0.0
    %vm3591 = vcmp.gt.f32.partialorder %v3511, 0.0
    %vm3592 = vcmp.gt.f32.partialorder %v3513, 0.0
    %vm3593 = vcmp.gt.f32.partialorder %v3515, 0.0
    %vm3594 = vcmp.gt.f32.partialorder %v3517, 0.0
    %vm3595 = vcmp.gt.f32.partialorder %v3521, 0.0
    %vm3596 = vcmp.gt.f32.partialorder %v3523, 0.0
    %vm3597 = vcmp.gt.f32.partialorder %v3525, 0.0
    %vm3598 = vcmp.gt.f32.partialorder %v3527, 0.0
    %vm3599 = vcmp.gt.f32.partialorder %v3531, 0.0
    %vm3600 = vcmp.gt.f32.partialorder %v3533, 0.0
    %vm3601 = vcmp.gt.f32.partialorder %v3535, 0.0
    %vm3602 = vcmp.gt.f32.partialorder %v3537, 0.0
    %v3603 = vmul.f32 %v3381, 0.01
    %v3604 = vmul.f32 %v3383, 0.01
    %v3605 = vmul.f32 %v3385, 0.01
    %v3606 = vmul.f32 %v3387, 0.01
    %v3607 = vmul.f32 %v3391, 0.01
    %v3608 = vmul.f32 %v3393, 0.01
    %v3609 = vmul.f32 %v3395, 0.01
    %v3610 = vmul.f32 %v3397, 0.01
    %v3611 = vmul.f32 %v3401, 0.01
    %v3612 = vmul.f32 %v3403, 0.01
    %v3613 = vmul.f32 %v3405, 0.01
    %v3614 = vmul.f32 %v3407, 0.01
    %v3615 = vmul.f32 %v3411, 0.01
    %v3616 = vmul.f32 %v3413, 0.01
    %v3617 = vmul.f32 %v3415, 0.01
    %v3618 = vmul.f32 %v3417, 0.01
    %v3619 = vmul.f32 %v3421, 0.01
    %v3620 = vmul.f32 %v3423, 0.01
    %v3621 = vmul.f32 %v3425, 0.01
    %v3622 = vmul.f32 %v3427, 0.01
    %v3623 = vmul.f32 %v3431, 0.01
    %v3624 = vmul.f32 %v3433, 0.01
    %v3625 = vmul.f32 %v3435, 0.01
    %v3626 = vmul.f32 %v3437, 0.01
    %v3627 = vmul.f32 %v3441, 0.01
    %v3628 = vmul.f32 %v3443, 0.01
    %v3629 = vmul.f32 %v3445, 0.01
    %v3630 = vmul.f32 %v3447, 0.01
    %v3631 = vmul.f32 %v3451, 0.01
    %v3632 = vmul.f32 %v3453, 0.01
    %v3633 = vmul.f32 %v3455, 0.01
    %v3634 = vmul.f32 %v3457, 0.01
    %v3635 = vmul.f32 %v3461, 0.01
    %v3636 = vmul.f32 %v3463, 0.01
    %v3637 = vmul.f32 %v3465, 0.01
    %v3638 = vmul.f32 %v3467, 0.01
    %v3639 = vmul.f32 %v3471, 0.01
    %v3640 = vmul.f32 %v3473, 0.01
    %v3641 = vmul.f32 %v3475, 0.01
    %v3642 = vmul.f32 %v3477, 0.01
    %v3643 = vmul.f32 %v3481, 0.01
    %v3644 = vmul.f32 %v3483, 0.01
    %v3645 = vmul.f32 %v3485, 0.01
    %v3646 = vmul.f32 %v3487, 0.01
    %v3647 = vmul.f32 %v3491, 0.01
    %v3648 = vmul.f32 %v3493, 0.01
    %v3649 = vmul.f32 %v3495, 0.01
    %v3650 = vmul.f32 %v3497, 0.01
    %v3651 = vmul.f32 %v3501, 0.01
    %v3652 = vmul.f32 %v3503, 0.01
    %v3653 = vmul.f32 %v3505, 0.01
    %v3654 = vmul.f32 %v3507, 0.01
    %v3655 = vmul.f32 %v3511, 0.01
    %v3656 = vmul.f32 %v3513, 0.01
    %v3657 = vmul.f32 %v3515, 0.01
    %v3658 = vmul.f32 %v3517, 0.01
    %v3659 = vmul.f32 %v3521, 0.01
    %v3660 = vmul.f32 %v3523, 0.01
    %v3661 = vmul.f32 %v3525, 0.01
    %v3662 = vmul.f32 %v3527, 0.01
    %v3663 = vmul.f32 %v3531, 0.01
    %v3664 = vmul.f32 %v3533, 0.01
    %v3665 = vmul.f32 %v3535, 0.01
    %v3666 = vmul.f32 %v3537, 0.01
    %v3667 = vsel %vm3539, %v3381, %v3603
    %v3668 = vsel %vm3540, %v3383, %v3604
    %v3669 = vsel %vm3541, %v3385, %v3605
    %v3670 = vsel %vm3542, %v3387, %v3606
    %v3671 = vsel %vm3543, %v3391, %v3607
    %v3672 = vsel %vm3544, %v3393, %v3608
    %v3673 = vsel %vm3545, %v3395, %v3609
    %v3674 = vsel %vm3546, %v3397, %v3610
    %v3675 = vsel %vm3547, %v3401, %v3611
    %v3676 = vsel %vm3548, %v3403, %v3612
    %v3677 = vsel %vm3549, %v3405, %v3613
    %v3678 = vsel %vm3550, %v3407, %v3614
    %v3679 = vsel %vm3551, %v3411, %v3615
    %v3680 = vsel %vm3552, %v3413, %v3616
    %v3681 = vsel %vm3553, %v3415, %v3617
    %v3682 = vsel %vm3554, %v3417, %v3618
    %v3683 = vsel %vm3555, %v3421, %v3619
    %v3684 = vsel %vm3556, %v3423, %v3620
    %v3685 = vsel %vm3557, %v3425, %v3621
    %v3686 = vsel %vm3558, %v3427, %v3622
    %v3687 = vsel %vm3559, %v3431, %v3623
    %v3688 = vsel %vm3560, %v3433, %v3624
    %v3689 = vsel %vm3561, %v3435, %v3625
    %v3690 = vsel %vm3562, %v3437, %v3626
    %v3691 = vsel %vm3563, %v3441, %v3627
    %v3692 = vsel %vm3564, %v3443, %v3628
    %v3693 = vsel %vm3565, %v3445, %v3629
    %v3694 = vsel %vm3566, %v3447, %v3630
    %v3695 = vsel %vm3567, %v3451, %v3631
    %v3696 = vsel %vm3568, %v3453, %v3632
    %v3697 = vsel %vm3569, %v3455, %v3633
    %v3698 = vsel %vm3570, %v3457, %v3634
    %v3699 = vsel %vm3571, %v3461, %v3635
    %v3700 = vsel %vm3572, %v3463, %v3636
    %v3701 = vsel %vm3573, %v3465, %v3637
    %v3702 = vsel %vm3574, %v3467, %v3638
    %v3703 = vsel %vm3575, %v3471, %v3639
    %v3704 = vsel %vm3576, %v3473, %v3640
    %v3705 = vsel %vm3577, %v3475, %v3641
    %v3706 = vsel %vm3578, %v3477, %v3642
    %v3707 = vsel %vm3579, %v3481, %v3643
    %v3708 = vsel %vm3580, %v3483, %v3644
    %v3709 = vsel %vm3581, %v3485, %v3645
    %v3710 = vsel %vm3582, %v3487, %v3646
    %v3711 = vsel %vm3583, %v3491, %v3647
    %v3712 = vsel %vm3584, %v3493, %v3648
    %v3713 = vsel %vm3585, %v3495, %v3649
    %v3714 = vsel %vm3586, %v3497, %v3650
    %v3715 = vsel %vm3587, %v3501, %v3651
    %v3716 = vsel %vm3588, %v3503, %v3652
    %v3717 = vsel %vm3589, %v3505, %v3653
    %v3718 = vsel %vm3590, %v3507, %v3654
    %v3719 = vsel %vm3591, %v3511, %v3655
    %v3720 = vsel %vm3592, %v3513, %v3656
    %v3721 = vsel %vm3593, %v3515, %v3657
    %v3722 = vsel %vm3594, %v3517, %v3658
    %v3723 = vsel %vm3595, %v3521, %v3659
    %v3724 = vsel %vm3596, %v3523, %v3660
    %v3725 = vsel %vm3597, %v3525, %v3661
    %v3726 = vsel %vm3598, %v3527, %v3662
    %v3727 = vsel %vm3599, %v3531, %v3663
    %v3728 = vsel %vm3600, %v3533, %v3664
    %v3729 = vsel %vm3601, %v3535, %v3665
    %v3730 = vsel %vm3602, %v3537, %v3666
    %v3731 = vpack.c.bf16 %v3669, %v3667
    %v3732 = vpack.c.bf16 %v3670, %v3668
    %v3733 = vpack.c.bf16 %v3673, %v3671
    %v3734 = vpack.c.bf16 %v3674, %v3672
    %v3735 = vpack.c.bf16 %v3677, %v3675
    %v3736 = vpack.c.bf16 %v3678, %v3676
    %v3737 = vpack.c.bf16 %v3681, %v3679
    %v3738 = vpack.c.bf16 %v3682, %v3680
    %v3739 = vpack.c.bf16 %v3685, %v3683
    %v3740 = vpack.c.bf16 %v3686, %v3684
    %v3741 = vpack.c.bf16 %v3689, %v3687
    %v3742 = vpack.c.bf16 %v3690, %v3688
    %v3743 = vpack.c.bf16 %v3693, %v3691
    %v3744 = vpack.c.bf16 %v3694, %v3692
    %v3745 = vpack.c.bf16 %v3697, %v3695
    %v3746 = vpack.c.bf16 %v3698, %v3696
    %v3747 = vpack.c.bf16 %v3701, %v3699
    %v3748 = vpack.c.bf16 %v3702, %v3700
    %v3749 = vpack.c.bf16 %v3705, %v3703
    %v3750 = vpack.c.bf16 %v3706, %v3704
    %v3751 = vpack.c.bf16 %v3709, %v3707
    %v3752 = vpack.c.bf16 %v3710, %v3708
    %v3753 = vpack.c.bf16 %v3713, %v3711
    %v3754 = vpack.c.bf16 %v3714, %v3712
    %v3755 = vpack.c.bf16 %v3717, %v3715
    %v3756 = vpack.c.bf16 %v3718, %v3716
    %v3757 = vpack.c.bf16 %v3721, %v3719
    %v3758 = vpack.c.bf16 %v3722, %v3720
    %v3759 = vpack.c.bf16 %v3725, %v3723
    %v3760 = vpack.c.bf16 %v3726, %v3724
    %v3761 = vpack.c.bf16 %v3729, %v3727
    %v3762 = vpack.c.bf16 %v3730, %v3728
    %v3763 = vld [vmem:[#allocation9] sm:$0xff]
    %v3764 = vld [vmem:[#allocation9 + $0x8] sm:$0xff]
    %v3765 = vld [vmem:[#allocation9 + $0x10] sm:$0xff]
    %v3766 = vld [vmem:[#allocation9 + $0x18] sm:$0xff]
    %v3767 = vld [vmem:[#allocation9 + $0x20] sm:$0xff]
    %v3768 = vld [vmem:[#allocation9 + $0x28] sm:$0xff]
    %v3769 = vld [vmem:[#allocation9 + $0x30] sm:$0xff]
    %v3770 = vld [vmem:[#allocation9 + $0x38] sm:$0xff]
    %v3771 = vld [vmem:[#allocation9 + $0x40] sm:$0xff]
    %v3772 = vld [vmem:[#allocation9 + $0x48] sm:$0xff]
    %v3773 = vld [vmem:[#allocation9 + $0x50] sm:$0xff]
    %v3774 = vld [vmem:[#allocation9 + $0x58] sm:$0xff]
    %v3775 = vld [vmem:[#allocation9 + $0x60] sm:$0xff]
    %v3776 = vld [vmem:[#allocation9 + $0x68] sm:$0xff]
    %v3777 = vld [vmem:[#allocation9 + $0x70] sm:$0xff]
    %v3778 = vld [vmem:[#allocation9 + $0x78] sm:$0xff]
    %v3779 = vld [vmem:[#allocation9 + $0x80] sm:$0xff]
    %v3780 = vld [vmem:[#allocation9 + $0x88] sm:$0xff]
    %v3781 = vld [vmem:[#allocation9 + $0x90] sm:$0xff]
    %v3782 = vld [vmem:[#allocation9 + $0x98] sm:$0xff]
    %v3783 = vld [vmem:[#allocation9 + $0xa0] sm:$0xff]
    %v3784 = vld [vmem:[#allocation9 + $0xa8] sm:$0xff]
    %v3785 = vld [vmem:[#allocation9 + $0xb0] sm:$0xff]
    %v3786 = vld [vmem:[#allocation9 + $0xb8] sm:$0xff]
    %v3787 = vld [vmem:[#allocation9 + $0xc0] sm:$0xff]
    %v3788 = vld [vmem:[#allocation9 + $0xc8] sm:$0xff]
    %v3789 = vld [vmem:[#allocation9 + $0xd0] sm:$0xff]
    %v3790 = vld [vmem:[#allocation9 + $0xd8] sm:$0xff]
    %v3791 = vld [vmem:[#allocation9 + $0xe0] sm:$0xff]
    %v3792 = vld [vmem:[#allocation9 + $0xe8] sm:$0xff]
    %v3793 = vld [vmem:[#allocation9 + $0xf0] sm:$0xff]
    %v3794 = vld [vmem:[#allocation9 + $0xf8] sm:$0xff]
    %v3795 = vld [vmem:[%s14] sm:$0x3]
    %v3797 = vlaneseq
    %v3798 = vshrl.u32 %v3797, 7
    %v3799 = vsub.s32 0, %v3798
    %v3800 = vrot.slane %v3795, %v3799
    %v3801 = vlaneseq
    %v3802 = vshrl.u32 %v3801, 7
    %v3803 = vsub.s32 1, %v3802
    %v3804 = vrot.slane %v3795, %v3803
    %v3839 = vunpack.c.l.b16 %v3763
    %v3840 = vunpack.c.h.b16 %v3763
    %v3841 = vunpack.c.l.b16 %v3764
    %v3842 = vunpack.c.h.b16 %v3764
    %v3843 = vunpack.c.l.b16 %v3765
    %v3844 = vunpack.c.h.b16 %v3765
    %v3845 = vunpack.c.l.b16 %v3766
    %v3846 = vunpack.c.h.b16 %v3766
    %v3847 = vunpack.c.l.b16 %v3767
    %v3848 = vunpack.c.h.b16 %v3767
    %v3849 = vunpack.c.l.b16 %v3768
    %v3850 = vunpack.c.h.b16 %v3768
    %v3851 = vunpack.c.l.b16 %v3769
    %v3852 = vunpack.c.h.b16 %v3769
    %v3853 = vunpack.c.l.b16 %v3770
    %v3854 = vunpack.c.h.b16 %v3770
    %v3855 = vunpack.c.l.b16 %v3771
    %v3856 = vunpack.c.h.b16 %v3771
    %v3857 = vunpack.c.l.b16 %v3772
    %v3858 = vunpack.c.h.b16 %v3772
    %v3859 = vunpack.c.l.b16 %v3773
    %v3860 = vunpack.c.h.b16 %v3773
    %v3861 = vunpack.c.l.b16 %v3774
    %v3862 = vunpack.c.h.b16 %v3774
    %v3863 = vunpack.c.l.b16 %v3775
    %v3864 = vunpack.c.h.b16 %v3775
    %v3865 = vunpack.c.l.b16 %v3776
    %v3866 = vunpack.c.h.b16 %v3776
    %v3867 = vunpack.c.l.b16 %v3777
    %v3868 = vunpack.c.h.b16 %v3777
    %v3869 = vunpack.c.l.b16 %v3778
    %v3870 = vunpack.c.h.b16 %v3778
    %v3871 = vunpack.c.l.b16 %v3779
    %v3872 = vunpack.c.h.b16 %v3779
    %v3873 = vunpack.c.l.b16 %v3780
    %v3874 = vunpack.c.h.b16 %v3780
    %v3875 = vunpack.c.l.b16 %v3781
    %v3876 = vunpack.c.h.b16 %v3781
    %v3877 = vunpack.c.l.b16 %v3782
    %v3878 = vunpack.c.h.b16 %v3782
    %v3879 = vunpack.c.l.b16 %v3783
    %v3880 = vunpack.c.h.b16 %v3783
    %v3881 = vunpack.c.l.b16 %v3784
    %v3882 = vunpack.c.h.b16 %v3784
    %v3883 = vunpack.c.l.b16 %v3785
    %v3884 = vunpack.c.h.b16 %v3785
    %v3885 = vunpack.c.l.b16 %v3786
    %v3886 = vunpack.c.h.b16 %v3786
    %v3887 = vunpack.c.l.b16 %v3787
    %v3888 = vunpack.c.h.b16 %v3787
    %v3889 = vunpack.c.l.b16 %v3788
    %v3890 = vunpack.c.h.b16 %v3788
    %v3891 = vunpack.c.l.b16 %v3789
    %v3892 = vunpack.c.h.b16 %v3789
    %v3893 = vunpack.c.l.b16 %v3790
    %v3894 = vunpack.c.h.b16 %v3790
    %v3895 = vunpack.c.l.b16 %v3791
    %v3896 = vunpack.c.h.b16 %v3791
    %v3897 = vunpack.c.l.b16 %v3792
    %v3898 = vunpack.c.h.b16 %v3792
    %v3899 = vunpack.c.l.b16 %v3793
    %v3900 = vunpack.c.h.b16 %v3793
    %v3901 = vunpack.c.l.b16 %v3794
    %v3902 = vunpack.c.h.b16 %v3794
    %v3903 = vpack.c.b16 %v3841, %v3839
    %v3904 = vpack.c.b16 %v3842, %v3840
    %v3905 = vpack.c.b16 %v3845, %v3843
    %v3906 = vpack.c.b16 %v3846, %v3844
    %v3907 = vpack.c.b16 %v3849, %v3847
    %v3908 = vpack.c.b16 %v3850, %v3848
    %v3909 = vpack.c.b16 %v3853, %v3851
    %v3910 = vpack.c.b16 %v3854, %v3852
    %v3911 = vpack.c.b16 %v3857, %v3855
    %v3912 = vpack.c.b16 %v3858, %v3856
    %v3913 = vpack.c.b16 %v3861, %v3859
    %v3914 = vpack.c.b16 %v3862, %v3860
    %v3915 = vpack.c.b16 %v3865, %v3863
    %v3916 = vpack.c.b16 %v3866, %v3864
    %v3917 = vpack.c.b16 %v3869, %v3867
    %v3918 = vpack.c.b16 %v3870, %v3868
    %v3919 = vpack.c.b16 %v3873, %v3871
    %v3920 = vpack.c.b16 %v3874, %v3872
    %v3921 = vpack.c.b16 %v3877, %v3875
    %v3922 = vpack.c.b16 %v3878, %v3876
    %v3923 = vpack.c.b16 %v3881, %v3879
    %v3924 = vpack.c.b16 %v3882, %v3880
    %v3925 = vpack.c.b16 %v3885, %v3883
    %v3926 = vpack.c.b16 %v3886, %v3884
    %v3927 = vpack.c.b16 %v3889, %v3887
    %v3928 = vpack.c.b16 %v3890, %v3888
    %v3929 = vpack.c.b16 %v3893, %v3891
    %v3930 = vpack.c.b16 %v3894, %v3892
    %v3931 = vpack.c.b16 %v3897, %v3895
    %v3932 = vpack.c.b16 %v3898, %v3896
    %v3933 = vpack.c.b16 %v3901, %v3899
    %v3934 = vpack.c.b16 %v3902, %v3900
    %3967 = vmatprep.subr.bf16.mxu0 %v3904
    %3968 = vmatpush1.bf16.msra.mxu0 %v3903
    %3969 = vmatprep.subr.bf16.mxu0 %v3906
    %3970 = vmatpush1.bf16.msra.mxu0 %v3905
    %3971 = vmatprep.subr.bf16.mxu0 %v3908
    %3972 = vmatpush1.bf16.msra.mxu0 %v3907
    %3973 = vmatprep.subr.bf16.mxu0 %v3910
    %3974 = vmatpush1.bf16.msra.mxu0 %v3909
    %3975 = vmatprep.subr.bf16.mxu0 %v3912
    %3976 = vmatpush1.bf16.msra.mxu0 %v3911
    %3977 = vmatprep.subr.bf16.mxu0 %v3914
    %3978 = vmatpush1.bf16.msra.mxu0 %v3913
    %3979 = vmatprep.subr.bf16.mxu0 %v3916
    %3980 = vmatpush1.bf16.msra.mxu0 %v3915
    %3981 = vmatprep.subr.bf16.mxu0 %v3918
    %3982 = vmatpush1.bf16.msra.mxu0 %v3917
    %3983 = vmatprep.subr.bf16.mxu0 %v3920
    %3984 = vmatpush1.bf16.msra.mxu0 %v3919
    %3985 = vmatprep.subr.bf16.mxu0 %v3922
    %3986 = vmatpush1.bf16.msra.mxu0 %v3921
    %3987 = vmatprep.subr.bf16.mxu0 %v3924
    %3988 = vmatpush1.bf16.msra.mxu0 %v3923
    %3989 = vmatprep.subr.bf16.mxu0 %v3926
    %3990 = vmatpush1.bf16.msra.mxu0 %v3925
    %3991 = vmatprep.subr.bf16.mxu0 %v3928
    %3992 = vmatpush1.bf16.msra.mxu0 %v3927
    %3993 = vmatprep.subr.bf16.mxu0 %v3930
    %3994 = vmatpush1.bf16.msra.mxu0 %v3929
    %3995 = vmatprep.subr.bf16.mxu0 %v3932
    %3996 = vmatpush1.bf16.msra.mxu0 %v3931
    %3997 = vmatprep.subr.bf16.mxu0 %v3934
    %3998 = vmatpush1.bf16.msra.mxu0 %v3933
    %3999 = vmatprep.mubr.bf16.mxu0 %v3732
    %4000 = vmatmul.mubr.bf16.gmra.mrb[0].mxu0 %v3731
    %v4001 = vpop.f32.mrb[0].mxu0
    %v4002 = vadd.f32 %v3800, %v4001
    %v4003 = vpop.f32.mrb[0].mxu0
    %v4004 = vadd.f32 %v3804, %v4003
    %v4005 = vpop.f32.mrb[0].mxu0
    %v4006 = vadd.f32 %v3800, %v4005
    %v4007 = vpop.f32.mrb[0].mxu0
    %v4008 = vadd.f32 %v3804, %v4007
    %4009 = vmatprep.mubr.bf16.mxu0 %v3734
    %4010 = vmatmul.mubr.bf16.gmra.mrb[0].mxu0 %v3733
    %v4011 = vpop.f32.mrb[0].mxu0
    %v4012 = vadd.f32 %v3800, %v4011
    %v4013 = vpop.f32.mrb[0].mxu0
    %v4014 = vadd.f32 %v3804, %v4013
    %v4015 = vpop.f32.mrb[0].mxu0
    %v4016 = vadd.f32 %v3800, %v4015
    %v4017 = vpop.f32.mrb[0].mxu0
    %v4018 = vadd.f32 %v3804, %v4017
    %4019 = vmatprep.mubr.bf16.mxu0 %v3736
    %4020 = vmatmul.mubr.bf16.gmra.mrb[0].mxu0 %v3735
    %v4021 = vpop.f32.mrb[0].mxu0
    %v4022 = vadd.f32 %v3800, %v4021
    %v4023 = vpop.f32.mrb[0].mxu0
    %v4024 = vadd.f32 %v3804, %v4023
    %v4025 = vpop.f32.mrb[0].mxu0
    %v4026 = vadd.f32 %v3800, %v4025
    %v4027 = vpop.f32.mrb[0].mxu0
    %v4028 = vadd.f32 %v3804, %v4027
    %4029 = vmatprep.mubr.bf16.mxu0 %v3738
    %4030 = vmatmul.mubr.bf16.gmra.mrb[0].mxu0 %v3737
    %v4031 = vpop.f32.mrb[0].mxu0
    %v4032 = vadd.f32 %v3800, %v4031
    %v4033 = vpop.f32.mrb[0].mxu0
    %v4034 = vadd.f32 %v3804, %v4033
    %v4035 = vpop.f32.mrb[0].mxu0
    %v4036 = vadd.f32 %v3800, %v4035
    %v4037 = vpop.f32.mrb[0].mxu0
    %v4038 = vadd.f32 %v3804, %v4037
    %4039 = vmatprep.mubr.bf16.mxu0 %v3740
    %4040 = vmatmul.mubr.bf16.gmra.mrb[0].mxu0 %v3739
    %v4041 = vpop.f32.mrb[0].mxu0
    %v4042 = vadd.f32 %v3800, %v4041
    %v4043 = vpop.f32.mrb[0].mxu0
    %v4044 = vadd.f32 %v3804, %v4043
    %v4045 = vpop.f32.mrb[0].mxu0
    %v4046 = vadd.f32 %v3800, %v4045
    %v4047 = vpop.f32.mrb[0].mxu0
    %v4048 = vadd.f32 %v3804, %v4047
    %4049 = vmatprep.mubr.bf16.mxu0 %v3742
    %4050 = vmatmul.mubr.bf16.gmra.mrb[0].mxu0 %v3741
    %v4051 = vpop.f32.mrb[0].mxu0
    %v4052 = vadd.f32 %v3800, %v4051
    %v4053 = vpop.f32.mrb[0].mxu0
    %v4054 = vadd.f32 %v3804, %v4053
    %v4055 = vpop.f32.mrb[0].mxu0
    %v4056 = vadd.f32 %v3800, %v4055
    %v4057 = vpop.f32.mrb[0].mxu0
    %v4058 = vadd.f32 %v3804, %v4057
    %4059 = vmatprep.mubr.bf16.mxu0 %v3744
    %4060 = vmatmul.mubr.bf16.gmra.mrb[0].mxu0 %v3743
    %v4061 = vpop.f32.mrb[0].mxu0
    %v4062 = vadd.f32 %v3800, %v4061
    %v4063 = vpop.f32.mrb[0].mxu0
    %v4064 = vadd.f32 %v3804, %v4063
    %v4065 = vpop.f32.mrb[0].mxu0
    %v4066 = vadd.f32 %v3800, %v4065
    %v4067 = vpop.f32.mrb[0].mxu0
    %v4068 = vadd.f32 %v3804, %v4067
    %4069 = vmatprep.mubr.bf16.mxu0 %v3746
    %4070 = vmatmul.mubr.bf16.gmra.mrb[0].mxu0 %v3745
    %v4071 = vpop.f32.mrb[0].mxu0
    %v4072 = vadd.f32 %v3800, %v4071
    %v4073 = vpop.f32.mrb[0].mxu0
    %v4074 = vadd.f32 %v3804, %v4073
    %v4075 = vpop.f32.mrb[0].mxu0
    %v4076 = vadd.f32 %v3800, %v4075
    %v4077 = vpop.f32.mrb[0].mxu0
    %v4078 = vadd.f32 %v3804, %v4077
    %4079 = vmatprep.mubr.bf16.mxu0 %v3748
    %4080 = vmatmul.mubr.bf16.gmra.mrb[0].mxu0 %v3747
    %v4081 = vpop.f32.mrb[0].mxu0
    %v4082 = vadd.f32 %v3800, %v4081
    %v4083 = vpop.f32.mrb[0].mxu0
    %v4084 = vadd.f32 %v3804, %v4083
    %v4085 = vpop.f32.mrb[0].mxu0
    %v4086 = vadd.f32 %v3800, %v4085
    %v4087 = vpop.f32.mrb[0].mxu0
    %v4088 = vadd.f32 %v3804, %v4087
    %4089 = vmatprep.mubr.bf16.mxu0 %v3750
    %4090 = vmatmul.mubr.bf16.gmra.mrb[0].mxu0 %v3749
    %v4091 = vpop.f32.mrb[0].mxu0
    %v4092 = vadd.f32 %v3800, %v4091
    %v4093 = vpop.f32.mrb[0].mxu0
    %v4094 = vadd.f32 %v3804, %v4093
    %v4095 = vpop.f32.mrb[0].mxu0
    %v4096 = vadd.f32 %v3800, %v4095
    %v4097 = vpop.f32.mrb[0].mxu0
    %v4098 = vadd.f32 %v3804, %v4097
    %4099 = vmatprep.mubr.bf16.mxu0 %v3752
    %4100 = vmatmul.mubr.bf16.gmra.mrb[0].mxu0 %v3751
    %v4101 = vpop.f32.mrb[0].mxu0
    %v4102 = vadd.f32 %v3800, %v4101
    %v4103 = vpop.f32.mrb[0].mxu0
    %v4104 = vadd.f32 %v3804, %v4103
    %v4105 = vpop.f32.mrb[0].mxu0
    %v4106 = vadd.f32 %v3800, %v4105
    %v4107 = vpop.f32.mrb[0].mxu0
    %v4108 = vadd.f32 %v3804, %v4107
    %4109 = vmatprep.mubr.bf16.mxu0 %v3754
    %4110 = vmatmul.mubr.bf16.gmra.mrb[0].mxu0 %v3753
    %v4111 = vpop.f32.mrb[0].mxu0
    %v4112 = vadd.f32 %v3800, %v4111
    %v4113 = vpop.f32.mrb[0].mxu0
    %v4114 = vadd.f32 %v3804, %v4113
    %v4115 = vpop.f32.mrb[0].mxu0
    %v4116 = vadd.f32 %v3800, %v4115
    %v4117 = vpop.f32.mrb[0].mxu0
    %v4118 = vadd.f32 %v3804, %v4117
    %4119 = vmatprep.mubr.bf16.mxu0 %v3756
    %4120 = vmatmul.mubr.bf16.gmra.mrb[0].mxu0 %v3755
    %v4121 = vpop.f32.mrb[0].mxu0
    %v4122 = vadd.f32 %v3800, %v4121
    %v4123 = vpop.f32.mrb[0].mxu0
    %v4124 = vadd.f32 %v3804, %v4123
    %v4125 = vpop.f32.mrb[0].mxu0
    %v4126 = vadd.f32 %v3800, %v4125
    %v4127 = vpop.f32.mrb[0].mxu0
    %v4128 = vadd.f32 %v3804, %v4127
    %4129 = vmatprep.mubr.bf16.mxu0 %v3758
    %4130 = vmatmul.mubr.bf16.gmra.mrb[0].mxu0 %v3757
    %v4131 = vpop.f32.mrb[0].mxu0
    %v4132 = vadd.f32 %v3800, %v4131
    %v4133 = vpop.f32.mrb[0].mxu0
    %v4134 = vadd.f32 %v3804, %v4133
    %v4135 = vpop.f32.mrb[0].mxu0
    %v4136 = vadd.f32 %v3800, %v4135
    %v4137 = vpop.f32.mrb[0].mxu0
    %v4138 = vadd.f32 %v3804, %v4137
    %4139 = vmatprep.mubr.bf16.mxu0 %v3760
    %4140 = vmatmul.mubr.bf16.gmra.mrb[0].mxu0 %v3759
    %v4141 = vpop.f32.mrb[0].mxu0
    %v4142 = vadd.f32 %v3800, %v4141
    %v4143 = vpop.f32.mrb[0].mxu0
    %v4144 = vadd.f32 %v3804, %v4143
    %v4145 = vpop.f32.mrb[0].mxu0
    %v4146 = vadd.f32 %v3800, %v4145
    %v4147 = vpop.f32.mrb[0].mxu0
    %v4148 = vadd.f32 %v3804, %v4147
    %4149 = vmatprep.mubr.bf16.mxu0 %v3762
    %4150 = vmatmul.mubr.bf16.gmra.mrb[0].mxu0 %v3761
    %v4151 = vpop.f32.mrb[0].mxu0
    %v4152 = vadd.f32 %v3800, %v4151
    %v4153 = vpop.f32.mrb[0].mxu0
    %v4154 = vadd.f32 %v3804, %v4153
    %v4155 = vpop.f32.mrb[0].mxu0
    %v4156 = vadd.f32 %v3800, %v4155
    %v4157 = vpop.f32.mrb[0].mxu0
    %v4158 = vadd.f32 %v3804, %v4157
    %4159 = vdwg.mxu0
    %4160 = vst [vmem:[%s15] sm:$0xff] %v4002
    %4161 = vst [vmem:[%s15 + $0x8] sm:$0xff] %v4004
    %4162 = vst [vmem:[%s15 + $0x10] sm:$0xff] %v4006
    %4163 = vst [vmem:[%s15 + $0x18] sm:$0xff] %v4008
    %4164 = vst [vmem:[%s15 + $0x20] sm:$0xff] %v4012
    %4165 = vst [vmem:[%s15 + $0x28] sm:$0xff] %v4014
    %4166 = vst [vmem:[%s15 + $0x30] sm:$0xff] %v4016
    %4167 = vst [vmem:[%s15 + $0x38] sm:$0xff] %v4018
    %4168 = vst [vmem:[%s15 + $0x40] sm:$0xff] %v4022
    %4169 = vst [vmem:[%s15 + $0x48] sm:$0xff] %v4024
    %4170 = vst [vmem:[%s15 + $0x50] sm:$0xff] %v4026
    %4171 = vst [vmem:[%s15 + $0x58] sm:$0xff] %v4028
    %4172 = vst [vmem:[%s15 + $0x60] sm:$0xff] %v4032
    %4173 = vst [vmem:[%s15 + $0x68] sm:$0xff] %v4034
    %4174 = vst [vmem:[%s15 + $0x70] sm:$0xff] %v4036
    %4175 = vst [vmem:[%s15 + $0x78] sm:$0xff] %v4038
    %4176 = vst [vmem:[%s15 + $0x80] sm:$0xff] %v4042
    %4177 = vst [vmem:[%s15 + $0x88] sm:$0xff] %v4044
    %4178 = vst [vmem:[%s15 + $0x90] sm:$0xff] %v4046
    %4179 = vst [vmem:[%s15 + $0x98] sm:$0xff] %v4048
    %4180 = vst [vmem:[%s15 + $0xa0] sm:$0xff] %v4052
    %4181 = vst [vmem:[%s15 + $0xa8] sm:$0xff] %v4054
    %4182 = vst [vmem:[%s15 + $0xb0] sm:$0xff] %v4056
    %4183 = vst [vmem:[%s15 + $0xb8] sm:$0xff] %v4058
    %4184 = vst [vmem:[%s15 + $0xc0] sm:$0xff] %v4062
    %4185 = vst [vmem:[%s15 + $0xc8] sm:$0xff] %v4064
    %4186 = vst [vmem:[%s15 + $0xd0] sm:$0xff] %v4066
    %4187 = vst [vmem:[%s15 + $0xd8] sm:$0xff] %v4068
    %4188 = vst [vmem:[%s15 + $0xe0] sm:$0xff] %v4072
    %4189 = vst [vmem:[%s15 + $0xe8] sm:$0xff] %v4074
    %4190 = vst [vmem:[%s15 + $0xf0] sm:$0xff] %v4076
    %4191 = vst [vmem:[%s15 + $0xf8] sm:$0xff] %v4078
    %4192 = vst [vmem:[%s15 + $0x100] sm:$0xff] %v4082
    %4193 = vst [vmem:[%s15 + $0x108] sm:$0xff] %v4084
    %4194 = vst [vmem:[%s15 + $0x110] sm:$0xff] %v4086
    %4195 = vst [vmem:[%s15 + $0x118] sm:$0xff] %v4088
    %4196 = vst [vmem:[%s15 + $0x120] sm:$0xff] %v4092
    %4197 = vst [vmem:[%s15 + $0x128] sm:$0xff] %v4094
    %4198 = vst [vmem:[%s15 + $0x130] sm:$0xff] %v4096
    %4199 = vst [vmem:[%s15 + $0x138] sm:$0xff] %v4098
    %4200 = vst [vmem:[%s15 + $0x140] sm:$0xff] %v4102
    %4201 = vst [vmem:[%s15 + $0x148] sm:$0xff] %v4104
    %4202 = vst [vmem:[%s15 + $0x150] sm:$0xff] %v4106
    %4203 = vst [vmem:[%s15 + $0x158] sm:$0xff] %v4108
    %4204 = vst [vmem:[%s15 + $0x160] sm:$0xff] %v4112
    %4205 = vst [vmem:[%s15 + $0x168] sm:$0xff] %v4114
    %4206 = vst [vmem:[%s15 + $0x170] sm:$0xff] %v4116
    %4207 = vst [vmem:[%s15 + $0x178] sm:$0xff] %v4118
    %4208 = vst [vmem:[%s15 + $0x180] sm:$0xff] %v4122
    %4209 = vst [vmem:[%s15 + $0x188] sm:$0xff] %v4124
    %4210 = vst [vmem:[%s15 + $0x190] sm:$0xff] %v4126
    %4211 = vst [vmem:[%s15 + $0x198] sm:$0xff] %v4128
    %4212 = vst [vmem:[%s15 + $0x1a0] sm:$0xff] %v4132
    %4213 = vst [vmem:[%s15 + $0x1a8] sm:$0xff] %v4134
    %4214 = vst [vmem:[%s15 + $0x1b0] sm:$0xff] %v4136
    %4215 = vst [vmem:[%s15 + $0x1b8] sm:$0xff] %v4138
    %4216 = vst [vmem:[%s15 + $0x1c0] sm:$0xff] %v4142
    %4217 = vst [vmem:[%s15 + $0x1c8] sm:$0xff] %v4144
    %4218 = vst [vmem:[%s15 + $0x1d0] sm:$0xff] %v4146
    %4219 = vst [vmem:[%s15 + $0x1d8] sm:$0xff] %v4148
    %4220 = vst [vmem:[%s15 + $0x1e0] sm:$0xff] %v4152
    %4221 = vst [vmem:[%s15 + $0x1e8] sm:$0xff] %v4154
    %4222 = vst [vmem:[%s15 + $0x1f0] sm:$0xff] %v4156
    %4223 = vst [vmem:[%s15 + $0x1f8] sm:$0xff] %v4158
    // Predicated region
    $region82: #{mlp_forward.1} parent=1 // pred_check
      _
    $region83: #{mlp_forward.1} parent=1 // pred_check_branch
      %4225 = sbr.rel (0) target = $region85
    $region84: #{mlp_forward.1} parent=1 // pred_region
      _
    $region85: #{mlp_forward.1} parent=1 // pred_fallthru
      _
    // Predicated region
    $region86: #{mlp_forward.1} parent=1 // pred_check
      _
    $region87: #{mlp_forward.1} parent=1 // pred_check_branch
      %4227 = sbr.rel (0) target = $region89
    $region88: #{mlp_forward.1} parent=1 // pred_region
      _
    $region89: #{mlp_forward.1} parent=1 // pred_fallthru
      _
    %4228 = vsyncpa [#allocation3], 1
    %4229 = vsyncpa [#allocation5], 1
    %4230 = vsyncpa [#allocation8], 1

</llo_original>
